<compile_context>
chip_gen: v6e
topology: v6e:2x2x1
jax: 0.10.0
libtpu: 0.0.40
codegen_flags: <defaults>
</compile_context>

<pallas_src>
import functools

import jax
import jax.numpy as jnp
from jax import lax
from jax.experimental import pallas as pl
from jax.experimental.pallas import tpu as pltpu


# (dv, du) of the "-1" tap of the 8 diff kernels (same order as the reference).
_DIFF_OFFSETS = (
    (-1, -1), (-1, 0), (-1, 1),
    (0, -1),           (0, 1),
    (1, -1),  (1, 0),  (1, 1),
)


def _sne_kernel(cam_ref, depth_ref, halo_up_ref, halo_dn_ref, out_ref, *,
                crop_top, img_h, img_w, tile_h, w_pad, h_pad):
    fx = cam_ref[0]
    fy = cam_ref[1]
    cx = cam_ref[2]
    cy = cam_ref[3]
    inv_fx = cam_ref[4]

    has_col_pad = w_pad > img_w          # static
    has_row_pad = h_pad > img_h          # static

    i = pl.program_id(0)
    row0 = i * tile_h                    # first global row of the tile
    row0_f = row0.astype(jnp.float32)

    shp = (tile_h, w_pad)
    local_row = lax.broadcasted_iota(jnp.int32, shp, 0)
    col_ids = lax.broadcasted_iota(jnp.int32, shp, 1)
    row_ids = local_row + row0
    vcy = row_ids.astype(jnp.float32) - cy
    ucx = col_ids.astype(jnp.float32) - cx

    is_row0 = local_row == 0
    is_rowL = local_row == (tile_h - 1)
    if not has_col_pad:                  # only needed when there are no pad cols
        left_valid = col_ids >= 1
        right_valid = col_ids <= (img_w - 2)

    # ---- Z / D / Y fields, exactly mirroring the reference ----------------
    def make_z(z0_, vcy_):
        z = z0_
        if crop_top:
            # reference: Y = z0*vcy/fx <= 0  (fx > 0, so the /fx is dropped)
            z = jnp.where(z0_ * vcy_ <= 0.0, 0.0, z)
        return jnp.where(jnp.isnan(z), 0.0, z)

    z0 = depth_ref[...]                                  # raw depth (may be NaN)
    Z = make_z(z0, vcy)
    Yz = jnp.where(jnp.isnan(z0), jnp.nan, Z)            # Y*fx == Yz*vcy
    D = 1.0 / Z                                          # exact: inf where Z == 0
    if has_col_pad:                                      # pad cols act as conv zero-pad
        D = jnp.where(col_ids < img_w, D, 0.0)
    if has_row_pad:
        D = jnp.where(row_ids < img_h, D, 0.0)

    # Single halo rows above/below the tile (scalar validity conditions).
    up_ok = row0 >= 1
    dn_ok = (row0 + tile_h) <= (img_h - 1)
    z0_up = jnp.where(up_ok, halo_up_ref[7:8, :], 0.0)   # global row row0 - 1
    z0_dn = jnp.where(dn_ok, halo_dn_ref[0:1, :], 0.0)   # global row row0 + tile_h
    Z_up = make_z(z0_up, (row0_f - 1.0) - cy)
    Z_dn = make_z(z0_dn, (row0_f + float(tile_h)) - cy)
    Yz_up = jnp.where(jnp.isnan(z0_up), jnp.nan, Z_up)
    Yz_dn = jnp.where(jnp.isnan(z0_dn), jnp.nan, Z_dn)
    D_up = jnp.where(up_ok, 1.0 / Z_up, 0.0)             # out-of-image -> conv zero-pad
    D_dn = jnp.where(dn_ok, 1.0 / Z_dn, 0.0)

    # ---- stencil shifts: XLU roll + halo-row fill --------------------------
    def shift_up(x, halo_row):                           # out[r, :] = x[r-1, :]
        rolled = pltpu.roll(x, shift=1, axis=0)
        return jnp.where(is_row0, halo_row, rolled)

    def shift_dn(x, halo_row):                           # out[r, :] = x[r+1, :]
        rolled = pltpu.roll(x, shift=tile_h - 1, axis=0)
        return jnp.where(is_rowL, halo_row, rolled)

    def shift_col(x, du):                                # out[:, j] = x[:, j+du]
        if du == 0:
            return x
        if du == 1:
            rolled = pltpu.roll(x, shift=w_pad - 1, axis=1)
            return rolled if has_col_pad else jnp.where(right_valid, rolled, 0.0)
        rolled = pltpu.roll(x, shift=1, axis=1)
        return rolled if has_col_pad else jnp.where(left_valid, rolled, 0.0)

    # ---- Gx / Gy "convolutions" --------------------------------------------
    Gu = shift_col(D, 1) - shift_col(D, -1)
    Gv = shift_dn(D, D_dn) - shift_up(D, D_up)
    nx_t = Gu * fx
    ny_t = Gv * fy

    # ---- a = cos(phi), b = sin(phi),  phi = atan(ny_t/nx_t) + pi ------------
    nt2 = nx_t * nx_t + ny_t * ny_t                      # reused in the offset loop
    r_phi = lax.rsqrt(nt2)
    sgn_x = jnp.where(nx_t >= 0.0, 1.0, -1.0)
    sgn_y = jnp.where(ny_t >= 0.0, 1.0, -1.0)
    abs_x = jnp.abs(nx_t)
    abs_y = jnp.abs(ny_t)
    c0 = abs_x * r_phi
    s0 = ny_t * sgn_x * r_phi
    inf_f = jnp.float32(jnp.inf)
    x_inf = abs_x == inf_f
    y_inf = abs_y == inf_f
    x_fin = abs_x < inf_f
    y_fin = abs_y < inf_f
    c_at = jnp.where(x_inf & y_fin, 1.0, jnp.where(y_inf & x_fin, 0.0, c0))
    s_at = jnp.where(x_inf & y_fin, 0.0,
                     jnp.where(y_inf & x_fin, sgn_y * sgn_x, s0))
    a = -c_at
    b = -s_at

    # pre-scaled gradients so the loop divide becomes a single approx recip
    nxf = nx_t * inv_fx
    nyf = ny_t * inv_fx

    # ---- 8 sparse difference stencils ---------------------------------------
    Z_by = {-1: shift_up(Z, Z_up), 0: Z, 1: shift_dn(Z, Z_dn)}
    Z0_by = {-1: shift_up(z0, z0_up), 0: z0, 1: shift_dn(z0, z0_dn)}
    Yz_by = {-1: shift_up(Yz, Yz_up), 0: Yz, 1: shift_dn(Yz, Yz_dn)}

    sum_w = jnp.zeros(shp, jnp.float32)                  # sum of masked 1/norm
    sum_nz = jnp.zeros(shp, jnp.float32)

    for dv, du in _DIFF_OFFSETS:
        z_s = shift_col(Z_by[dv], du)
        z0_s = shift_col(Z0_by[dv], du)
        yz_s = shift_col(Yz_by[dv], du)
        z_d = Z - z_s
        # X_d * fx (X built from pre-crop depth, exactly as in the reference)
        x_df = (z0 - z0_s) * ucx
        if du == 1:
            x_df = x_df - z0_s
        elif du == -1:
            x_df = x_df + z0_s
        # Y_d * fx (cropped Y field, NaN kept)
        y_df = (Yz - yz_s) * vcy
        if dv == 1:
            y_df = y_df - yz_s
        elif dv == -1:
            y_df = y_df + yz_s

        nz_i = (nxf * x_df + nyf * y_df) * pl.reciprocal(z_d, approx=True)
        inv_norm = lax.rsqrt(nt2 + nz_i * nz_i)
        nzc = nz_i * inv_norm
        nan_m = jnp.isnan(nzc)
        sum_w = sum_w + jnp.where(nan_m, 0.0, inv_norm)
        sum_nz = sum_nz + jnp.where(nan_m, 0.0, nzc)

    # ---- theta = -atan(p/q);  n = (sin(th)*a, sin(th)*b, cos(th)) -----------
    # sum_nx = nx_t*sum_w, sum_ny = ny_t*sum_w  (loop-invariant factors hoisted)
    p = (nx_t * a + ny_t * b) * sum_w
    q = sum_nz
    r_t = lax.rsqrt(p * p + q * q)
    sgn_q = jnp.where(q >= 0.0, 1.0, -1.0)
    sin_theta = -(p * sgn_q) * r_t
    nz = jnp.abs(q) * r_t
    nx = sin_theta * a
    ny = sin_theta * b

    bad = jnp.isnan(nz)
    nx = jnp.where(bad, 0.0, nx)
    ny = jnp.where(bad, 0.0, ny)
    nz = jnp.where(bad, -1.0, nz)

    sgn = jnp.where(ny > 0.0, -1.0, 1.0)
    out_ref[0] = nx * sgn
    out_ref[1] = ny * sgn
    out_ref[2] = nz * sgn


def sne_forward(depth, camParam, crop_top=True, tile_h=None):
    """Pallas TPU implementation of SNE.forward(depth, camParam) -> (3, H, W)."""
    depth = jnp.asarray(depth, jnp.float32)
    camParam = jnp.asarray(camParam, jnp.float32)
    h, w = depth.shape

    w_pad = max(128, ((w + 127) // 128) * 128)
    h8 = ((h + 7) // 8) * 8

    auto_tile = tile_h is None
    if auto_tile:
        # ~512 KB of f32 per tile-sized temporary: amortizes per-step overhead
        # while staying safe for v7x's 64 MiB VMEM (~30 live temporaries).
        target_rows = max(8, (512 * 1024) // (w_pad * 4))
        tile_h = max(8, min(256, (target_rows // 8) * 8))
    tile_h = max(8, (tile_h // 8) * 8)
    tile_h = min(tile_h, h8)

    # Prefer an even tile count (v7x: two TensorCores share the parallel axis)
    # as long as the tile does not shrink below ~half the target.
    if auto_tile:
        n_tiles = -(-h8 // tile_h)
        if n_tiles > 1 and n_tiles % 2 == 1:
            for cand in range(tile_h - 8, max(8, tile_h // 2) - 1, -8):
                if (-(-h8 // cand)) % 2 == 0:
                    tile_h = cand
                    break

    h_pad = ((h + tile_h - 1) // tile_h) * tile_h
    n_tiles = h_pad // tile_h
    th8 = tile_h // 8
    n8 = h_pad // 8

    if (h_pad, w_pad) != (h, w):
        depth_p = jnp.pad(depth, ((0, h_pad - h), (0, w_pad - w)))
    else:
        depth_p = depth

    fx = camParam[0, 0]
    cam_vec = jnp.stack(
        [fx, camParam[1, 1], camParam[0, 2], camParam[1, 2], 1.0 / fx]
    ).astype(jnp.float32)

    kernel = functools.partial(
        _sne_kernel, crop_top=crop_top, img_h=h, img_w=w,
        tile_h=tile_h, w_pad=w_pad, h_pad=h_pad)

    grid_spec = pltpu.PrefetchScalarGridSpec(
        num_scalar_prefetch=0,
        grid=(n_tiles,),
        in_specs=[
            # camera scalars (fx, fy, cx, cy, 1/fx) kept in SMEM
            pl.BlockSpec(memory_space=pltpu.MemorySpace.SMEM),
            # main row tile
            pl.BlockSpec((tile_h, w_pad), lambda i: (i, 0)),
            # 8-row (sublane-aligned) block holding the row above the tile
            pl.BlockSpec((8, w_pad), lambda i: (jnp.maximum(i * th8 - 1, 0), 0)),
            # 8-row block holding the row below the tile
            pl.BlockSpec((8, w_pad),
                         lambda i: (jnp.minimum((i + 1) * th8, n8 - 1), 0)),
        ],
        out_specs=pl.BlockSpec((3, tile_h, w_pad), lambda i: (0, i, 0)),
    )

    out = pl.pallas_call(
        kernel,
        out_shape=jax.ShapeDtypeStruct((3, h_pad, w_pad), jnp.float32),
        grid_spec=grid_spec,
        compiler_params=pltpu.CompilerParams(
            dimension_semantics=("parallel",),
            vmem_limit_bytes=48 * 1024 * 1024),
    )(cam_vec, depth_p, depth_p, depth_p)

    if (h_pad, w_pad) != (h, w):
        out = out[:, :h, :w]
    return out


# ---------------------------------------------------------------------------
# Pure-JAX reference (direct transcription of the PyTorch module) used as a
# loose-tolerance self-check in the smoke test below.
# ---------------------------------------------------------------------------
def _sne_reference(depth, camParam, crop_top=True):
    depth = jnp.asarray(depth, jnp.float32)
    h, w = depth.shape
    fx = camParam[0, 0]; fy = camParam[1, 1]
    cx = camParam[0, 2]; cy = camParam[1, 2]
    v_map = jnp.broadcast_to(jnp.arange(h, dtype=jnp.float32)[:, None], (h, w))
    u_map = jnp.broadcast_to(jnp.arange(w, dtype=jnp.float32)[None, :], (h, w))
    Z = depth
    Y = Z * (v_map - cy) / fx
    X = Z * (u_map - cx) / fx
    if crop_top:
        m = Y <= 0
        Z = jnp.where(m, 0.0, Z)
        Y = jnp.where(m, 0.0, Y)
    Z = jnp.where(jnp.isnan(Z), 0.0, Z)
    D = 1.0 / Z

    def shift(x, dv, du):                      # zero-padded x[i+dv, j+du]
        return jnp.pad(x, ((1, 1), (1, 1)))[1 + dv:1 + dv + h, 1 + du:1 + du + w]

    Gu = shift(D, 0, 1) - shift(D, 0, -1)
    Gv = shift(D, 1, 0) - shift(D, -1, 0)
    nx_t = Gu * fx
    ny_t = Gv * fy
    phi = jnp.arctan(ny_t / nx_t) + 3.141592657
    a = jnp.cos(phi)
    b = jnp.sin(phi)
    sum_nx = jnp.zeros((h, w), jnp.float32)
    sum_ny = jnp.zeros((h, w), jnp.float32)
    sum_nz = jnp.zeros((h, w), jnp.float32)
    for dv, du in _DIFF_OFFSETS:
        X_d = X - shift(X, dv, du)
        Y_d = Y - shift(Y, dv, du)
        Z_d = Z - shift(Z, dv, du)
        nz_i = (nx_t * X_d + ny_t * Y_d) / Z_d
        norm = jnp.sqrt(nx_t * nx_t + ny_t * ny_t + nz_i * nz_i)
        nxi = nx_t / norm
        nyi = ny_t / norm
        nzi = nz_i / norm
        sum_nx = sum_nx + jnp.where(jnp.isnan(nxi), 0.0, nxi)
        sum_ny = sum_ny + jnp.where(jnp.isnan(nyi), 0.0, nyi)
        sum_nz = sum_nz + jnp.where(jnp.isnan(nzi), 0.0, nzi)
    theta = -jnp.arctan((sum_nx * a + sum_ny * b) / sum_nz)
    nx = jnp.sin(theta) * jnp.cos(phi)
    ny = jnp.sin(theta) * jnp.sin(phi)
    nz = jnp.cos(theta)
    bad = jnp.isnan(nz)
    nx = jnp.where(bad, 0.0, nx)
    ny = jnp.where(bad, 0.0, ny)
    nz = jnp.where(bad, -1.0, nz)
    sgn = jnp.where(ny > 0, -1.0, 1.0)
    return jnp.stack([nx * sgn, ny * sgn, nz * sgn], axis=0)


if __name__ == "__main__":
    key = jax.random.PRNGKey(0)
    H, W = 32, 160
    depth = jax.random.uniform(key, (H, W), jnp.float32, minval=0.5, maxval=5.0)
    camParam = jnp.array(
        [[100.0, 0.0, W / 2.0],
         [0.0, 100.0, H / 2.0],
         [0.0, 0.0, 1.0]],
        dtype=jnp.float32,
    )

    # default-tile run + multi-tile run (exercises the row-halo machinery)
    normals = jax.block_until_ready(sne_forward(depth, camParam, crop_top=True))
    normals_tiled = jax.block_until_ready(
        sne_forward(depth, camParam, crop_top=True, tile_h=8))

    assert normals.shape == (3, H, W)
    assert normals.dtype == jnp.float32

    ref = jax.block_until_ready(_sne_reference(depth, camParam, crop_top=True))
    err0 = float(jnp.max(jnp.abs(normals - ref)))
    err1 = float(jnp.max(jnp.abs(normals_tiled - ref)))
    assert err0 < 2e-2, f"default-tile max err {err0}"
    assert err1 < 2e-2, f"multi-tile max err {err1}"

    print("KERNEL_OK")
</pallas_src>

<mosaic_0001>
module attributes {stable_mosaic.version = 11 : i64} {
  func.func @_sne_kernel(%arg0: i32, %arg1: memref<5xf32, #tpu.memory_space<smem>>, %arg2: memref<32x256xf32, #tpu.memory_space<vmem>>, %arg3: memref<8x256xf32, #tpu.memory_space<vmem>>, %arg4: memref<8x256xf32, #tpu.memory_space<vmem>>, %arg5: memref<3x32x256xf32, #tpu.memory_space<vmem>>) attributes {dimension_semantics = [#tpu.dimension_semantics<parallel>], iteration_bounds = array<i64: 1>, scalar_prefetch = 0 : i64, scratch_operands = 0 : i64, tpu.core_type = #tpu.core_type<tc>, window_params = [{transform_indices = @transform_0, window_bounds = array<i64: 5>}, {transform_indices = @transform_1, window_bounds = array<i64: 32, 256>}, {transform_indices = @transform_2, window_bounds = array<i64: 8, 256>}, {transform_indices = @transform_3, window_bounds = array<i64: 8, 256>}, {transform_indices = @transform_4, window_bounds = array<i64: 3, 32, 256>}]} {
    %c0 = arith.constant 0 : index
    %0 = memref.load %arg1[%c0] : memref<5xf32, #tpu.memory_space<smem>>
    %c1 = arith.constant 1 : index
    %1 = memref.load %arg1[%c1] : memref<5xf32, #tpu.memory_space<smem>>
    %c2 = arith.constant 2 : index
    %2 = memref.load %arg1[%c2] : memref<5xf32, #tpu.memory_space<smem>>
    %c3 = arith.constant 3 : index
    %3 = memref.load %arg1[%c3] : memref<5xf32, #tpu.memory_space<smem>>
    %c4 = arith.constant 4 : index
    %4 = memref.load %arg1[%c4] : memref<5xf32, #tpu.memory_space<smem>>
    %c32_i32 = arith.constant 32 : i32
    %5 = arith.muli %arg0, %c32_i32 : i32
    %6 = arith.sitofp %5 : i32 to f32
    %7 = tpu.iota {dimensions = array<i32: 0>} : vector<32x256xi32>
    %8 = tpu.iota {dimensions = array<i32: 1>} : vector<32x256xi32>
    %9 = vector.broadcast %5 : i32 to vector<32x256xi32>
    %10 = arith.addi %7, %9 : vector<32x256xi32>
    %11 = arith.sitofp %10 : vector<32x256xi32> to vector<32x256xf32>
    %12 = vector.broadcast %3 : f32 to vector<32x256xf32>
    %13 = arith.subf %11, %12 : vector<32x256xf32>
    %14 = arith.sitofp %8 : vector<32x256xi32> to vector<32x256xf32>
    %15 = vector.broadcast %2 : f32 to vector<32x256xf32>
    %16 = arith.subf %14, %15 : vector<32x256xf32>
    %c0_i32 = arith.constant 0 : i32
    %17 = vector.broadcast %c0_i32 : i32 to vector<32x256xi32>
    %18 = arith.cmpi eq, %7, %17 : vector<32x256xi32>
    %c31_i32 = arith.constant 31 : i32
    %19 = vector.broadcast %c31_i32 : i32 to vector<32x256xi32>
    %20 = arith.cmpi eq, %7, %19 : vector<32x256xi32>
    %c0_0 = arith.constant 0 : index
    %c0_1 = arith.constant 0 : index
    %21 = vector.load %arg2[%c0_0, %c0_1] : memref<32x256xf32, #tpu.memory_space<vmem>>, vector<32x256xf32>
    %22 = arith.mulf %21, %13 : vector<32x256xf32>
    %cst = arith.constant 0.000000e+00 : f32
    %23 = vector.broadcast %cst : f32 to vector<32x256xf32>
    %24 = arith.cmpf ole, %22, %23 : vector<32x256xf32>
    %cst_2 = arith.constant 0.000000e+00 : f32
    %25 = vector.broadcast %cst_2 : f32 to vector<32x256xf32>
    %26 = arith.select %24, %25, %21 : vector<32x256xi1>, vector<32x256xf32>
    %27 = arith.cmpf one, %26, %26 : vector<32x256xf32>
    %cst_3 = arith.constant 0.000000e+00 : f32
    %28 = vector.broadcast %cst_3 : f32 to vector<32x256xf32>
    %29 = arith.select %27, %28, %26 : vector<32x256xi1>, vector<32x256xf32>
    %30 = arith.cmpf one, %21, %21 : vector<32x256xf32>
    %cst_4 = arith.constant 0x7FC00000 : f32
    %31 = vector.broadcast %cst_4 : f32 to vector<32x256xf32>
    %32 = arith.select %30, %31, %29 : vector<32x256xi1>, vector<32x256xf32>
    %cst_5 = arith.constant 1.000000e+00 : f32
    %33 = vector.broadcast %cst_5 : f32 to vector<32x256xf32>
    %34 = arith.divf %33, %29 : vector<32x256xf32>
    %c160_i32 = arith.constant 160 : i32
    %35 = vector.broadcast %c160_i32 : i32 to vector<32x256xi32>
    %36 = arith.cmpi slt, %8, %35 : vector<32x256xi32>
    %cst_6 = arith.constant 0.000000e+00 : f32
    %37 = vector.broadcast %cst_6 : f32 to vector<32x256xf32>
    %38 = arith.select %36, %34, %37 : vector<32x256xi1>, vector<32x256xf32>
    %c1_i32 = arith.constant 1 : i32
    %39 = arith.cmpi sge, %5, %c1_i32 : i32
    %c32_i32_7 = arith.constant 32 : i32
    %40 = arith.addi %5, %c32_i32_7 : i32
    %c31_i32_8 = arith.constant 31 : i32
    %41 = arith.cmpi sle, %40, %c31_i32_8 : i32
    %c7 = arith.constant 7 : index
    %c0_9 = arith.constant 0 : index
    %42 = vector.load %arg3[%c7, %c0_9] : memref<8x256xf32, #tpu.memory_space<vmem>>, vector<1x256xf32>
    %cst_10 = arith.constant 0.000000e+00 : f32
    %43 = vector.broadcast %cst_10 : f32 to vector<1x256xf32>
    %44 = arith.select %39, %42, %43 : vector<1x256xf32>
    %c0_11 = arith.constant 0 : index
    %c0_12 = arith.constant 0 : index
    %45 = vector.load %arg4[%c0_11, %c0_12] : memref<8x256xf32, #tpu.memory_space<vmem>>, vector<1x256xf32>
    %cst_13 = arith.constant 0.000000e+00 : f32
    %46 = vector.broadcast %cst_13 : f32 to vector<1x256xf32>
    %47 = arith.select %41, %45, %46 : vector<1x256xf32>
    %cst_14 = arith.constant 1.000000e+00 : f32
    %48 = arith.subf %6, %cst_14 : f32
    %49 = arith.subf %48, %3 : f32
    %50 = vector.broadcast %49 : f32 to vector<1x256xf32>
    %51 = arith.mulf %44, %50 : vector<1x256xf32>
    %cst_15 = arith.constant 0.000000e+00 : f32
    %52 = vector.broadcast %cst_15 : f32 to vector<1x256xf32>
    %53 = arith.cmpf ole, %51, %52 : vector<1x256xf32>
    %cst_16 = arith.constant 0.000000e+00 : f32
    %54 = vector.broadcast %cst_16 : f32 to vector<1x256xf32>
    %55 = arith.select %53, %54, %44 : vector<1x256xi1>, vector<1x256xf32>
    %56 = arith.cmpf one, %55, %55 : vector<1x256xf32>
    %cst_17 = arith.constant 0.000000e+00 : f32
    %57 = vector.broadcast %cst_17 : f32 to vector<1x256xf32>
    %58 = arith.select %56, %57, %55 : vector<1x256xi1>, vector<1x256xf32>
    %cst_18 = arith.constant 3.200000e+01 : f32
    %59 = arith.addf %6, %cst_18 : f32
    %60 = arith.subf %59, %3 : f32
    %61 = vector.broadcast %60 : f32 to vector<1x256xf32>
    %62 = arith.mulf %47, %61 : vector<1x256xf32>
    %cst_19 = arith.constant 0.000000e+00 : f32
    %63 = vector.broadcast %cst_19 : f32 to vector<1x256xf32>
    %64 = arith.cmpf ole, %62, %63 : vector<1x256xf32>
    %cst_20 = arith.constant 0.000000e+00 : f32
    %65 = vector.broadcast %cst_20 : f32 to vector<1x256xf32>
    %66 = arith.select %64, %65, %47 : vector<1x256xi1>, vector<1x256xf32>
    %67 = arith.cmpf one, %66, %66 : vector<1x256xf32>
    %cst_21 = arith.constant 0.000000e+00 : f32
    %68 = vector.broadcast %cst_21 : f32 to vector<1x256xf32>
    %69 = arith.select %67, %68, %66 : vector<1x256xi1>, vector<1x256xf32>
    %70 = arith.cmpf one, %44, %44 : vector<1x256xf32>
    %cst_22 = arith.constant 0x7FC00000 : f32
    %71 = vector.broadcast %cst_22 : f32 to vector<1x256xf32>
    %72 = arith.select %70, %71, %58 : vector<1x256xi1>, vector<1x256xf32>
    %73 = arith.cmpf one, %47, %47 : vector<1x256xf32>
    %cst_23 = arith.constant 0x7FC00000 : f32
    %74 = vector.broadcast %cst_23 : f32 to vector<1x256xf32>
    %75 = arith.select %73, %74, %69 : vector<1x256xi1>, vector<1x256xf32>
    %cst_24 = arith.constant 1.000000e+00 : f32
    %76 = vector.broadcast %cst_24 : f32 to vector<1x256xf32>
    %77 = arith.divf %76, %58 : vector<1x256xf32>
    %cst_25 = arith.constant 0.000000e+00 : f32
    %78 = vector.broadcast %cst_25 : f32 to vector<1x256xf32>
    %79 = arith.select %39, %77, %78 : vector<1x256xf32>
    %cst_26 = arith.constant 1.000000e+00 : f32
    %80 = vector.broadcast %cst_26 : f32 to vector<1x256xf32>
    %81 = arith.divf %80, %69 : vector<1x256xf32>
    %cst_27 = arith.constant 0.000000e+00 : f32
    %82 = vector.broadcast %cst_27 : f32 to vector<1x256xf32>
    %83 = arith.select %41, %81, %82 : vector<1x256xf32>
    %c255_i32 = arith.constant 255 : i32
    %84 = tpu.dynamic_rotate %38 by %c255_i32 dim 1 : vector<32x256xf32>, i32 -> vector<32x256xf32>
    %c1_i32_28 = arith.constant 1 : i32
    %85 = tpu.dynamic_rotate %38 by %c1_i32_28 dim 1 : vector<32x256xf32>, i32 -> vector<32x256xf32>
    %86 = arith.subf %84, %85 : vector<32x256xf32>
    %c31_i32_29 = arith.constant 31 : i32
    %87 = tpu.dynamic_rotate %38 by %c31_i32_29 dim 0 : vector<32x256xf32>, i32 -> vector<32x256xf32>
    %88 = vector.shape_cast %83 : vector<1x256xf32> to vector<1x256xf32>
    %89 = vector.broadcast %88 : vector<1x256xf32> to vector<32x256xf32>
    %90 = arith.select %20, %89, %87 : vector<32x256xi1>, vector<32x256xf32>
    %c1_i32_30 = arith.constant 1 : i32
    %91 = tpu.dynamic_rotate %38 by %c1_i32_30 dim 0 : vector<32x256xf32>, i32 -> vector<32x256xf32>
    %92 = vector.shape_cast %79 : vector<1x256xf32> to vector<1x256xf32>
    %93 = vector.broadcast %92 : vector<1x256xf32> to vector<32x256xf32>
    %94 = arith.select %18, %93, %91 : vector<32x256xi1>, vector<32x256xf32>
    %95 = arith.subf %90, %94 : vector<32x256xf32>
    %96 = vector.broadcast %0 : f32 to vector<32x256xf32>
    %97 = arith.mulf %86, %96 : vector<32x256xf32>
    %98 = vector.broadcast %1 : f32 to vector<32x256xf32>
    %99 = arith.mulf %95, %98 : vector<32x256xf32>
    %100 = arith.mulf %97, %97 : vector<32x256xf32>
    %101 = arith.mulf %99, %99 : vector<32x256xf32>
    %102 = arith.addf %100, %101 : vector<32x256xf32>
    %103 = math.rsqrt %102 : vector<32x256xf32>
    %cst_31 = arith.constant 0.000000e+00 : f32
    %104 = vector.broadcast %cst_31 : f32 to vector<32x256xf32>
    %105 = arith.cmpf oge, %97, %104 : vector<32x256xf32>
    %cst_32 = arith.constant 1.000000e+00 : f32
    %cst_33 = arith.constant -1.000000e+00 : f32
    %106 = vector.broadcast %cst_32 : f32 to vector<32x256xf32>
    %107 = vector.broadcast %cst_33 : f32 to vector<32x256xf32>
    %108 = arith.select %105, %106, %107 : vector<32x256xi1>, vector<32x256xf32>
    %cst_34 = arith.constant 0.000000e+00 : f32
    %109 = vector.broadcast %cst_34 : f32 to vector<32x256xf32>
    %110 = arith.cmpf oge, %99, %109 : vector<32x256xf32>
    %cst_35 = arith.constant 1.000000e+00 : f32
    %cst_36 = arith.constant -1.000000e+00 : f32
    %111 = vector.broadcast %cst_35 : f32 to vector<32x256xf32>
    %112 = vector.broadcast %cst_36 : f32 to vector<32x256xf32>
    %113 = arith.select %110, %111, %112 : vector<32x256xi1>, vector<32x256xf32>
    %114 = math.absf %97 : vector<32x256xf32>
    %115 = math.absf %99 : vector<32x256xf32>
    %116 = arith.mulf %114, %103 : vector<32x256xf32>
    %117 = arith.mulf %99, %108 : vector<32x256xf32>
    %118 = arith.mulf %117, %103 : vector<32x256xf32>
    %cst_37 = arith.constant 0x7F800000 : f32
    %119 = vector.broadcast %cst_37 : f32 to vector<32x256xf32>
    %120 = arith.cmpf oeq, %114, %119 : vector<32x256xf32>
    %cst_38 = arith.constant 0x7F800000 : f32
    %121 = vector.broadcast %cst_38 : f32 to vector<32x256xf32>
    %122 = arith.cmpf oeq, %115, %121 : vector<32x256xf32>
    %cst_39 = arith.constant 0x7F800000 : f32
    %123 = vector.broadcast %cst_39 : f32 to vector<32x256xf32>
    %124 = arith.cmpf olt, %114, %123 : vector<32x256xf32>
    %cst_40 = arith.constant 0x7F800000 : f32
    %125 = vector.broadcast %cst_40 : f32 to vector<32x256xf32>
    %126 = arith.cmpf olt, %115, %125 : vector<32x256xf32>
    %127 = arith.andi %120, %126 : vector<32x256xi1>
    %128 = arith.andi %122, %124 : vector<32x256xi1>
    %cst_41 = arith.constant 0.000000e+00 : f32
    %129 = vector.broadcast %cst_41 : f32 to vector<32x256xf32>
    %130 = arith.select %128, %129, %116 : vector<32x256xi1>, vector<32x256xf32>
    %cst_42 = arith.constant 1.000000e+00 : f32
    %131 = vector.broadcast %cst_42 : f32 to vector<32x256xf32>
    %132 = arith.select %127, %131, %130 : vector<32x256xi1>, vector<32x256xf32>
    %133 = arith.andi %120, %126 : vector<32x256xi1>
    %134 = arith.andi %122, %124 : vector<32x256xi1>
    %135 = arith.mulf %113, %108 : vector<32x256xf32>
    %136 = arith.select %134, %135, %118 : vector<32x256xi1>, vector<32x256xf32>
    %cst_43 = arith.constant 0.000000e+00 : f32
    %137 = vector.broadcast %cst_43 : f32 to vector<32x256xf32>
    %138 = arith.select %133, %137, %136 : vector<32x256xi1>, vector<32x256xf32>
    %cst_44 = arith.constant 0.000000e+00 : f32
    %139 = vector.broadcast %cst_44 : f32 to vector<32x256xf32>
    %140 = arith.subf %139, %132 : vector<32x256xf32>
    %cst_45 = arith.constant 0.000000e+00 : f32
    %141 = vector.broadcast %cst_45 : f32 to vector<32x256xf32>
    %142 = arith.subf %141, %138 : vector<32x256xf32>
    %143 = vector.broadcast %4 : f32 to vector<32x256xf32>
    %144 = arith.mulf %97, %143 : vector<32x256xf32>
    %145 = vector.broadcast %4 : f32 to vector<32x256xf32>
    %146 = arith.mulf %99, %145 : vector<32x256xf32>
    %c1_i32_46 = arith.constant 1 : i32
    %147 = tpu.dynamic_rotate %29 by %c1_i32_46 dim 0 : vector<32x256xf32>, i32 -> vector<32x256xf32>
    %148 = vector.shape_cast %58 : vector<1x256xf32> to vector<1x256xf32>
    %149 = vector.broadcast %148 : vector<1x256xf32> to vector<32x256xf32>
    %150 = arith.select %18, %149, %147 : vector<32x256xi1>, vector<32x256xf32>
    %c31_i32_47 = arith.constant 31 : i32
    %151 = tpu.dynamic_rotate %29 by %c31_i32_47 dim 0 : vector<32x256xf32>, i32 -> vector<32x256xf32>
    %152 = vector.shape_cast %69 : vector<1x256xf32> to vector<1x256xf32>
    %153 = vector.broadcast %152 : vector<1x256xf32> to vector<32x256xf32>
    %154 = arith.select %20, %153, %151 : vector<32x256xi1>, vector<32x256xf32>
    %c1_i32_48 = arith.constant 1 : i32
    %155 = tpu.dynamic_rotate %21 by %c1_i32_48 dim 0 : vector<32x256xf32>, i32 -> vector<32x256xf32>
    %156 = vector.shape_cast %44 : vector<1x256xf32> to vector<1x256xf32>
    %157 = vector.broadcast %156 : vector<1x256xf32> to vector<32x256xf32>
    %158 = arith.select %18, %157, %155 : vector<32x256xi1>, vector<32x256xf32>
    %c31_i32_49 = arith.constant 31 : i32
    %159 = tpu.dynamic_rotate %21 by %c31_i32_49 dim 0 : vector<32x256xf32>, i32 -> vector<32x256xf32>
    %160 = vector.shape_cast %47 : vector<1x256xf32> to vector<1x256xf32>
    %161 = vector.broadcast %160 : vector<1x256xf32> to vector<32x256xf32>
    %162 = arith.select %20, %161, %159 : vector<32x256xi1>, vector<32x256xf32>
    %c1_i32_50 = arith.constant 1 : i32
    %163 = tpu.dynamic_rotate %32 by %c1_i32_50 dim 0 : vector<32x256xf32>, i32 -> vector<32x256xf32>
    %164 = vector.shape_cast %72 : vector<1x256xf32> to vector<1x256xf32>
    %165 = vector.broadcast %164 : vector<1x256xf32> to vector<32x256xf32>
    %166 = arith.select %18, %165, %163 : vector<32x256xi1>, vector<32x256xf32>
    %c31_i32_51 = arith.constant 31 : i32
    %167 = tpu.dynamic_rotate %32 by %c31_i32_51 dim 0 : vector<32x256xf32>, i32 -> vector<32x256xf32>
    %168 = vector.shape_cast %75 : vector<1x256xf32> to vector<1x256xf32>
    %169 = vector.broadcast %168 : vector<1x256xf32> to vector<32x256xf32>
    %170 = arith.select %20, %169, %167 : vector<32x256xi1>, vector<32x256xf32>
    %cst_52 = arith.constant 0.000000e+00 : f32
    %171 = vector.broadcast %cst_52 : f32 to vector<32x256xf32>
    %cst_53 = arith.constant 0.000000e+00 : f32
    %172 = vector.broadcast %cst_53 : f32 to vector<32x256xf32>
    %c1_i32_54 = arith.constant 1 : i32
    %173 = tpu.dynamic_rotate %150 by %c1_i32_54 dim 1 : vector<32x256xf32>, i32 -> vector<32x256xf32>
    %c1_i32_55 = arith.constant 1 : i32
    %174 = tpu.dynamic_rotate %158 by %c1_i32_55 dim 1 : vector<32x256xf32>, i32 -> vector<32x256xf32>
    %c1_i32_56 = arith.constant 1 : i32
    %175 = tpu.dynamic_rotate %166 by %c1_i32_56 dim 1 : vector<32x256xf32>, i32 -> vector<32x256xf32>
    %176 = arith.subf %29, %173 : vector<32x256xf32>
    %177 = arith.subf %21, %174 : vector<32x256xf32>
    %178 = arith.mulf %177, %16 : vector<32x256xf32>
    %179 = arith.addf %178, %174 : vector<32x256xf32>
    %180 = arith.subf %32, %175 : vector<32x256xf32>
    %181 = arith.mulf %180, %13 : vector<32x256xf32>
    %182 = arith.addf %181, %175 : vector<32x256xf32>
    %183 = arith.mulf %144, %179 : vector<32x256xf32>
    %184 = arith.mulf %146, %182 : vector<32x256xf32>
    %185 = arith.addf %183, %184 : vector<32x256xf32>
    %186 = tpu.reciprocal %176 {approx = true} : vector<32x256xf32> -> vector<32x256xf32>
    %187 = arith.mulf %185, %186 : vector<32x256xf32>
    %188 = arith.mulf %187, %187 : vector<32x256xf32>
    %189 = arith.addf %102, %188 : vector<32x256xf32>
    %190 = math.rsqrt %189 : vector<32x256xf32>
    %191 = arith.mulf %187, %190 : vector<32x256xf32>
    %192 = arith.cmpf one, %191, %191 : vector<32x256xf32>
    %cst_57 = arith.constant 0.000000e+00 : f32
    %193 = vector.broadcast %cst_57 : f32 to vector<32x256xf32>
    %194 = arith.select %192, %193, %190 : vector<32x256xi1>, vector<32x256xf32>
    %195 = arith.addf %171, %194 : vector<32x256xf32>
    %cst_58 = arith.constant 0.000000e+00 : f32
    %196 = vector.broadcast %cst_58 : f32 to vector<32x256xf32>
    %197 = arith.select %192, %196, %191 : vector<32x256xi1>, vector<32x256xf32>
    %198 = arith.addf %172, %197 : vector<32x256xf32>
    %199 = arith.subf %29, %150 : vector<32x256xf32>
    %200 = arith.subf %21, %158 : vector<32x256xf32>
    %201 = arith.mulf %200, %16 : vector<32x256xf32>
    %202 = arith.subf %32, %166 : vector<32x256xf32>
    %203 = arith.mulf %202, %13 : vector<32x256xf32>
    %204 = arith.addf %203, %166 : vector<32x256xf32>
    %205 = arith.mulf %144, %201 : vector<32x256xf32>
    %206 = arith.mulf %146, %204 : vector<32x256xf32>
    %207 = arith.addf %205, %206 : vector<32x256xf32>
    %208 = tpu.reciprocal %199 {approx = true} : vector<32x256xf32> -> vector<32x256xf32>
    %209 = arith.mulf %207, %208 : vector<32x256xf32>
    %210 = arith.mulf %209, %209 : vector<32x256xf32>
    %211 = arith.addf %102, %210 : vector<32x256xf32>
    %212 = math.rsqrt %211 : vector<32x256xf32>
    %213 = arith.mulf %209, %212 : vector<32x256xf32>
    %214 = arith.cmpf one, %213, %213 : vector<32x256xf32>
    %cst_59 = arith.constant 0.000000e+00 : f32
    %215 = vector.broadcast %cst_59 : f32 to vector<32x256xf32>
    %216 = arith.select %214, %215, %212 : vector<32x256xi1>, vector<32x256xf32>
    %217 = arith.addf %195, %216 : vector<32x256xf32>
    %cst_60 = arith.constant 0.000000e+00 : f32
    %218 = vector.broadcast %cst_60 : f32 to vector<32x256xf32>
    %219 = arith.select %214, %218, %213 : vector<32x256xi1>, vector<32x256xf32>
    %220 = arith.addf %198, %219 : vector<32x256xf32>
    %c255_i32_61 = arith.constant 255 : i32
    %221 = tpu.dynamic_rotate %150 by %c255_i32_61 dim 1 : vector<32x256xf32>, i32 -> vector<32x256xf32>
    %c255_i32_62 = arith.constant 255 : i32
    %222 = tpu.dynamic_rotate %158 by %c255_i32_62 dim 1 : vector<32x256xf32>, i32 -> vector<32x256xf32>
    %c255_i32_63 = arith.constant 255 : i32
    %223 = tpu.dynamic_rotate %166 by %c255_i32_63 dim 1 : vector<32x256xf32>, i32 -> vector<32x256xf32>
    %224 = arith.subf %29, %221 : vector<32x256xf32>
    %225 = arith.subf %21, %222 : vector<32x256xf32>
    %226 = arith.mulf %225, %16 : vector<32x256xf32>
    %227 = arith.subf %226, %222 : vector<32x256xf32>
    %228 = arith.subf %32, %223 : vector<32x256xf32>
    %229 = arith.mulf %228, %13 : vector<32x256xf32>
    %230 = arith.addf %229, %223 : vector<32x256xf32>
    %231 = arith.mulf %144, %227 : vector<32x256xf32>
    %232 = arith.mulf %146, %230 : vector<32x256xf32>
    %233 = arith.addf %231, %232 : vector<32x256xf32>
    %234 = tpu.reciprocal %224 {approx = true} : vector<32x256xf32> -> vector<32x256xf32>
    %235 = arith.mulf %233, %234 : vector<32x256xf32>
    %236 = arith.mulf %235, %235 : vector<32x256xf32>
    %237 = arith.addf %102, %236 : vector<32x256xf32>
    %238 = math.rsqrt %237 : vector<32x256xf32>
    %239 = arith.mulf %235, %238 : vector<32x256xf32>
    %240 = arith.cmpf one, %239, %239 : vector<32x256xf32>
    %cst_64 = arith.constant 0.000000e+00 : f32
    %241 = vector.broadcast %cst_64 : f32 to vector<32x256xf32>
    %242 = arith.select %240, %241, %238 : vector<32x256xi1>, vector<32x256xf32>
    %243 = arith.addf %217, %242 : vector<32x256xf32>
    %cst_65 = arith.constant 0.000000e+00 : f32
    %244 = vector.broadcast %cst_65 : f32 to vector<32x256xf32>
    %245 = arith.select %240, %244, %239 : vector<32x256xi1>, vector<32x256xf32>
    %246 = arith.addf %220, %245 : vector<32x256xf32>
    %c1_i32_66 = arith.constant 1 : i32
    %247 = tpu.dynamic_rotate %29 by %c1_i32_66 dim 1 : vector<32x256xf32>, i32 -> vector<32x256xf32>
    %c1_i32_67 = arith.constant 1 : i32
    %248 = tpu.dynamic_rotate %21 by %c1_i32_67 dim 1 : vector<32x256xf32>, i32 -> vector<32x256xf32>
    %c1_i32_68 = arith.constant 1 : i32
    %249 = tpu.dynamic_rotate %32 by %c1_i32_68 dim 1 : vector<32x256xf32>, i32 -> vector<32x256xf32>
    %250 = arith.subf %29, %247 : vector<32x256xf32>
    %251 = arith.subf %21, %248 : vector<32x256xf32>
    %252 = arith.mulf %251, %16 : vector<32x256xf32>
    %253 = arith.addf %252, %248 : vector<32x256xf32>
    %254 = arith.subf %32, %249 : vector<32x256xf32>
    %255 = arith.mulf %254, %13 : vector<32x256xf32>
    %256 = arith.mulf %144, %253 : vector<32x256xf32>
    %257 = arith.mulf %146, %255 : vector<32x256xf32>
    %258 = arith.addf %256, %257 : vector<32x256xf32>
    %259 = tpu.reciprocal %250 {approx = true} : vector<32x256xf32> -> vector<32x256xf32>
    %260 = arith.mulf %258, %259 : vector<32x256xf32>
    %261 = arith.mulf %260, %260 : vector<32x256xf32>
    %262 = arith.addf %102, %261 : vector<32x256xf32>
    %263 = math.rsqrt %262 : vector<32x256xf32>
    %264 = arith.mulf %260, %263 : vector<32x256xf32>
    %265 = arith.cmpf one, %264, %264 : vector<32x256xf32>
    %cst_69 = arith.constant 0.000000e+00 : f32
    %266 = vector.broadcast %cst_69 : f32 to vector<32x256xf32>
    %267 = arith.select %265, %266, %263 : vector<32x256xi1>, vector<32x256xf32>
    %268 = arith.addf %243, %267 : vector<32x256xf32>
    %cst_70 = arith.constant 0.000000e+00 : f32
    %269 = vector.broadcast %cst_70 : f32 to vector<32x256xf32>
    %270 = arith.select %265, %269, %264 : vector<32x256xi1>, vector<32x256xf32>
    %271 = arith.addf %246, %270 : vector<32x256xf32>
    %c255_i32_71 = arith.constant 255 : i32
    %272 = tpu.dynamic_rotate %29 by %c255_i32_71 dim 1 : vector<32x256xf32>, i32 -> vector<32x256xf32>
    %c255_i32_72 = arith.constant 255 : i32
    %273 = tpu.dynamic_rotate %21 by %c255_i32_72 dim 1 : vector<32x256xf32>, i32 -> vector<32x256xf32>
    %c255_i32_73 = arith.constant 255 : i32
    %274 = tpu.dynamic_rotate %32 by %c255_i32_73 dim 1 : vector<32x256xf32>, i32 -> vector<32x256xf32>
    %275 = arith.subf %29, %272 : vector<32x256xf32>
    %276 = arith.subf %21, %273 : vector<32x256xf32>
    %277 = arith.mulf %276, %16 : vector<32x256xf32>
    %278 = arith.subf %277, %273 : vector<32x256xf32>
    %279 = arith.subf %32, %274 : vector<32x256xf32>
    %280 = arith.mulf %279, %13 : vector<32x256xf32>
    %281 = arith.mulf %144, %278 : vector<32x256xf32>
    %282 = arith.mulf %146, %280 : vector<32x256xf32>
    %283 = arith.addf %281, %282 : vector<32x256xf32>
    %284 = tpu.reciprocal %275 {approx = true} : vector<32x256xf32> -> vector<32x256xf32>
    %285 = arith.mulf %283, %284 : vector<32x256xf32>
    %286 = arith.mulf %285, %285 : vector<32x256xf32>
    %287 = arith.addf %102, %286 : vector<32x256xf32>
    %288 = math.rsqrt %287 : vector<32x256xf32>
    %289 = arith.mulf %285, %288 : vector<32x256xf32>
    %290 = arith.cmpf one, %289, %289 : vector<32x256xf32>
    %cst_74 = arith.constant 0.000000e+00 : f32
    %291 = vector.broadcast %cst_74 : f32 to vector<32x256xf32>
    %292 = arith.select %290, %291, %288 : vector<32x256xi1>, vector<32x256xf32>
    %293 = arith.addf %268, %292 : vector<32x256xf32>
    %cst_75 = arith.constant 0.000000e+00 : f32
    %294 = vector.broadcast %cst_75 : f32 to vector<32x256xf32>
    %295 = arith.select %290, %294, %289 : vector<32x256xi1>, vector<32x256xf32>
    %296 = arith.addf %271, %295 : vector<32x256xf32>
    %c1_i32_76 = arith.constant 1 : i32
    %297 = tpu.dynamic_rotate %154 by %c1_i32_76 dim 1 : vector<32x256xf32>, i32 -> vector<32x256xf32>
    %c1_i32_77 = arith.constant 1 : i32
    %298 = tpu.dynamic_rotate %162 by %c1_i32_77 dim 1 : vector<32x256xf32>, i32 -> vector<32x256xf32>
    %c1_i32_78 = arith.constant 1 : i32
    %299 = tpu.dynamic_rotate %170 by %c1_i32_78 dim 1 : vector<32x256xf32>, i32 -> vector<32x256xf32>
    %300 = arith.subf %29, %297 : vector<32x256xf32>
    %301 = arith.subf %21, %298 : vector<32x256xf32>
    %302 = arith.mulf %301, %16 : vector<32x256xf32>
    %303 = arith.addf %302, %298 : vector<32x256xf32>
    %304 = arith.subf %32, %299 : vector<32x256xf32>
    %305 = arith.mulf %304, %13 : vector<32x256xf32>
    %306 = arith.subf %305, %299 : vector<32x256xf32>
    %307 = arith.mulf %144, %303 : vector<32x256xf32>
    %308 = arith.mulf %146, %306 : vector<32x256xf32>
    %309 = arith.addf %307, %308 : vector<32x256xf32>
    %310 = tpu.reciprocal %300 {approx = true} : vector<32x256xf32> -> vector<32x256xf32>
    %311 = arith.mulf %309, %310 : vector<32x256xf32>
    %312 = arith.mulf %311, %311 : vector<32x256xf32>
    %313 = arith.addf %102, %312 : vector<32x256xf32>
    %314 = math.rsqrt %313 : vector<32x256xf32>
    %315 = arith.mulf %311, %314 : vector<32x256xf32>
    %316 = arith.cmpf one, %315, %315 : vector<32x256xf32>
    %cst_79 = arith.constant 0.000000e+00 : f32
    %317 = vector.broadcast %cst_79 : f32 to vector<32x256xf32>
    %318 = arith.select %316, %317, %314 : vector<32x256xi1>, vector<32x256xf32>
    %319 = arith.addf %293, %318 : vector<32x256xf32>
    %cst_80 = arith.constant 0.000000e+00 : f32
    %320 = vector.broadcast %cst_80 : f32 to vector<32x256xf32>
    %321 = arith.select %316, %320, %315 : vector<32x256xi1>, vector<32x256xf32>
    %322 = arith.addf %296, %321 : vector<32x256xf32>
    %323 = arith.subf %29, %154 : vector<32x256xf32>
    %324 = arith.subf %21, %162 : vector<32x256xf32>
    %325 = arith.mulf %324, %16 : vector<32x256xf32>
    %326 = arith.subf %32, %170 : vector<32x256xf32>
    %327 = arith.mulf %326, %13 : vector<32x256xf32>
    %328 = arith.subf %327, %170 : vector<32x256xf32>
    %329 = arith.mulf %144, %325 : vector<32x256xf32>
    %330 = arith.mulf %146, %328 : vector<32x256xf32>
    %331 = arith.addf %329, %330 : vector<32x256xf32>
    %332 = tpu.reciprocal %323 {approx = true} : vector<32x256xf32> -> vector<32x256xf32>
    %333 = arith.mulf %331, %332 : vector<32x256xf32>
    %334 = arith.mulf %333, %333 : vector<32x256xf32>
    %335 = arith.addf %102, %334 : vector<32x256xf32>
    %336 = math.rsqrt %335 : vector<32x256xf32>
    %337 = arith.mulf %333, %336 : vector<32x256xf32>
    %338 = arith.cmpf one, %337, %337 : vector<32x256xf32>
    %cst_81 = arith.constant 0.000000e+00 : f32
    %339 = vector.broadcast %cst_81 : f32 to vector<32x256xf32>
    %340 = arith.select %338, %339, %336 : vector<32x256xi1>, vector<32x256xf32>
    %341 = arith.addf %319, %340 : vector<32x256xf32>
    %cst_82 = arith.constant 0.000000e+00 : f32
    %342 = vector.broadcast %cst_82 : f32 to vector<32x256xf32>
    %343 = arith.select %338, %342, %337 : vector<32x256xi1>, vector<32x256xf32>
    %344 = arith.addf %322, %343 : vector<32x256xf32>
    %c255_i32_83 = arith.constant 255 : i32
    %345 = tpu.dynamic_rotate %154 by %c255_i32_83 dim 1 : vector<32x256xf32>, i32 -> vector<32x256xf32>
    %c255_i32_84 = arith.constant 255 : i32
    %346 = tpu.dynamic_rotate %162 by %c255_i32_84 dim 1 : vector<32x256xf32>, i32 -> vector<32x256xf32>
    %c255_i32_85 = arith.constant 255 : i32
    %347 = tpu.dynamic_rotate %170 by %c255_i32_85 dim 1 : vector<32x256xf32>, i32 -> vector<32x256xf32>
    %348 = arith.subf %29, %345 : vector<32x256xf32>
    %349 = arith.subf %21, %346 : vector<32x256xf32>
    %350 = arith.mulf %349, %16 : vector<32x256xf32>
    %351 = arith.subf %350, %346 : vector<32x256xf32>
    %352 = arith.subf %32, %347 : vector<32x256xf32>
    %353 = arith.mulf %352, %13 : vector<32x256xf32>
    %354 = arith.subf %353, %347 : vector<32x256xf32>
    %355 = arith.mulf %144, %351 : vector<32x256xf32>
    %356 = arith.mulf %146, %354 : vector<32x256xf32>
    %357 = arith.addf %355, %356 : vector<32x256xf32>
    %358 = tpu.reciprocal %348 {approx = true} : vector<32x256xf32> -> vector<32x256xf32>
    %359 = arith.mulf %357, %358 : vector<32x256xf32>
    %360 = arith.mulf %359, %359 : vector<32x256xf32>
    %361 = arith.addf %102, %360 : vector<32x256xf32>
    %362 = math.rsqrt %361 : vector<32x256xf32>
    %363 = arith.mulf %359, %362 : vector<32x256xf32>
    %364 = arith.cmpf one, %363, %363 : vector<32x256xf32>
    %cst_86 = arith.constant 0.000000e+00 : f32
    %365 = vector.broadcast %cst_86 : f32 to vector<32x256xf32>
    %366 = arith.select %364, %365, %362 : vector<32x256xi1>, vector<32x256xf32>
    %367 = arith.addf %341, %366 : vector<32x256xf32>
    %cst_87 = arith.constant 0.000000e+00 : f32
    %368 = vector.broadcast %cst_87 : f32 to vector<32x256xf32>
    %369 = arith.select %364, %368, %363 : vector<32x256xi1>, vector<32x256xf32>
    %370 = arith.addf %344, %369 : vector<32x256xf32>
    %371 = arith.mulf %97, %140 : vector<32x256xf32>
    %372 = arith.mulf %99, %142 : vector<32x256xf32>
    %373 = arith.addf %371, %372 : vector<32x256xf32>
    %374 = arith.mulf %373, %367 : vector<32x256xf32>
    %375 = arith.mulf %374, %374 : vector<32x256xf32>
    %376 = arith.mulf %370, %370 : vector<32x256xf32>
    %377 = arith.addf %375, %376 : vector<32x256xf32>
    %378 = math.rsqrt %377 : vector<32x256xf32>
    %cst_88 = arith.constant 0.000000e+00 : f32
    %379 = vector.broadcast %cst_88 : f32 to vector<32x256xf32>
    %380 = arith.cmpf oge, %370, %379 : vector<32x256xf32>
    %cst_89 = arith.constant 1.000000e+00 : f32
    %cst_90 = arith.constant -1.000000e+00 : f32
    %381 = vector.broadcast %cst_89 : f32 to vector<32x256xf32>
    %382 = vector.broadcast %cst_90 : f32 to vector<32x256xf32>
    %383 = arith.select %380, %381, %382 : vector<32x256xi1>, vector<32x256xf32>
    %384 = arith.mulf %374, %383 : vector<32x256xf32>
    %cst_91 = arith.constant 0.000000e+00 : f32
    %385 = vector.broadcast %cst_91 : f32 to vector<32x256xf32>
    %386 = arith.subf %385, %384 : vector<32x256xf32>
    %387 = arith.mulf %386, %378 : vector<32x256xf32>
    %388 = math.absf %370 : vector<32x256xf32>
    %389 = arith.mulf %388, %378 : vector<32x256xf32>
    %390 = arith.mulf %387, %140 : vector<32x256xf32>
    %391 = arith.mulf %387, %142 : vector<32x256xf32>
    %392 = arith.cmpf one, %389, %389 : vector<32x256xf32>
    %cst_92 = arith.constant 0.000000e+00 : f32
    %393 = vector.broadcast %cst_92 : f32 to vector<32x256xf32>
    %394 = arith.select %392, %393, %390 : vector<32x256xi1>, vector<32x256xf32>
    %cst_93 = arith.constant 0.000000e+00 : f32
    %395 = vector.broadcast %cst_93 : f32 to vector<32x256xf32>
    %396 = arith.select %392, %395, %391 : vector<32x256xi1>, vector<32x256xf32>
    %cst_94 = arith.constant -1.000000e+00 : f32
    %397 = vector.broadcast %cst_94 : f32 to vector<32x256xf32>
    %398 = arith.select %392, %397, %389 : vector<32x256xi1>, vector<32x256xf32>
    %cst_95 = arith.constant 0.000000e+00 : f32
    %399 = vector.broadcast %cst_95 : f32 to vector<32x256xf32>
    %400 = arith.cmpf ogt, %396, %399 : vector<32x256xf32>
    %cst_96 = arith.constant -1.000000e+00 : f32
    %cst_97 = arith.constant 1.000000e+00 : f32
    %401 = vector.broadcast %cst_96 : f32 to vector<32x256xf32>
    %402 = vector.broadcast %cst_97 : f32 to vector<32x256xf32>
    %403 = arith.select %400, %401, %402 : vector<32x256xi1>, vector<32x256xf32>
    %404 = arith.mulf %394, %403 : vector<32x256xf32>
    %c0_98 = arith.constant 0 : index
    %c0_99 = arith.constant 0 : index
    %c0_100 = arith.constant 0 : index
    %405 = vector.load %arg5[%c0_98, %c0_99, %c0_100] : memref<3x32x256xf32, #tpu.memory_space<vmem>>, vector<1x32x256xf32>
    %406 = vector.shape_cast %405 : vector<1x32x256xf32> to vector<32x256xf32>
    %407 = vector.shape_cast %404 : vector<32x256xf32> to vector<1x32x256xf32>
    tpu.vector_store %arg5[%c0_98, %c0_99, %c0_100], %407 {strides = array<i32>} : memref<3x32x256xf32, #tpu.memory_space<vmem>>, vector<1x32x256xf32>,
    %408 = arith.mulf %396, %403 : vector<32x256xf32>
    %c1_101 = arith.constant 1 : index
    %c0_102 = arith.constant 0 : index
    %c0_103 = arith.constant 0 : index
    %409 = vector.load %arg5[%c1_101, %c0_102, %c0_103] : memref<3x32x256xf32, #tpu.memory_space<vmem>>, vector<1x32x256xf32>
    %410 = vector.shape_cast %409 : vector<1x32x256xf32> to vector<32x256xf32>
    %411 = vector.shape_cast %408 : vector<32x256xf32> to vector<1x32x256xf32>
    tpu.vector_store %arg5[%c1_101, %c0_102, %c0_103], %411 {strides = array<i32>} : memref<3x32x256xf32, #tpu.memory_space<vmem>>, vector<1x32x256xf32>,
    %412 = arith.mulf %398, %403 : vector<32x256xf32>
    %c2_104 = arith.constant 2 : index
    %c0_105 = arith.constant 0 : index
    %c0_106 = arith.constant 0 : index
    %413 = vector.load %arg5[%c2_104, %c0_105, %c0_106] : memref<3x32x256xf32, #tpu.memory_space<vmem>>, vector<1x32x256xf32>
    %414 = vector.shape_cast %413 : vector<1x32x256xf32> to vector<32x256xf32>
    %415 = vector.shape_cast %412 : vector<32x256xf32> to vector<1x32x256xf32>
    tpu.vector_store %arg5[%c2_104, %c0_105, %c0_106], %415 {strides = array<i32>} : memref<3x32x256xf32, #tpu.memory_space<vmem>>, vector<1x32x256xf32>,
    return
  }
  func.func @transform_0(%arg0: i32) -> i32 {
    %c0_i32 = arith.constant 0 : i32
    %c0_i32_0 = arith.constant 0 : i32
    return %c0_i32 : i32
  }
  func.func @transform_1(%arg0: i32) -> (i32, i32) {
    %c0_i32 = arith.constant 0 : i32
    %c0_i32_0 = arith.constant 0 : i32
    return %arg0, %c0_i32 : i32, i32
  }
  func.func @transform_2(%arg0: i32) -> (i32, i32) {
    %c4_i32 = arith.constant 4 : i32
    %0 = arith.muli %arg0, %c4_i32 : i32
    %c1_i32 = arith.constant 1 : i32
    %1 = arith.subi %0, %c1_i32 : i32
    %c0_i32 = arith.constant 0 : i32
    %2 = arith.maxsi %1, %c0_i32 : i32
    %c0_i32_0 = arith.constant 0 : i32
    %c0_i32_1 = arith.constant 0 : i32
    return %2, %c0_i32_0 : i32, i32
  }
  func.func @transform_3(%arg0: i32) -> (i32, i32) {
    %c1_i32 = arith.constant 1 : i32
    %0 = arith.addi %arg0, %c1_i32 : i32
    %c4_i32 = arith.constant 4 : i32
    %1 = arith.muli %0, %c4_i32 : i32
    %c3_i32 = arith.constant 3 : i32
    %2 = arith.minsi %1, %c3_i32 : i32
    %c0_i32 = arith.constant 0 : i32
    %c0_i32_0 = arith.constant 0 : i32
    return %2, %c0_i32 : i32, i32
  }
  func.func @transform_4(%arg0: i32) -> (i32, i32, i32) {
    %c0_i32 = arith.constant 0 : i32
    %c0_i32_0 = arith.constant 0 : i32
    %c0_i32_1 = arith.constant 0 : i32
    return %c0_i32, %arg0, %c0_i32_0 : i32, i32, i32
  }
}

</mosaic_0001>

<llo_original>
// kernel: tpu_custom_call.1
$region0: #{tpu_custom_call.1}
  #allocation0 [shape = 'u32[]', space=smem, size = 0x4, offset = 0x4, fixed_abs, tag = 'smem constant byte address 0x4 - core index']
  #allocation1 [shape = 'u32[144,128]{1,0:T(1,128)}', space=vmem, size = 0x12000, scoped, tag = 'internal scratch']
  %s0 = inlined_call_operand.hbm [shape: f32[5], index: 0, kind: input, shape index: {}]
  %s1 = inlined_call_operand.hbm [shape: f32[32,256], index: 1, kind: input, shape index: {}]
  %s2 = inlined_call_operand.hbm [shape: f32[32,256], index: 2, kind: input, shape index: {}]
  %s3 = inlined_call_operand.hbm [shape: f32[32,256], index: 3, kind: input, shape index: {}]
  %s4 = inlined_call_operand.hbm [shape: f32[3,32,256], index: 4, kind: output, shape index: {}]
  %s5 = sld [smem:[#allocation0]]
  $region42: #{tpu_custom_call.1} parent=0
    _
  %s7 = ssub.s32 1, %s5
  %s8 = scalar_select 0, %s7, %s5
  $region1: #{tpu_custom_call.1} parent=0
    #allocation2 [shape = 'u8[512]{0}', space=smem, size = 0x200, scoped, tag = 'input window, operand 0, single buffered']
    #allocation3 [shape = 's32[1]{0}', space=sflag, size = 0x4, scoped, tag = 'scoped memory for tpu_custom_call.1']
    #allocation4 [shape = 's32[1]{0}', space=sflag, size = 0x4, scoped, tag = 'scoped memory for tpu_custom_call.1']
    #allocation5 [shape = 's32[1]{0}', space=sflag, size = 0x4, scoped, tag = 'scoped memory for tpu_custom_call.1']
    #allocation6 [shape = 'u8[32768]{0}', space=vmem, size = 0x8000, scoped, tag = 'input window, operand 1, single buffered']
    #allocation7 [shape = 'u8[8192]{0}', space=vmem, size = 0x2000, scoped, tag = 'input window, operand 2, single buffered']
    #allocation8 [shape = 's32[1]{0}', space=sflag, size = 0x4, scoped, tag = 'scoped memory for tpu_custom_call.1']
    #allocation9 [shape = 'u8[8192]{0}', space=vmem, size = 0x2000, scoped, tag = 'input window, operand 3, single buffered']
    #allocation10 [shape = 'u8[98304]{0}', space=vmem, size = 0x18000, scoped, tag = 'output window, operand 0, single buffered']
    %9 = vsyncpa [#allocation5], 0
    %10 = vsyncpa [#allocation3], 0
    %11 = vsyncpa [#allocation8], 0
    %12 = vsyncpa [#allocation4], 0
    // Predicated region
    $region2: #{tpu_custom_call.1} parent=1 // pred_check
      _
    $region3: #{tpu_custom_call.1} parent=1 // pred_check_branch
      %14 = sbr.rel (0) target = $region5
    $region4: #{tpu_custom_call.1} parent=1 // pred_region
      %s16 = ssub.s32 16, 16
      %17 = vsyncadd [#allocation5], %s16
      %20 = dma.hbm_to_smem %s0, 16, [#allocation2], [#allocation5]
    $region5: #{tpu_custom_call.1} parent=1 // pred_fallthru
      _
    // Predicated region
    $region6: #{tpu_custom_call.1} parent=1 // pred_check
      _
    $region7: #{tpu_custom_call.1} parent=1 // pred_check_branch
      %22 = sbr.rel (0) target = $region9
    $region8: #{tpu_custom_call.1} parent=1 // pred_region
      %s24 = ssub.s32 1024, 1024
      %25 = vsyncadd [#allocation3], %s24
      %s26 = sshll.u32 [#allocation6], 4
      %s27 = int_to_ptr.vmem [resolvable:$true] %s26
      %32 = dma.hbm_to_vmem [thread:$0]  %s1, 1024, %s27, [#allocation3], 256, 256, 16
    $region9: #{tpu_custom_call.1} parent=1 // pred_fallthru
      _
    // Predicated region
    $region10: #{tpu_custom_call.1} parent=1 // pred_check
      _
    $region11: #{tpu_custom_call.1} parent=1 // pred_check_branch
      %34 = sbr.rel (0) target = $region13
    $region12: #{tpu_custom_call.1} parent=1 // pred_region
      %s35 = smul.u32 0, 4
      %s36 = ssub.s32 %s35, 1
      %p37 = scmp.gt.s32.totalorder %s36, 0
      %s38 = scalar_select %p37, %s36, 0
      %s40 = ssub.s32 256, 256
      %41 = vsyncadd [#allocation8], %s40
      %s42 = smul.addr %s38, 2
      %s43 = smul.addr %s42, 128
      %s44 = scalar_lea.hbm %s2, %s43
      %s46 = sshll.u32 [#allocation7], 4
      %s47 = int_to_ptr.vmem [resolvable:$true] %s46
      %49 = dma.hbm_to_vmem [thread:$0]  %s44, 256, %s47, [#allocation8]
    $region13: #{tpu_custom_call.1} parent=1 // pred_fallthru
      _
    // Predicated region
    $region14: #{tpu_custom_call.1} parent=1 // pred_check
      _
    $region15: #{tpu_custom_call.1} parent=1 // pred_check_branch
      %51 = sbr.rel (0) target = $region17
    $region16: #{tpu_custom_call.1} parent=1 // pred_region
      %s52 = sadd.s32 0, 1
      %s53 = smul.u32 %s52, 4
      %p54 = scmp.lt.s32.totalorder %s53, 3
      %s55 = scalar_select %p54, %s53, 3
      %s57 = ssub.s32 256, 256
      %58 = vsyncadd [#allocation8], %s57
      %s59 = smul.addr %s55, 2
      %s60 = smul.addr %s59, 128
      %s61 = scalar_lea.hbm %s3, %s60
      %s63 = sshll.u32 [#allocation9], 4
      %s64 = int_to_ptr.vmem [resolvable:$true] %s63
      %66 = dma.hbm_to_vmem [thread:$0]  %s61, 256, %s64, [#allocation8]
    $region17: #{tpu_custom_call.1} parent=1 // pred_fallthru
      _
    // Predicated region
    $region18: #{tpu_custom_call.1} parent=1 // pred_check
      _
    $region19: #{tpu_custom_call.1} parent=1 // pred_check_branch
      %68 = sbr.rel (0) target = $region21
    $region20: #{tpu_custom_call.1} parent=1 // pred_region
      %69 = dma.done [#allocation5], 16
    $region21: #{tpu_custom_call.1} parent=1 // pred_fallthru
      _
    // Predicated region
    $region22: #{tpu_custom_call.1} parent=1 // pred_check
      _
    $region23: #{tpu_custom_call.1} parent=1 // pred_check_branch
      %71 = sbr.rel (0) target = $region25
    $region24: #{tpu_custom_call.1} parent=1 // pred_region
      %72 = dma.done [#allocation3], 1024
    $region25: #{tpu_custom_call.1} parent=1 // pred_fallthru
      _
    // Predicated region
    $region26: #{tpu_custom_call.1} parent=1 // pred_check
      _
    $region27: #{tpu_custom_call.1} parent=1 // pred_check_branch
      %74 = sbr.rel (0) target = $region29
    $region28: #{tpu_custom_call.1} parent=1 // pred_region
      %75 = dma.done [#allocation8], 256
    $region29: #{tpu_custom_call.1} parent=1 // pred_fallthru
      _
    // Predicated region
    $region30: #{tpu_custom_call.1} parent=1 // pred_check
      _
    $region31: #{tpu_custom_call.1} parent=1 // pred_check_branch
      %77 = sbr.rel (0) target = $region33
    $region32: #{tpu_custom_call.1} parent=1 // pred_region
      %78 = dma.done [#allocation8], 256
    $region33: #{tpu_custom_call.1} parent=1 // pred_fallthru
      _
    %79 = sfence
    %s80 = smul.u32 0, 4
    %s81 = ssub.s32 %s80, 1
    %p82 = scmp.gt.s32.totalorder %s81, 0
    %s83 = scalar_select %p82, %s81, 0
    %s84 = sadd.s32 0, 1
    %s85 = smul.u32 %s84, 4
    %p86 = scmp.lt.s32.totalorder %s85, 3
    %s87 = scalar_select %p86, %s85, 3
    %s88 = sld [smem:[#allocation2]]
    %s89 = sld [smem:[#allocation2 + $0x1]]
    %s90 = sld [smem:[#allocation2 + $0x2]]
    %s91 = sld [smem:[#allocation2 + $0x3]]
    %s92 = sld [smem:[#allocation2 + $0x4]]
    %s93 = smul.u32 0, 32
    %s94 = scvt.s32.f32 %s93
    %v95 = vlaneseq
    %v96 = vshrl.u32 %v95, 7
    %v97 = vadd.s32 %v96, 8
    %v98 = vadd.s32 %v96, 16
    %v99 = vadd.s32 %v96, 24
    %v100 = vlaneseq
    %v101 = vand.u32 %v100, 127
    %v102 = vadd.s32 %v101, 128
    %v103 = vstv %s93
    %v104 = vadd.s32 %v96, %v103
    %v105 = vadd.s32 %v97, %v103
    %v106 = vadd.s32 %v98, %v103
    %v107 = vadd.s32 %v99, %v103
    %v108 = vcvt.s32.f32 %v104
    %v109 = vcvt.s32.f32 %v105
    %v110 = vcvt.s32.f32 %v106
    %v111 = vcvt.s32.f32 %v107
    %v112 = vstv %s91
    %v113 = vsub.f32 %v108, %v112
    %v114 = vsub.f32 %v109, %v112
    %v115 = vsub.f32 %v110, %v112
    %v116 = vsub.f32 %v111, %v112
    %v117 = vcvt.s32.f32 %v101
    %v118 = vcvt.s32.f32 %v102
    %v119 = vstv %s90
    %v120 = vsub.f32 %v117, %v119
    %v121 = vsub.f32 %v118, %v119
    %vm122 = vcmp.eq.s32.totalorder %v96, 0
    %vm123 = vcmp.eq.s32.totalorder %v97, 0
    %vm124 = vcmp.eq.s32.totalorder %v98, 0
    %vm125 = vcmp.eq.s32.totalorder %v99, 0
    %vm126 = vcmp.eq.s32.totalorder %v96, 31
    %vm127 = vcmp.eq.s32.totalorder %v97, 31
    %vm128 = vcmp.eq.s32.totalorder %v98, 31
    %vm129 = vcmp.eq.s32.totalorder %v99, 31
    %v130 = vld [vmem:[#allocation6] sm:$0xff]
    %v131 = vld [vmem:[#allocation6 + $0x8] sm:$0xff]
    %v132 = vld [vmem:[#allocation6 + $0x10] sm:$0xff]
    %v133 = vld [vmem:[#allocation6 + $0x18] sm:$0xff]
    %v134 = vld [vmem:[#allocation6 + $0x20] sm:$0xff]
    %v135 = vld [vmem:[#allocation6 + $0x28] sm:$0xff]
    %v136 = vld [vmem:[#allocation6 + $0x30] sm:$0xff]
    %v137 = vld [vmem:[#allocation6 + $0x38] sm:$0xff]
    %v138 = vmul.f32 %v130, %v113
    %v139 = vmul.f32 %v131, %v113
    %v140 = vmul.f32 %v132, %v114
    %v141 = vmul.f32 %v133, %v114
    %v142 = vmul.f32 %v134, %v115
    %v143 = vmul.f32 %v135, %v115
    %v144 = vmul.f32 %v136, %v116
    %v145 = vmul.f32 %v137, %v116
    %vm146 = vcmp.le.f32.partialorder %v138, 0.0
    %vm147 = vcmp.le.f32.partialorder %v139, 0.0
    %vm148 = vcmp.le.f32.partialorder %v140, 0.0
    %vm149 = vcmp.le.f32.partialorder %v141, 0.0
    %vm150 = vcmp.le.f32.partialorder %v142, 0.0
    %vm151 = vcmp.le.f32.partialorder %v143, 0.0
    %vm152 = vcmp.le.f32.partialorder %v144, 0.0
    %vm153 = vcmp.le.f32.partialorder %v145, 0.0
    %v154 = vsel %vm146, 0.0, %v130
    %v155 = vsel %vm147, 0.0, %v131
    %v156 = vsel %vm148, 0.0, %v132
    %v157 = vsel %vm149, 0.0, %v133
    %v158 = vsel %vm150, 0.0, %v134
    %v159 = vsel %vm151, 0.0, %v135
    %v160 = vsel %vm152, 0.0, %v136
    %v161 = vsel %vm153, 0.0, %v137
    %vm162 = vcmp.ne.f32.partialorder %v154, %v154
    %vm163 = vcmp.ne.f32.partialorder %v155, %v155
    %vm164 = vcmp.ne.f32.partialorder %v156, %v156
    %vm165 = vcmp.ne.f32.partialorder %v157, %v157
    %vm166 = vcmp.ne.f32.partialorder %v158, %v158
    %vm167 = vcmp.ne.f32.partialorder %v159, %v159
    %vm168 = vcmp.ne.f32.partialorder %v160, %v160
    %vm169 = vcmp.ne.f32.partialorder %v161, %v161
    %v170 = vsel %vm162, 0.0, %v154
    %v171 = vsel %vm163, 0.0, %v155
    %v172 = vsel %vm164, 0.0, %v156
    %v173 = vsel %vm165, 0.0, %v157
    %v174 = vsel %vm166, 0.0, %v158
    %v175 = vsel %vm167, 0.0, %v159
    %v176 = vsel %vm168, 0.0, %v160
    %v177 = vsel %vm169, 0.0, %v161
    %vm178 = vcmp.ne.f32.partialorder %v130, %v130
    %vm179 = vcmp.ne.f32.partialorder %v131, %v131
    %vm180 = vcmp.ne.f32.partialorder %v132, %v132
    %vm181 = vcmp.ne.f32.partialorder %v133, %v133
    %vm182 = vcmp.ne.f32.partialorder %v134, %v134
    %vm183 = vcmp.ne.f32.partialorder %v135, %v135
    %vm184 = vcmp.ne.f32.partialorder %v136, %v136
    %vm185 = vcmp.ne.f32.partialorder %v137, %v137
    %v186 = vsel %vm178, nan, %v170
    %v187 = vsel %vm179, nan, %v171
    %v188 = vsel %vm180, nan, %v172
    %v189 = vsel %vm181, nan, %v173
    %v190 = vsel %vm182, nan, %v174
    %v191 = vsel %vm183, nan, %v175
    %v192 = vsel %vm184, nan, %v176
    %v193 = vsel %vm185, nan, %v177
    %v194 = vrcp.pop %v170
    %v195 = vmul.f32 1.0, %v194
    %v196 = vrcp.pop %v171
    %v197 = vmul.f32 1.0, %v196
    %v198 = vrcp.pop %v172
    %v199 = vmul.f32 1.0, %v198
    %v200 = vrcp.pop %v173
    %v201 = vmul.f32 1.0, %v200
    %v202 = vrcp.pop %v174
    %v203 = vmul.f32 1.0, %v202
    %v204 = vrcp.pop %v175
    %v205 = vmul.f32 1.0, %v204
    %v206 = vrcp.pop %v176
    %v207 = vmul.f32 1.0, %v206
    %v208 = vrcp.pop %v177
    %v209 = vmul.f32 1.0, %v208
    %vm210 = vcmp.lt.s32.totalorder %v101, 160
    %vm211 = vcmp.lt.s32.totalorder %v102, 160
    %v212 = vsel %vm210, %v195, 0.0
    %v213 = vsel %vm211, %v197, 0.0
    %v214 = vsel %vm210, %v199, 0.0
    %v215 = vsel %vm211, %v201, 0.0
    %v216 = vsel %vm210, %v203, 0.0
    %v217 = vsel %vm211, %v205, 0.0
    %v218 = vsel %vm210, %v207, 0.0
    %v219 = vsel %vm211, %v209, 0.0
    %p220 = scmp.ge.s32.totalorder %s93, 1
    %s221 = sadd.s32 %s93, 32
    %p222 = scmp.le.s32.totalorder %s221, 31
    %s223 = scalar_lea.vmem [#allocation7], 7
    %v224 = vld [vmem:[%s223] ss:$8 sm:$0x3]
    %s225 = scalar_select %p220, 1, 0
    %v226 = vstv %s225
    %vm227 = vcmp.eq.s32.totalorder %v226, 1
    %v228 = vsel %vm227, %v224, 0.0
    %v229 = vld [vmem:[#allocation9] ss:$8 sm:$0x3]
    %s230 = scalar_select %p222, 1, 0
    %v231 = vstv %s230
    %vm232 = vcmp.eq.s32.totalorder %v231, 1
    %v233 = vsel %vm232, %v229, 0.0
    %s234 = ssub.f32 %s94, 1.0
    %s235 = ssub.f32 %s234, %s91
    %v236 = vstv %s235
    %v237 = vmul.f32 %v228, %v236
    %vm238 = vcmp.le.f32.partialorder %v237, 0.0
    %v239 = vsel %vm238, 0.0, %v228
    %vm240 = vcmp.ne.f32.partialorder %v239, %v239
    %v241 = vsel %vm240, 0.0, %v239
    %s242 = sadd.f32 %s94, 32.0
    %s243 = ssub.f32 %s242, %s91
    %v244 = vstv %s243
    %v245 = vmul.f32 %v233, %v244
    %vm246 = vcmp.le.f32.partialorder %v245, 0.0
    %v247 = vsel %vm246, 0.0, %v233
    %vm248 = vcmp.ne.f32.partialorder %v247, %v247
    %v249 = vsel %vm248, 0.0, %v247
    %vm250 = vcmp.ne.f32.partialorder %v228, %v228
    %v251 = vsel %vm250, nan, %v241
    %vm252 = vcmp.ne.f32.partialorder %v233, %v233
    %v253 = vsel %vm252, nan, %v249
    %v254 = vrcp.pop %v241
    %v255 = vmul.f32 1.0, %v254
    %v256 = vsel %vm227, %v255, 0.0
    %v257 = vrcp.pop %v249
    %v258 = vmul.f32 1.0, %v257
    %v259 = vsel %vm232, %v258, 0.0
    %260 = vrot.lane.b32.xlu0 %v212, 127
    %v261 = vpop.permute.xlu0 %260
    %262 = vrot.lane.b32.xlu0 %v214, 127
    %v263 = vpop.permute.xlu0 %262
    %264 = vrot.lane.b32.xlu0 %v216, 127
    %v265 = vpop.permute.xlu0 %264
    %266 = vrot.lane.b32.xlu0 %v218, 127
    %v267 = vpop.permute.xlu0 %266
    %268 = vrot.lane.b32.xlu0 %v213, 127
    %v269 = vpop.permute.xlu0 %268
    %270 = vrot.lane.b32.xlu0 %v215, 127
    %v271 = vpop.permute.xlu0 %270
    %272 = vrot.lane.b32.xlu0 %v217, 127
    %v273 = vpop.permute.xlu0 %272
    %274 = vrot.lane.b32.xlu0 %v219, 127
    %v275 = vpop.permute.xlu0 %274
    %vm276 = vcmp.lt.s32.totalorder %v101, 127
    %v277 = vsel %vm276, %v261, %v269
    %v278 = vsel %vm276, %v263, %v271
    %v279 = vsel %vm276, %v265, %v273
    %v280 = vsel %vm276, %v267, %v275
    %v281 = vsel %vm276, %v269, %v261
    %v282 = vsel %vm276, %v271, %v263
    %v283 = vsel %vm276, %v273, %v265
    %v284 = vsel %vm276, %v275, %v267
    %285 = vrot.lane.b32.xlu0 %v212, 1
    %v286 = vpop.permute.xlu0 %285
    %287 = vrot.lane.b32.xlu0 %v214, 1
    %v288 = vpop.permute.xlu0 %287
    %289 = vrot.lane.b32.xlu0 %v216, 1
    %v290 = vpop.permute.xlu0 %289
    %291 = vrot.lane.b32.xlu0 %v218, 1
    %v292 = vpop.permute.xlu0 %291
    %293 = vrot.lane.b32.xlu0 %v213, 1
    %v294 = vpop.permute.xlu0 %293
    %295 = vrot.lane.b32.xlu0 %v215, 1
    %v296 = vpop.permute.xlu0 %295
    %297 = vrot.lane.b32.xlu0 %v217, 1
    %v298 = vpop.permute.xlu0 %297
    %299 = vrot.lane.b32.xlu0 %v219, 1
    %v300 = vpop.permute.xlu0 %299
    %vm301 = vcmp.lt.s32.totalorder %v101, 1
    %v302 = vsel %vm301, %v286, %v294
    %v303 = vsel %vm301, %v288, %v296
    %v304 = vsel %vm301, %v290, %v298
    %v305 = vsel %vm301, %v292, %v300
    %v306 = vsel %vm301, %v294, %v286
    %v307 = vsel %vm301, %v296, %v288
    %v308 = vsel %vm301, %v298, %v290
    %v309 = vsel %vm301, %v300, %v292
    %v310 = vsub.f32 %v277, %v306
    %v311 = vsub.f32 %v281, %v302
    %v312 = vsub.f32 %v278, %v307
    %v313 = vsub.f32 %v282, %v303
    %v314 = vsub.f32 %v279, %v308
    %v315 = vsub.f32 %v283, %v304
    %v316 = vsub.f32 %v280, %v309
    %v317 = vsub.f32 %v284, %v305
    %v318 = vrot.slane %v212, 1
    %v319 = vrot.slane %v213, 1
    %v320 = vrot.slane %v214, 1
    %v321 = vrot.slane %v215, 1
    %v322 = vrot.slane %v216, 1
    %v323 = vrot.slane %v217, 1
    %v324 = vrot.slane %v218, 1
    %v325 = vrot.slane %v219, 1
    %vm326 = vcmp.lt.s32.totalorder %v96, 7
    %v327 = vsel %vm326, %v322, %v324
    %v328 = vsel %vm326, %v323, %v325
    %v329 = vsel %vm326, %v320, %v322
    %v330 = vsel %vm326, %v321, %v323
    %v331 = vsel %vm326, %v318, %v320
    %v332 = vsel %vm326, %v319, %v321
    %v333 = vsel %vm326, %v324, %v318
    %v334 = vsel %vm326, %v325, %v319
    %v336 = vlaneseq
    %v337 = vshrl.u32 %v336, 7
    %v338 = vsub.s32 0, %v337
    %v339 = vrot.slane %v259, %v338
    %v340 = vlaneseq
    %v341 = vshrl.u32 %v340, 7
    %v342 = vsub.s32 1, %v341
    %v343 = vrot.slane %v259, %v342
    %v346 = vsel %vm126, %v339, %v331
    %v347 = vsel %vm126, %v343, %v332
    %v348 = vsel %vm127, %v339, %v329
    %v349 = vsel %vm127, %v343, %v330
    %v350 = vsel %vm128, %v339, %v327
    %v351 = vsel %vm128, %v343, %v328
    %v352 = vsel %vm129, %v339, %v333
    %v353 = vsel %vm129, %v343, %v334
    %v354 = vrot.slane %v212, 7
    %v355 = vrot.slane %v213, 7
    %v356 = vrot.slane %v214, 7
    %v357 = vrot.slane %v215, 7
    %v358 = vrot.slane %v216, 7
    %v359 = vrot.slane %v217, 7
    %v360 = vrot.slane %v218, 7
    %v361 = vrot.slane %v219, 7
    %vm362 = vcmp.lt.s32.totalorder %v96, 1
    %v363 = vsel %vm362, %v358, %v360
    %v364 = vsel %vm362, %v359, %v361
    %v365 = vsel %vm362, %v356, %v358
    %v366 = vsel %vm362, %v357, %v359
    %v367 = vsel %vm362, %v354, %v356
    %v368 = vsel %vm362, %v355, %v357
    %v369 = vsel %vm362, %v360, %v354
    %v370 = vsel %vm362, %v361, %v355
    %v372 = vlaneseq
    %v373 = vshrl.u32 %v372, 7
    %v374 = vsub.s32 0, %v373
    %v375 = vrot.slane %v256, %v374
    %v376 = vlaneseq
    %v377 = vshrl.u32 %v376, 7
    %v378 = vsub.s32 1, %v377
    %v379 = vrot.slane %v256, %v378
    %v382 = vsel %vm122, %v375, %v369
    %v383 = vsel %vm122, %v379, %v370
    %v384 = vsel %vm123, %v375, %v367
    %v385 = vsel %vm123, %v379, %v368
    %v386 = vsel %vm124, %v375, %v365
    %v387 = vsel %vm124, %v379, %v366
    %v388 = vsel %vm125, %v375, %v363
    %v389 = vsel %vm125, %v379, %v364
    %v390 = vsub.f32 %v346, %v382
    %v391 = vsub.f32 %v347, %v383
    %v392 = vsub.f32 %v348, %v384
    %v393 = vsub.f32 %v349, %v385
    %v394 = vsub.f32 %v350, %v386
    %v395 = vsub.f32 %v351, %v387
    %v396 = vsub.f32 %v352, %v388
    %v397 = vsub.f32 %v353, %v389
    %v398 = vstv %s88
    %v399 = vmul.f32 %v310, %v398
    %v400 = vmul.f32 %v311, %v398
    %v401 = vmul.f32 %v312, %v398
    %v402 = vmul.f32 %v313, %v398
    %v403 = vmul.f32 %v314, %v398
    %v404 = vmul.f32 %v315, %v398
    %v405 = vmul.f32 %v316, %v398
    %v406 = vmul.f32 %v317, %v398
    %v407 = vstv %s89
    %v408 = vmul.f32 %v390, %v407
    %v409 = vmul.f32 %v391, %v407
    %v410 = vmul.f32 %v392, %v407
    %v411 = vmul.f32 %v393, %v407
    %v412 = vmul.f32 %v394, %v407
    %v413 = vmul.f32 %v395, %v407
    %v414 = vmul.f32 %v396, %v407
    %v415 = vmul.f32 %v397, %v407
    %v416 = vmul.f32 %v399, %v399
    %v417 = vmul.f32 %v400, %v400
    %v418 = vmul.f32 %v401, %v401
    %v419 = vmul.f32 %v402, %v402
    %v420 = vmul.f32 %v403, %v403
    %v421 = vmul.f32 %v404, %v404
    %v422 = vmul.f32 %v405, %v405
    %v423 = vmul.f32 %v406, %v406
    %v424 = vmul.f32 %v408, %v408
    %v425 = vmul.f32 %v409, %v409
    %v426 = vmul.f32 %v410, %v410
    %v427 = vmul.f32 %v411, %v411
    %v428 = vmul.f32 %v412, %v412
    %v429 = vmul.f32 %v413, %v413
    %v430 = vmul.f32 %v414, %v414
    %v431 = vmul.f32 %v415, %v415
    %v432 = vadd.f32 %v416, %v424
    %v433 = vadd.f32 %v417, %v425
    %v434 = vadd.f32 %v418, %v426
    %v435 = vadd.f32 %v419, %v427
    %v436 = vadd.f32 %v420, %v428
    %v437 = vadd.f32 %v421, %v429
    %v438 = vadd.f32 %v422, %v430
    %v439 = vadd.f32 %v423, %v431
    %v440 = vrsqrt.pop %v432
    %v441 = vrsqrt.pop %v433
    %v442 = vrsqrt.pop %v434
    %v443 = vrsqrt.pop %v435
    %v444 = vrsqrt.pop %v436
    %v445 = vrsqrt.pop %v437
    %v446 = vrsqrt.pop %v438
    %v447 = vrsqrt.pop %v439
    %vm448 = vcmp.ge.f32.partialorder %v399, 0.0
    %vm449 = vcmp.ge.f32.partialorder %v400, 0.0
    %vm450 = vcmp.ge.f32.partialorder %v401, 0.0
    %vm451 = vcmp.ge.f32.partialorder %v402, 0.0
    %vm452 = vcmp.ge.f32.partialorder %v403, 0.0
    %vm453 = vcmp.ge.f32.partialorder %v404, 0.0
    %vm454 = vcmp.ge.f32.partialorder %v405, 0.0
    %vm455 = vcmp.ge.f32.partialorder %v406, 0.0
    %v456 = vsel %vm448, 1.0, -1.0
    %v457 = vsel %vm449, 1.0, -1.0
    %v458 = vsel %vm450, 1.0, -1.0
    %v459 = vsel %vm451, 1.0, -1.0
    %v460 = vsel %vm452, 1.0, -1.0
    %v461 = vsel %vm453, 1.0, -1.0
    %v462 = vsel %vm454, 1.0, -1.0
    %v463 = vsel %vm455, 1.0, -1.0
    %vm464 = vcmp.ge.f32.partialorder %v408, 0.0
    %vm465 = vcmp.ge.f32.partialorder %v409, 0.0
    %vm466 = vcmp.ge.f32.partialorder %v410, 0.0
    %vm467 = vcmp.ge.f32.partialorder %v411, 0.0
    %vm468 = vcmp.ge.f32.partialorder %v412, 0.0
    %vm469 = vcmp.ge.f32.partialorder %v413, 0.0
    %vm470 = vcmp.ge.f32.partialorder %v414, 0.0
    %vm471 = vcmp.ge.f32.partialorder %v415, 0.0
    %v472 = vsel %vm464, 1.0, -1.0
    %v473 = vsel %vm465, 1.0, -1.0
    %v474 = vsel %vm466, 1.0, -1.0
    %v475 = vsel %vm467, 1.0, -1.0
    %v476 = vsel %vm468, 1.0, -1.0
    %v477 = vsel %vm469, 1.0, -1.0
    %v478 = vsel %vm470, 1.0, -1.0
    %v479 = vsel %vm471, 1.0, -1.0
    %v480 = vand.u32 2147483647, %v399
    %v481 = vand.u32 2147483647, %v400
    %v482 = vand.u32 2147483647, %v401
    %v483 = vand.u32 2147483647, %v402
    %v484 = vand.u32 2147483647, %v403
    %v485 = vand.u32 2147483647, %v404
    %v486 = vand.u32 2147483647, %v405
    %v487 = vand.u32 2147483647, %v406
    %v488 = vand.u32 2147483647, %v408
    %v489 = vand.u32 2147483647, %v409
    %v490 = vand.u32 2147483647, %v410
    %v491 = vand.u32 2147483647, %v411
    %v492 = vand.u32 2147483647, %v412
    %v493 = vand.u32 2147483647, %v413
    %v494 = vand.u32 2147483647, %v414
    %v495 = vand.u32 2147483647, %v415
    %v496 = vmul.f32 %v480, %v440
    %v497 = vmul.f32 %v481, %v441
    %v498 = vmul.f32 %v482, %v442
    %v499 = vmul.f32 %v483, %v443
    %v500 = vmul.f32 %v484, %v444
    %v501 = vmul.f32 %v485, %v445
    %v502 = vmul.f32 %v486, %v446
    %v503 = vmul.f32 %v487, %v447
    %v504 = vmul.f32 %v408, %v456
    %v505 = vmul.f32 %v409, %v457
    %v506 = vmul.f32 %v410, %v458
    %v507 = vmul.f32 %v411, %v459
    %v508 = vmul.f32 %v412, %v460
    %v509 = vmul.f32 %v413, %v461
    %v510 = vmul.f32 %v414, %v462
    %v511 = vmul.f32 %v415, %v463
    %v512 = vmul.f32 %v504, %v440
    %v513 = vmul.f32 %v505, %v441
    %v514 = vmul.f32 %v506, %v442
    %v515 = vmul.f32 %v507, %v443
    %v516 = vmul.f32 %v508, %v444
    %v517 = vmul.f32 %v509, %v445
    %v518 = vmul.f32 %v510, %v446
    %v519 = vmul.f32 %v511, %v447
    %vm520 = vcmp.eq.f32.partialorder %v480, inf
    %vm521 = vcmp.eq.f32.partialorder %v481, inf
    %vm522 = vcmp.eq.f32.partialorder %v482, inf
    %vm523 = vcmp.eq.f32.partialorder %v483, inf
    %vm524 = vcmp.eq.f32.partialorder %v484, inf
    %vm525 = vcmp.eq.f32.partialorder %v485, inf
    %vm526 = vcmp.eq.f32.partialorder %v486, inf
    %vm527 = vcmp.eq.f32.partialorder %v487, inf
    %vm528 = vcmp.eq.f32.partialorder %v488, inf
    %vm529 = vcmp.eq.f32.partialorder %v489, inf
    %vm530 = vcmp.eq.f32.partialorder %v490, inf
    %vm531 = vcmp.eq.f32.partialorder %v491, inf
    %vm532 = vcmp.eq.f32.partialorder %v492, inf
    %vm533 = vcmp.eq.f32.partialorder %v493, inf
    %vm534 = vcmp.eq.f32.partialorder %v494, inf
    %vm535 = vcmp.eq.f32.partialorder %v495, inf
    %vm536 = vcmp.lt.f32.partialorder %v480, inf
    %vm537 = vcmp.lt.f32.partialorder %v481, inf
    %vm538 = vcmp.lt.f32.partialorder %v482, inf
    %vm539 = vcmp.lt.f32.partialorder %v483, inf
    %vm540 = vcmp.lt.f32.partialorder %v484, inf
    %vm541 = vcmp.lt.f32.partialorder %v485, inf
    %vm542 = vcmp.lt.f32.partialorder %v486, inf
    %vm543 = vcmp.lt.f32.partialorder %v487, inf
    %vm544 = vcmp.lt.f32.partialorder %v488, inf
    %vm545 = vcmp.lt.f32.partialorder %v489, inf
    %vm546 = vcmp.lt.f32.partialorder %v490, inf
    %vm547 = vcmp.lt.f32.partialorder %v491, inf
    %vm548 = vcmp.lt.f32.partialorder %v492, inf
    %vm549 = vcmp.lt.f32.partialorder %v493, inf
    %vm550 = vcmp.lt.f32.partialorder %v494, inf
    %vm551 = vcmp.lt.f32.partialorder %v495, inf
    %vm552 = vmand %vm520, %vm544
    %vm553 = vmand %vm521, %vm545
    %vm554 = vmand %vm522, %vm546
    %vm555 = vmand %vm523, %vm547
    %vm556 = vmand %vm524, %vm548
    %vm557 = vmand %vm525, %vm549
    %vm558 = vmand %vm526, %vm550
    %vm559 = vmand %vm527, %vm551
    %vm560 = vmand %vm528, %vm536
    %vm561 = vmand %vm529, %vm537
    %vm562 = vmand %vm530, %vm538
    %vm563 = vmand %vm531, %vm539
    %vm564 = vmand %vm532, %vm540
    %vm565 = vmand %vm533, %vm541
    %vm566 = vmand %vm534, %vm542
    %vm567 = vmand %vm535, %vm543
    %v568 = vsel %vm560, 0.0, %v496
    %v569 = vsel %vm561, 0.0, %v497
    %v570 = vsel %vm562, 0.0, %v498
    %v571 = vsel %vm563, 0.0, %v499
    %v572 = vsel %vm564, 0.0, %v500
    %v573 = vsel %vm565, 0.0, %v501
    %v574 = vsel %vm566, 0.0, %v502
    %v575 = vsel %vm567, 0.0, %v503
    %v576 = vsel %vm552, 1.0, %v568
    %v577 = vsel %vm553, 1.0, %v569
    %v578 = vsel %vm554, 1.0, %v570
    %v579 = vsel %vm555, 1.0, %v571
    %v580 = vsel %vm556, 1.0, %v572
    %v581 = vsel %vm557, 1.0, %v573
    %v582 = vsel %vm558, 1.0, %v574
    %v583 = vsel %vm559, 1.0, %v575
    %v584 = vmul.f32 %v472, %v456
    %v585 = vmul.f32 %v473, %v457
    %v586 = vmul.f32 %v474, %v458
    %v587 = vmul.f32 %v475, %v459
    %v588 = vmul.f32 %v476, %v460
    %v589 = vmul.f32 %v477, %v461
    %v590 = vmul.f32 %v478, %v462
    %v591 = vmul.f32 %v479, %v463
    %v592 = vsel %vm560, %v584, %v512
    %v593 = vsel %vm561, %v585, %v513
    %v594 = vsel %vm562, %v586, %v514
    %v595 = vsel %vm563, %v587, %v515
    %v596 = vsel %vm564, %v588, %v516
    %v597 = vsel %vm565, %v589, %v517
    %v598 = vsel %vm566, %v590, %v518
    %v599 = vsel %vm567, %v591, %v519
    %v600 = vsel %vm552, 0.0, %v592
    %v601 = vsel %vm553, 0.0, %v593
    %v602 = vsel %vm554, 0.0, %v594
    %v603 = vsel %vm555, 0.0, %v595
    %v604 = vsel %vm556, 0.0, %v596
    %v605 = vsel %vm557, 0.0, %v597
    %v606 = vsel %vm558, 0.0, %v598
    %v607 = vsel %vm559, 0.0, %v599
    %v608 = vsub.f32 0.0, %v576
    %v609 = vsub.f32 0.0, %v577
    %v610 = vsub.f32 0.0, %v578
    %v611 = vsub.f32 0.0, %v579
    %v612 = vsub.f32 0.0, %v580
    %v613 = vsub.f32 0.0, %v581
    %v614 = vsub.f32 0.0, %v582
    %v615 = vsub.f32 0.0, %v583
    %v616 = vsub.f32 0.0, %v600
    %v617 = vsub.f32 0.0, %v601
    %v618 = vsub.f32 0.0, %v602
    %v619 = vsub.f32 0.0, %v603
    %v620 = vsub.f32 0.0, %v604
    %v621 = vsub.f32 0.0, %v605
    %v622 = vsub.f32 0.0, %v606
    %v623 = vsub.f32 0.0, %v607
    %v624 = vstv %s92
    %v625 = vmul.f32 %v399, %v624
    %v626 = vmul.f32 %v400, %v624
    %v627 = vmul.f32 %v401, %v624
    %v628 = vmul.f32 %v402, %v624
    %v629 = vmul.f32 %v403, %v624
    %v630 = vmul.f32 %v404, %v624
    %v631 = vmul.f32 %v405, %v624
    %v632 = vmul.f32 %v406, %v624
    %v633 = vmul.f32 %v408, %v624
    %v634 = vmul.f32 %v409, %v624
    %v635 = vmul.f32 %v410, %v624
    %v636 = vmul.f32 %v411, %v624
    %v637 = vmul.f32 %v412, %v624
    %v638 = vmul.f32 %v413, %v624
    %v639 = vmul.f32 %v414, %v624
    %v640 = vmul.f32 %v415, %v624
    %v641 = vrot.slane %v170, 7
    %v642 = vrot.slane %v171, 7
    %v643 = vrot.slane %v172, 7
    %v644 = vrot.slane %v173, 7
    %v645 = vrot.slane %v174, 7
    %v646 = vrot.slane %v175, 7
    %v647 = vrot.slane %v176, 7
    %v648 = vrot.slane %v177, 7
    %v649 = vsel %vm362, %v645, %v647
    %v650 = vsel %vm362, %v646, %v648
    %v651 = vsel %vm362, %v643, %v645
    %v652 = vsel %vm362, %v644, %v646
    %v653 = vsel %vm362, %v641, %v643
    %v654 = vsel %vm362, %v642, %v644
    %v655 = vsel %vm362, %v647, %v641
    %v656 = vsel %vm362, %v648, %v642
    %v658 = vlaneseq
    %v659 = vshrl.u32 %v658, 7
    %v660 = vsub.s32 0, %v659
    %v661 = vrot.slane %v241, %v660
    %v662 = vlaneseq
    %v663 = vshrl.u32 %v662, 7
    %v664 = vsub.s32 1, %v663
    %v665 = vrot.slane %v241, %v664
    %v668 = vsel %vm122, %v661, %v655
    %v669 = vsel %vm122, %v665, %v656
    %v670 = vsel %vm123, %v661, %v653
    %v671 = vsel %vm123, %v665, %v654
    %v672 = vsel %vm124, %v661, %v651
    %v673 = vsel %vm124, %v665, %v652
    %v674 = vsel %vm125, %v661, %v649
    %v675 = vsel %vm125, %v665, %v650
    %v676 = vrot.slane %v170, 1
    %v677 = vrot.slane %v171, 1
    %v678 = vrot.slane %v172, 1
    %v679 = vrot.slane %v173, 1
    %v680 = vrot.slane %v174, 1
    %v681 = vrot.slane %v175, 1
    %v682 = vrot.slane %v176, 1
    %v683 = vrot.slane %v177, 1
    %v684 = vsel %vm326, %v680, %v682
    %v685 = vsel %vm326, %v681, %v683
    %v686 = vsel %vm326, %v678, %v680
    %v687 = vsel %vm326, %v679, %v681
    %v688 = vsel %vm326, %v676, %v678
    %v689 = vsel %vm326, %v677, %v679
    %v690 = vsel %vm326, %v682, %v676
    %v691 = vsel %vm326, %v683, %v677
    %v693 = vlaneseq
    %v694 = vshrl.u32 %v693, 7
    %v695 = vsub.s32 0, %v694
    %v696 = vrot.slane %v249, %v695
    %v697 = vlaneseq
    %v698 = vshrl.u32 %v697, 7
    %v699 = vsub.s32 1, %v698
    %v700 = vrot.slane %v249, %v699
    %v703 = vsel %vm126, %v696, %v688
    %v704 = vsel %vm126, %v700, %v689
    %v705 = vsel %vm127, %v696, %v686
    %v706 = vsel %vm127, %v700, %v687
    %v707 = vsel %vm128, %v696, %v684
    %v708 = vsel %vm128, %v700, %v685
    %v709 = vsel %vm129, %v696, %v690
    %v710 = vsel %vm129, %v700, %v691
    %v711 = vrot.slane %v130, 7
    %v712 = vrot.slane %v131, 7
    %v713 = vrot.slane %v132, 7
    %v714 = vrot.slane %v133, 7
    %v715 = vrot.slane %v134, 7
    %v716 = vrot.slane %v135, 7
    %v717 = vrot.slane %v136, 7
    %v718 = vrot.slane %v137, 7
    %v719 = vsel %vm362, %v715, %v717
    %v720 = vsel %vm362, %v716, %v718
    %v721 = vsel %vm362, %v713, %v715
    %v722 = vsel %vm362, %v714, %v716
    %v723 = vsel %vm362, %v711, %v713
    %v724 = vsel %vm362, %v712, %v714
    %v725 = vsel %vm362, %v717, %v711
    %v726 = vsel %vm362, %v718, %v712
    %v728 = vlaneseq
    %v729 = vshrl.u32 %v728, 7
    %v730 = vsub.s32 0, %v729
    %v731 = vrot.slane %v228, %v730
    %v732 = vlaneseq
    %v733 = vshrl.u32 %v732, 7
    %v734 = vsub.s32 1, %v733
    %v735 = vrot.slane %v228, %v734
    %v738 = vsel %vm122, %v731, %v725
    %v739 = vsel %vm122, %v735, %v726
    %v740 = vsel %vm123, %v731, %v723
    %v741 = vsel %vm123, %v735, %v724
    %v742 = vsel %vm124, %v731, %v721
    %v743 = vsel %vm124, %v735, %v722
    %v744 = vsel %vm125, %v731, %v719
    %v745 = vsel %vm125, %v735, %v720
    %v746 = vrot.slane %v130, 1
    %v747 = vrot.slane %v131, 1
    %v748 = vrot.slane %v132, 1
    %v749 = vrot.slane %v133, 1
    %v750 = vrot.slane %v134, 1
    %v751 = vrot.slane %v135, 1
    %v752 = vrot.slane %v136, 1
    %v753 = vrot.slane %v137, 1
    %v754 = vsel %vm326, %v750, %v752
    %v755 = vsel %vm326, %v751, %v753
    %v756 = vsel %vm326, %v748, %v750
    %v757 = vsel %vm326, %v749, %v751
    %v758 = vsel %vm326, %v746, %v748
    %v759 = vsel %vm326, %v747, %v749
    %v760 = vsel %vm326, %v752, %v746
    %v761 = vsel %vm326, %v753, %v747
    %v763 = vlaneseq
    %v764 = vshrl.u32 %v763, 7
    %v765 = vsub.s32 0, %v764
    %v766 = vrot.slane %v233, %v765
    %v767 = vlaneseq
    %v768 = vshrl.u32 %v767, 7
    %v769 = vsub.s32 1, %v768
    %v770 = vrot.slane %v233, %v769
    %v773 = vsel %vm126, %v766, %v758
    %v774 = vsel %vm126, %v770, %v759
    %v775 = vsel %vm127, %v766, %v756
    %v776 = vsel %vm127, %v770, %v757
    %v777 = vsel %vm128, %v766, %v754
    %v778 = vsel %vm128, %v770, %v755
    %v779 = vsel %vm129, %v766, %v760
    %v780 = vsel %vm129, %v770, %v761
    %v781 = vrot.slane %v186, 7
    %v782 = vrot.slane %v187, 7
    %v783 = vrot.slane %v188, 7
    %v784 = vrot.slane %v189, 7
    %v785 = vrot.slane %v190, 7
    %v786 = vrot.slane %v191, 7
    %v787 = vrot.slane %v192, 7
    %v788 = vrot.slane %v193, 7
    %v789 = vsel %vm362, %v785, %v787
    %v790 = vsel %vm362, %v786, %v788
    %v791 = vsel %vm362, %v783, %v785
    %v792 = vsel %vm362, %v784, %v786
    %v793 = vsel %vm362, %v781, %v783
    %v794 = vsel %vm362, %v782, %v784
    %v795 = vsel %vm362, %v787, %v781
    %v796 = vsel %vm362, %v788, %v782
    %v798 = vlaneseq
    %v799 = vshrl.u32 %v798, 7
    %v800 = vsub.s32 0, %v799
    %v801 = vrot.slane %v251, %v800
    %v802 = vlaneseq
    %v803 = vshrl.u32 %v802, 7
    %v804 = vsub.s32 1, %v803
    %v805 = vrot.slane %v251, %v804
    %v808 = vsel %vm122, %v801, %v795
    %v809 = vsel %vm122, %v805, %v796
    %v810 = vsel %vm123, %v801, %v793
    %v811 = vsel %vm123, %v805, %v794
    %v812 = vsel %vm124, %v801, %v791
    %v813 = vsel %vm124, %v805, %v792
    %v814 = vsel %vm125, %v801, %v789
    %v815 = vsel %vm125, %v805, %v790
    %v816 = vrot.slane %v186, 1
    %v817 = vrot.slane %v187, 1
    %v818 = vrot.slane %v188, 1
    %v819 = vrot.slane %v189, 1
    %v820 = vrot.slane %v190, 1
    %v821 = vrot.slane %v191, 1
    %v822 = vrot.slane %v192, 1
    %v823 = vrot.slane %v193, 1
    %v824 = vsel %vm326, %v820, %v822
    %v825 = vsel %vm326, %v821, %v823
    %v826 = vsel %vm326, %v818, %v820
    %v827 = vsel %vm326, %v819, %v821
    %v828 = vsel %vm326, %v816, %v818
    %v829 = vsel %vm326, %v817, %v819
    %v830 = vsel %vm326, %v822, %v816
    %v831 = vsel %vm326, %v823, %v817
    %v833 = vlaneseq
    %v834 = vshrl.u32 %v833, 7
    %v835 = vsub.s32 0, %v834
    %v836 = vrot.slane %v253, %v835
    %v837 = vlaneseq
    %v838 = vshrl.u32 %v837, 7
    %v839 = vsub.s32 1, %v838
    %v840 = vrot.slane %v253, %v839
    %v843 = vsel %vm126, %v836, %v828
    %v844 = vsel %vm126, %v840, %v829
    %v845 = vsel %vm127, %v836, %v826
    %v846 = vsel %vm127, %v840, %v827
    %v847 = vsel %vm128, %v836, %v824
    %v848 = vsel %vm128, %v840, %v825
    %v849 = vsel %vm129, %v836, %v830
    %v850 = vsel %vm129, %v840, %v831
    %851 = vrot.lane.b32.xlu0 %v668, 1
    %v852 = vpop.permute.xlu0 %851
    %853 = vrot.lane.b32.xlu0 %v670, 1
    %v854 = vpop.permute.xlu0 %853
    %855 = vrot.lane.b32.xlu0 %v672, 1
    %v856 = vpop.permute.xlu0 %855
    %857 = vrot.lane.b32.xlu0 %v674, 1
    %v858 = vpop.permute.xlu0 %857
    %859 = vrot.lane.b32.xlu0 %v669, 1
    %v860 = vpop.permute.xlu0 %859
    %861 = vrot.lane.b32.xlu0 %v671, 1
    %v862 = vpop.permute.xlu0 %861
    %863 = vrot.lane.b32.xlu0 %v673, 1
    %v864 = vpop.permute.xlu0 %863
    %865 = vrot.lane.b32.xlu0 %v675, 1
    %v866 = vpop.permute.xlu0 %865
    %v867 = vsel %vm301, %v852, %v860
    %v868 = vsel %vm301, %v854, %v862
    %v869 = vsel %vm301, %v856, %v864
    %v870 = vsel %vm301, %v858, %v866
    %v871 = vsel %vm301, %v860, %v852
    %v872 = vsel %vm301, %v862, %v854
    %v873 = vsel %vm301, %v864, %v856
    %v874 = vsel %vm301, %v866, %v858
    %875 = vrot.lane.b32.xlu0 %v738, 1
    %v876 = vpop.permute.xlu0 %875
    %877 = vrot.lane.b32.xlu0 %v740, 1
    %v878 = vpop.permute.xlu0 %877
    %879 = vrot.lane.b32.xlu0 %v742, 1
    %v880 = vpop.permute.xlu0 %879
    %881 = vrot.lane.b32.xlu0 %v744, 1
    %v882 = vpop.permute.xlu0 %881
    %883 = vrot.lane.b32.xlu0 %v739, 1
    %v884 = vpop.permute.xlu0 %883
    %885 = vrot.lane.b32.xlu0 %v741, 1
    %v886 = vpop.permute.xlu0 %885
    %887 = vrot.lane.b32.xlu0 %v743, 1
    %v888 = vpop.permute.xlu0 %887
    %889 = vrot.lane.b32.xlu0 %v745, 1
    %v890 = vpop.permute.xlu0 %889
    %v891 = vsel %vm301, %v876, %v884
    %v892 = vsel %vm301, %v878, %v886
    %v893 = vsel %vm301, %v880, %v888
    %v894 = vsel %vm301, %v882, %v890
    %v895 = vsel %vm301, %v884, %v876
    %v896 = vsel %vm301, %v886, %v878
    %v897 = vsel %vm301, %v888, %v880
    %v898 = vsel %vm301, %v890, %v882
    %899 = vrot.lane.b32.xlu0 %v808, 1
    %v900 = vpop.permute.xlu0 %899
    %901 = vrot.lane.b32.xlu0 %v810, 1
    %v902 = vpop.permute.xlu0 %901
    %903 = vrot.lane.b32.xlu0 %v812, 1
    %v904 = vpop.permute.xlu0 %903
    %905 = vrot.lane.b32.xlu0 %v814, 1
    %v906 = vpop.permute.xlu0 %905
    %907 = vrot.lane.b32.xlu0 %v809, 1
    %v908 = vpop.permute.xlu0 %907
    %909 = vrot.lane.b32.xlu0 %v811, 1
    %v910 = vpop.permute.xlu0 %909
    %911 = vrot.lane.b32.xlu0 %v813, 1
    %v912 = vpop.permute.xlu0 %911
    %913 = vrot.lane.b32.xlu0 %v815, 1
    %v914 = vpop.permute.xlu0 %913
    %v915 = vsel %vm301, %v900, %v908
    %v916 = vsel %vm301, %v902, %v910
    %v917 = vsel %vm301, %v904, %v912
    %v918 = vsel %vm301, %v906, %v914
    %v919 = vsel %vm301, %v908, %v900
    %v920 = vsel %vm301, %v910, %v902
    %v921 = vsel %vm301, %v912, %v904
    %v922 = vsel %vm301, %v914, %v906
    %v923 = vsub.f32 %v170, %v871
    %v924 = vsub.f32 %v171, %v867
    %v925 = vsub.f32 %v172, %v872
    %v926 = vsub.f32 %v173, %v868
    %v927 = vsub.f32 %v174, %v873
    %v928 = vsub.f32 %v175, %v869
    %v929 = vsub.f32 %v176, %v874
    %v930 = vsub.f32 %v177, %v870
    %v931 = vsub.f32 %v130, %v895
    %v932 = vsub.f32 %v131, %v891
    %v933 = vsub.f32 %v132, %v896
    %v934 = vsub.f32 %v133, %v892
    %v935 = vsub.f32 %v134, %v897
    %v936 = vsub.f32 %v135, %v893
    %v937 = vsub.f32 %v136, %v898
    %v938 = vsub.f32 %v137, %v894
    %v939 = vmul.f32 %v931, %v120
    %v940 = vmul.f32 %v932, %v121
    %v941 = vmul.f32 %v933, %v120
    %v942 = vmul.f32 %v934, %v121
    %v943 = vmul.f32 %v935, %v120
    %v944 = vmul.f32 %v936, %v121
    %v945 = vmul.f32 %v937, %v120
    %v946 = vmul.f32 %v938, %v121
    %v947 = vadd.f32 %v939, %v895
    %v948 = vadd.f32 %v940, %v891
    %v949 = vadd.f32 %v941, %v896
    %v950 = vadd.f32 %v942, %v892
    %v951 = vadd.f32 %v943, %v897
    %v952 = vadd.f32 %v944, %v893
    %v953 = vadd.f32 %v945, %v898
    %v954 = vadd.f32 %v946, %v894
    %v955 = vsub.f32 %v186, %v919
    %v956 = vsub.f32 %v187, %v915
    %v957 = vsub.f32 %v188, %v920
    %v958 = vsub.f32 %v189, %v916
    %v959 = vsub.f32 %v190, %v921
    %v960 = vsub.f32 %v191, %v917
    %v961 = vsub.f32 %v192, %v922
    %v962 = vsub.f32 %v193, %v918
    %v963 = vmul.f32 %v955, %v113
    %v964 = vmul.f32 %v956, %v113
    %v965 = vmul.f32 %v957, %v114
    %v966 = vmul.f32 %v958, %v114
    %v967 = vmul.f32 %v959, %v115
    %v968 = vmul.f32 %v960, %v115
    %v969 = vmul.f32 %v961, %v116
    %v970 = vmul.f32 %v962, %v116
    %v971 = vadd.f32 %v963, %v919
    %v972 = vadd.f32 %v964, %v915
    %v973 = vadd.f32 %v965, %v920
    %v974 = vadd.f32 %v966, %v916
    %v975 = vadd.f32 %v967, %v921
    %v976 = vadd.f32 %v968, %v917
    %v977 = vadd.f32 %v969, %v922
    %v978 = vadd.f32 %v970, %v918
    %v979 = vmul.f32 %v625, %v947
    %v980 = vmul.f32 %v626, %v948
    %v981 = vmul.f32 %v627, %v949
    %v982 = vmul.f32 %v628, %v950
    %v983 = vmul.f32 %v629, %v951
    %v984 = vmul.f32 %v630, %v952
    %v985 = vmul.f32 %v631, %v953
    %v986 = vmul.f32 %v632, %v954
    %v987 = vmul.f32 %v633, %v971
    %v988 = vmul.f32 %v634, %v972
    %v989 = vmul.f32 %v635, %v973
    %v990 = vmul.f32 %v636, %v974
    %v991 = vmul.f32 %v637, %v975
    %v992 = vmul.f32 %v638, %v976
    %v993 = vmul.f32 %v639, %v977
    %v994 = vmul.f32 %v640, %v978
    %v995 = vadd.f32 %v979, %v987
    %v996 = vadd.f32 %v980, %v988
    %v997 = vadd.f32 %v981, %v989
    %v998 = vadd.f32 %v982, %v990
    %v999 = vadd.f32 %v983, %v991
    %v1000 = vadd.f32 %v984, %v992
    %v1001 = vadd.f32 %v985, %v993
    %v1002 = vadd.f32 %v986, %v994
    %v1003 = vrcp.pop %v923
    %v1004 = vrcp.pop %v924
    %v1005 = vrcp.pop %v925
    %v1006 = vrcp.pop %v926
    %v1007 = vrcp.pop %v927
    %v1008 = vrcp.pop %v928
    %v1009 = vrcp.pop %v929
    %v1010 = vrcp.pop %v930
    %v1011 = vmul.f32 %v995, %v1003
    %v1012 = vmul.f32 %v996, %v1004
    %v1013 = vmul.f32 %v997, %v1005
    %v1014 = vmul.f32 %v998, %v1006
    %v1015 = vmul.f32 %v999, %v1007
    %v1016 = vmul.f32 %v1000, %v1008
    %v1017 = vmul.f32 %v1001, %v1009
    %v1018 = vmul.f32 %v1002, %v1010
    %v1019 = vmul.f32 %v1011, %v1011
    %v1020 = vmul.f32 %v1012, %v1012
    %v1021 = vmul.f32 %v1013, %v1013
    %v1022 = vmul.f32 %v1014, %v1014
    %v1023 = vmul.f32 %v1015, %v1015
    %v1024 = vmul.f32 %v1016, %v1016
    %v1025 = vmul.f32 %v1017, %v1017
    %v1026 = vmul.f32 %v1018, %v1018
    %v1027 = vadd.f32 %v432, %v1019
    %v1028 = vadd.f32 %v433, %v1020
    %v1029 = vadd.f32 %v434, %v1021
    %v1030 = vadd.f32 %v435, %v1022
    %v1031 = vadd.f32 %v436, %v1023
    %v1032 = vadd.f32 %v437, %v1024
    %v1033 = vadd.f32 %v438, %v1025
    %v1034 = vadd.f32 %v439, %v1026
    %v1035 = vrsqrt.pop %v1027
    %v1036 = vrsqrt.pop %v1028
    %v1037 = vrsqrt.pop %v1029
    %v1038 = vrsqrt.pop %v1030
    %v1039 = vrsqrt.pop %v1031
    %v1040 = vrsqrt.pop %v1032
    %v1041 = vrsqrt.pop %v1033
    %v1042 = vrsqrt.pop %v1034
    %v1043 = vmul.f32 %v1011, %v1035
    %v1044 = vmul.f32 %v1012, %v1036
    %v1045 = vmul.f32 %v1013, %v1037
    %v1046 = vmul.f32 %v1014, %v1038
    %v1047 = vmul.f32 %v1015, %v1039
    %v1048 = vmul.f32 %v1016, %v1040
    %v1049 = vmul.f32 %v1017, %v1041
    %v1050 = vmul.f32 %v1018, %v1042
    %vm1051 = vcmp.ne.f32.partialorder %v1043, %v1043
    %vm1052 = vcmp.ne.f32.partialorder %v1044, %v1044
    %vm1053 = vcmp.ne.f32.partialorder %v1045, %v1045
    %vm1054 = vcmp.ne.f32.partialorder %v1046, %v1046
    %vm1055 = vcmp.ne.f32.partialorder %v1047, %v1047
    %vm1056 = vcmp.ne.f32.partialorder %v1048, %v1048
    %vm1057 = vcmp.ne.f32.partialorder %v1049, %v1049
    %vm1058 = vcmp.ne.f32.partialorder %v1050, %v1050
    %v1059 = vsel %vm1051, 0.0, %v1035
    %v1060 = vsel %vm1052, 0.0, %v1036
    %v1061 = vsel %vm1053, 0.0, %v1037
    %v1062 = vsel %vm1054, 0.0, %v1038
    %v1063 = vsel %vm1055, 0.0, %v1039
    %v1064 = vsel %vm1056, 0.0, %v1040
    %v1065 = vsel %vm1057, 0.0, %v1041
    %v1066 = vsel %vm1058, 0.0, %v1042
    %v1067 = vadd.f32 %v1059, 0.0
    %v1068 = vadd.f32 %v1060, 0.0
    %v1069 = vadd.f32 %v1061, 0.0
    %v1070 = vadd.f32 %v1062, 0.0
    %v1071 = vadd.f32 %v1063, 0.0
    %v1072 = vadd.f32 %v1064, 0.0
    %v1073 = vadd.f32 %v1065, 0.0
    %v1074 = vadd.f32 %v1066, 0.0
    %v1075 = vsel %vm1051, 0.0, %v1043
    %v1076 = vsel %vm1052, 0.0, %v1044
    %v1077 = vsel %vm1053, 0.0, %v1045
    %v1078 = vsel %vm1054, 0.0, %v1046
    %v1079 = vsel %vm1055, 0.0, %v1047
    %v1080 = vsel %vm1056, 0.0, %v1048
    %v1081 = vsel %vm1057, 0.0, %v1049
    %v1082 = vsel %vm1058, 0.0, %v1050
    %v1083 = vadd.f32 %v1075, 0.0
    %v1084 = vadd.f32 %v1076, 0.0
    %v1085 = vadd.f32 %v1077, 0.0
    %v1086 = vadd.f32 %v1078, 0.0
    %v1087 = vadd.f32 %v1079, 0.0
    %v1088 = vadd.f32 %v1080, 0.0
    %v1089 = vadd.f32 %v1081, 0.0
    %v1090 = vadd.f32 %v1082, 0.0
    %v1091 = vsub.f32 %v170, %v668
    %v1092 = vsub.f32 %v171, %v669
    %v1093 = vsub.f32 %v172, %v670
    %v1094 = vsub.f32 %v173, %v671
    %v1095 = vsub.f32 %v174, %v672
    %v1096 = vsub.f32 %v175, %v673
    %v1097 = vsub.f32 %v176, %v674
    %v1098 = vsub.f32 %v177, %v675
    %v1099 = vsub.f32 %v130, %v738
    %v1100 = vsub.f32 %v131, %v739
    %v1101 = vsub.f32 %v132, %v740
    %v1102 = vsub.f32 %v133, %v741
    %v1103 = vsub.f32 %v134, %v742
    %v1104 = vsub.f32 %v135, %v743
    %v1105 = vsub.f32 %v136, %v744
    %v1106 = vsub.f32 %v137, %v745
    %v1107 = vmul.f32 %v1099, %v120
    %v1108 = vmul.f32 %v1100, %v121
    %v1109 = vmul.f32 %v1101, %v120
    %v1110 = vmul.f32 %v1102, %v121
    %v1111 = vmul.f32 %v1103, %v120
    %v1112 = vmul.f32 %v1104, %v121
    %v1113 = vmul.f32 %v1105, %v120
    %v1114 = vmul.f32 %v1106, %v121
    %v1115 = vsub.f32 %v186, %v808
    %v1116 = vsub.f32 %v187, %v809
    %v1117 = vsub.f32 %v188, %v810
    %v1118 = vsub.f32 %v189, %v811
    %v1119 = vsub.f32 %v190, %v812
    %v1120 = vsub.f32 %v191, %v813
    %v1121 = vsub.f32 %v192, %v814
    %v1122 = vsub.f32 %v193, %v815
    %v1123 = vmul.f32 %v1115, %v113
    %v1124 = vmul.f32 %v1116, %v113
    %v1125 = vmul.f32 %v1117, %v114
    %v1126 = vmul.f32 %v1118, %v114
    %v1127 = vmul.f32 %v1119, %v115
    %v1128 = vmul.f32 %v1120, %v115
    %v1129 = vmul.f32 %v1121, %v116
    %v1130 = vmul.f32 %v1122, %v116
    %v1131 = vadd.f32 %v1123, %v808
    %v1132 = vadd.f32 %v1124, %v809
    %v1133 = vadd.f32 %v1125, %v810
    %v1134 = vadd.f32 %v1126, %v811
    %v1135 = vadd.f32 %v1127, %v812
    %v1136 = vadd.f32 %v1128, %v813
    %v1137 = vadd.f32 %v1129, %v814
    %v1138 = vadd.f32 %v1130, %v815
    %v1139 = vmul.f32 %v625, %v1107
    %v1140 = vmul.f32 %v626, %v1108
    %v1141 = vmul.f32 %v627, %v1109
    %v1142 = vmul.f32 %v628, %v1110
    %v1143 = vmul.f32 %v629, %v1111
    %v1144 = vmul.f32 %v630, %v1112
    %v1145 = vmul.f32 %v631, %v1113
    %v1146 = vmul.f32 %v632, %v1114
    %v1147 = vmul.f32 %v633, %v1131
    %v1148 = vmul.f32 %v634, %v1132
    %v1149 = vmul.f32 %v635, %v1133
    %v1150 = vmul.f32 %v636, %v1134
    %v1151 = vmul.f32 %v637, %v1135
    %v1152 = vmul.f32 %v638, %v1136
    %v1153 = vmul.f32 %v639, %v1137
    %v1154 = vmul.f32 %v640, %v1138
    %v1155 = vadd.f32 %v1139, %v1147
    %v1156 = vadd.f32 %v1140, %v1148
    %v1157 = vadd.f32 %v1141, %v1149
    %v1158 = vadd.f32 %v1142, %v1150
    %v1159 = vadd.f32 %v1143, %v1151
    %v1160 = vadd.f32 %v1144, %v1152
    %v1161 = vadd.f32 %v1145, %v1153
    %v1162 = vadd.f32 %v1146, %v1154
    %v1163 = vrcp.pop %v1091
    %v1164 = vrcp.pop %v1092
    %v1165 = vrcp.pop %v1093
    %v1166 = vrcp.pop %v1094
    %v1167 = vrcp.pop %v1095
    %v1168 = vrcp.pop %v1096
    %v1169 = vrcp.pop %v1097
    %v1170 = vrcp.pop %v1098
    %v1171 = vmul.f32 %v1155, %v1163
    %v1172 = vmul.f32 %v1156, %v1164
    %v1173 = vmul.f32 %v1157, %v1165
    %v1174 = vmul.f32 %v1158, %v1166
    %v1175 = vmul.f32 %v1159, %v1167
    %v1176 = vmul.f32 %v1160, %v1168
    %v1177 = vmul.f32 %v1161, %v1169
    %v1178 = vmul.f32 %v1162, %v1170
    %v1179 = vmul.f32 %v1171, %v1171
    %v1180 = vmul.f32 %v1172, %v1172
    %v1181 = vmul.f32 %v1173, %v1173
    %v1182 = vmul.f32 %v1174, %v1174
    %v1183 = vmul.f32 %v1175, %v1175
    %v1184 = vmul.f32 %v1176, %v1176
    %v1185 = vmul.f32 %v1177, %v1177
    %v1186 = vmul.f32 %v1178, %v1178
    %v1187 = vadd.f32 %v432, %v1179
    %v1188 = vadd.f32 %v433, %v1180
    %v1189 = vadd.f32 %v434, %v1181
    %v1190 = vadd.f32 %v435, %v1182
    %v1191 = vadd.f32 %v436, %v1183
    %v1192 = vadd.f32 %v437, %v1184
    %v1193 = vadd.f32 %v438, %v1185
    %v1194 = vadd.f32 %v439, %v1186
    %v1195 = vrsqrt.pop %v1187
    %v1196 = vrsqrt.pop %v1188
    %v1197 = vrsqrt.pop %v1189
    %v1198 = vrsqrt.pop %v1190
    %v1199 = vrsqrt.pop %v1191
    %v1200 = vrsqrt.pop %v1192
    %v1201 = vrsqrt.pop %v1193
    %v1202 = vrsqrt.pop %v1194
    %v1203 = vmul.f32 %v1171, %v1195
    %v1204 = vmul.f32 %v1172, %v1196
    %v1205 = vmul.f32 %v1173, %v1197
    %v1206 = vmul.f32 %v1174, %v1198
    %v1207 = vmul.f32 %v1175, %v1199
    %v1208 = vmul.f32 %v1176, %v1200
    %v1209 = vmul.f32 %v1177, %v1201
    %v1210 = vmul.f32 %v1178, %v1202
    %vm1211 = vcmp.ne.f32.partialorder %v1203, %v1203
    %vm1212 = vcmp.ne.f32.partialorder %v1204, %v1204
    %vm1213 = vcmp.ne.f32.partialorder %v1205, %v1205
    %vm1214 = vcmp.ne.f32.partialorder %v1206, %v1206
    %vm1215 = vcmp.ne.f32.partialorder %v1207, %v1207
    %vm1216 = vcmp.ne.f32.partialorder %v1208, %v1208
    %vm1217 = vcmp.ne.f32.partialorder %v1209, %v1209
    %vm1218 = vcmp.ne.f32.partialorder %v1210, %v1210
    %v1219 = vsel %vm1211, 0.0, %v1195
    %v1220 = vsel %vm1212, 0.0, %v1196
    %v1221 = vsel %vm1213, 0.0, %v1197
    %v1222 = vsel %vm1214, 0.0, %v1198
    %v1223 = vsel %vm1215, 0.0, %v1199
    %v1224 = vsel %vm1216, 0.0, %v1200
    %v1225 = vsel %vm1217, 0.0, %v1201
    %v1226 = vsel %vm1218, 0.0, %v1202
    %v1227 = vadd.f32 %v1067, %v1219
    %v1228 = vadd.f32 %v1068, %v1220
    %v1229 = vadd.f32 %v1069, %v1221
    %v1230 = vadd.f32 %v1070, %v1222
    %v1231 = vadd.f32 %v1071, %v1223
    %v1232 = vadd.f32 %v1072, %v1224
    %v1233 = vadd.f32 %v1073, %v1225
    %v1234 = vadd.f32 %v1074, %v1226
    %v1235 = vsel %vm1211, 0.0, %v1203
    %v1236 = vsel %vm1212, 0.0, %v1204
    %v1237 = vsel %vm1213, 0.0, %v1205
    %v1238 = vsel %vm1214, 0.0, %v1206
    %v1239 = vsel %vm1215, 0.0, %v1207
    %v1240 = vsel %vm1216, 0.0, %v1208
    %v1241 = vsel %vm1217, 0.0, %v1209
    %v1242 = vsel %vm1218, 0.0, %v1210
    %v1243 = vadd.f32 %v1083, %v1235
    %v1244 = vadd.f32 %v1084, %v1236
    %v1245 = vadd.f32 %v1085, %v1237
    %v1246 = vadd.f32 %v1086, %v1238
    %v1247 = vadd.f32 %v1087, %v1239
    %v1248 = vadd.f32 %v1088, %v1240
    %v1249 = vadd.f32 %v1089, %v1241
    %v1250 = vadd.f32 %v1090, %v1242
    %1251 = vrot.lane.b32.xlu0 %v668, 127
    %v1252 = vpop.permute.xlu0 %1251
    %1253 = vrot.lane.b32.xlu0 %v670, 127
    %v1254 = vpop.permute.xlu0 %1253
    %1255 = vrot.lane.b32.xlu0 %v672, 127
    %v1256 = vpop.permute.xlu0 %1255
    %1257 = vrot.lane.b32.xlu0 %v674, 127
    %v1258 = vpop.permute.xlu0 %1257
    %1259 = vrot.lane.b32.xlu0 %v669, 127
    %v1260 = vpop.permute.xlu0 %1259
    %1261 = vrot.lane.b32.xlu0 %v671, 127
    %v1262 = vpop.permute.xlu0 %1261
    %1263 = vrot.lane.b32.xlu0 %v673, 127
    %v1264 = vpop.permute.xlu0 %1263
    %1265 = vrot.lane.b32.xlu0 %v675, 127
    %v1266 = vpop.permute.xlu0 %1265
    %v1267 = vsel %vm276, %v1252, %v1260
    %v1268 = vsel %vm276, %v1254, %v1262
    %v1269 = vsel %vm276, %v1256, %v1264
    %v1270 = vsel %vm276, %v1258, %v1266
    %v1271 = vsel %vm276, %v1260, %v1252
    %v1272 = vsel %vm276, %v1262, %v1254
    %v1273 = vsel %vm276, %v1264, %v1256
    %v1274 = vsel %vm276, %v1266, %v1258
    %1275 = vrot.lane.b32.xlu0 %v738, 127
    %v1276 = vpop.permute.xlu0 %1275
    %1277 = vrot.lane.b32.xlu0 %v740, 127
    %v1278 = vpop.permute.xlu0 %1277
    %1279 = vrot.lane.b32.xlu0 %v742, 127
    %v1280 = vpop.permute.xlu0 %1279
    %1281 = vrot.lane.b32.xlu0 %v744, 127
    %v1282 = vpop.permute.xlu0 %1281
    %1283 = vrot.lane.b32.xlu0 %v739, 127
    %v1284 = vpop.permute.xlu0 %1283
    %1285 = vrot.lane.b32.xlu0 %v741, 127
    %v1286 = vpop.permute.xlu0 %1285
    %1287 = vrot.lane.b32.xlu0 %v743, 127
    %v1288 = vpop.permute.xlu0 %1287
    %1289 = vrot.lane.b32.xlu0 %v745, 127
    %v1290 = vpop.permute.xlu0 %1289
    %v1291 = vsel %vm276, %v1276, %v1284
    %v1292 = vsel %vm276, %v1278, %v1286
    %v1293 = vsel %vm276, %v1280, %v1288
    %v1294 = vsel %vm276, %v1282, %v1290
    %v1295 = vsel %vm276, %v1284, %v1276
    %v1296 = vsel %vm276, %v1286, %v1278
    %v1297 = vsel %vm276, %v1288, %v1280
    %v1298 = vsel %vm276, %v1290, %v1282
    %1299 = vrot.lane.b32.xlu0 %v808, 127
    %v1300 = vpop.permute.xlu0 %1299
    %1301 = vrot.lane.b32.xlu0 %v810, 127
    %v1302 = vpop.permute.xlu0 %1301
    %1303 = vrot.lane.b32.xlu0 %v812, 127
    %v1304 = vpop.permute.xlu0 %1303
    %1305 = vrot.lane.b32.xlu0 %v814, 127
    %v1306 = vpop.permute.xlu0 %1305
    %1307 = vrot.lane.b32.xlu0 %v809, 127
    %v1308 = vpop.permute.xlu0 %1307
    %1309 = vrot.lane.b32.xlu0 %v811, 127
    %v1310 = vpop.permute.xlu0 %1309
    %1311 = vrot.lane.b32.xlu0 %v813, 127
    %v1312 = vpop.permute.xlu0 %1311
    %1313 = vrot.lane.b32.xlu0 %v815, 127
    %v1314 = vpop.permute.xlu0 %1313
    %v1315 = vsel %vm276, %v1300, %v1308
    %v1316 = vsel %vm276, %v1302, %v1310
    %v1317 = vsel %vm276, %v1304, %v1312
    %v1318 = vsel %vm276, %v1306, %v1314
    %v1319 = vsel %vm276, %v1308, %v1300
    %v1320 = vsel %vm276, %v1310, %v1302
    %v1321 = vsel %vm276, %v1312, %v1304
    %v1322 = vsel %vm276, %v1314, %v1306
    %v1323 = vsub.f32 %v170, %v1267
    %v1324 = vsub.f32 %v171, %v1271
    %v1325 = vsub.f32 %v172, %v1268
    %v1326 = vsub.f32 %v173, %v1272
    %v1327 = vsub.f32 %v174, %v1269
    %v1328 = vsub.f32 %v175, %v1273
    %v1329 = vsub.f32 %v176, %v1270
    %v1330 = vsub.f32 %v177, %v1274
    %v1331 = vsub.f32 %v130, %v1291
    %v1332 = vsub.f32 %v131, %v1295
    %v1333 = vsub.f32 %v132, %v1292
    %v1334 = vsub.f32 %v133, %v1296
    %v1335 = vsub.f32 %v134, %v1293
    %v1336 = vsub.f32 %v135, %v1297
    %v1337 = vsub.f32 %v136, %v1294
    %v1338 = vsub.f32 %v137, %v1298
    %v1339 = vmul.f32 %v1331, %v120
    %v1340 = vmul.f32 %v1332, %v121
    %v1341 = vmul.f32 %v1333, %v120
    %v1342 = vmul.f32 %v1334, %v121
    %v1343 = vmul.f32 %v1335, %v120
    %v1344 = vmul.f32 %v1336, %v121
    %v1345 = vmul.f32 %v1337, %v120
    %v1346 = vmul.f32 %v1338, %v121
    %v1347 = vsub.f32 %v1339, %v1291
    %v1348 = vsub.f32 %v1340, %v1295
    %v1349 = vsub.f32 %v1341, %v1292
    %v1350 = vsub.f32 %v1342, %v1296
    %v1351 = vsub.f32 %v1343, %v1293
    %v1352 = vsub.f32 %v1344, %v1297
    %v1353 = vsub.f32 %v1345, %v1294
    %v1354 = vsub.f32 %v1346, %v1298
    %v1355 = vsub.f32 %v186, %v1315
    %v1356 = vsub.f32 %v187, %v1319
    %v1357 = vsub.f32 %v188, %v1316
    %v1358 = vsub.f32 %v189, %v1320
    %v1359 = vsub.f32 %v190, %v1317
    %v1360 = vsub.f32 %v191, %v1321
    %v1361 = vsub.f32 %v192, %v1318
    %v1362 = vsub.f32 %v193, %v1322
    %v1363 = vmul.f32 %v1355, %v113
    %v1364 = vmul.f32 %v1356, %v113
    %v1365 = vmul.f32 %v1357, %v114
    %v1366 = vmul.f32 %v1358, %v114
    %v1367 = vmul.f32 %v1359, %v115
    %v1368 = vmul.f32 %v1360, %v115
    %v1369 = vmul.f32 %v1361, %v116
    %v1370 = vmul.f32 %v1362, %v116
    %v1371 = vadd.f32 %v1363, %v1315
    %v1372 = vadd.f32 %v1364, %v1319
    %v1373 = vadd.f32 %v1365, %v1316
    %v1374 = vadd.f32 %v1366, %v1320
    %v1375 = vadd.f32 %v1367, %v1317
    %v1376 = vadd.f32 %v1368, %v1321
    %v1377 = vadd.f32 %v1369, %v1318
    %v1378 = vadd.f32 %v1370, %v1322
    %v1379 = vmul.f32 %v625, %v1347
    %v1380 = vmul.f32 %v626, %v1348
    %v1381 = vmul.f32 %v627, %v1349
    %v1382 = vmul.f32 %v628, %v1350
    %v1383 = vmul.f32 %v629, %v1351
    %v1384 = vmul.f32 %v630, %v1352
    %v1385 = vmul.f32 %v631, %v1353
    %v1386 = vmul.f32 %v632, %v1354
    %v1387 = vmul.f32 %v633, %v1371
    %v1388 = vmul.f32 %v634, %v1372
    %v1389 = vmul.f32 %v635, %v1373
    %v1390 = vmul.f32 %v636, %v1374
    %v1391 = vmul.f32 %v637, %v1375
    %v1392 = vmul.f32 %v638, %v1376
    %v1393 = vmul.f32 %v639, %v1377
    %v1394 = vmul.f32 %v640, %v1378
    %v1395 = vadd.f32 %v1379, %v1387
    %v1396 = vadd.f32 %v1380, %v1388
    %v1397 = vadd.f32 %v1381, %v1389
    %v1398 = vadd.f32 %v1382, %v1390
    %v1399 = vadd.f32 %v1383, %v1391
    %v1400 = vadd.f32 %v1384, %v1392
    %v1401 = vadd.f32 %v1385, %v1393
    %v1402 = vadd.f32 %v1386, %v1394
    %v1403 = vrcp.pop %v1323
    %v1404 = vrcp.pop %v1324
    %v1405 = vrcp.pop %v1325
    %v1406 = vrcp.pop %v1326
    %v1407 = vrcp.pop %v1327
    %v1408 = vrcp.pop %v1328
    %v1409 = vrcp.pop %v1329
    %v1410 = vrcp.pop %v1330
    %v1411 = vmul.f32 %v1395, %v1403
    %v1412 = vmul.f32 %v1396, %v1404
    %v1413 = vmul.f32 %v1397, %v1405
    %v1414 = vmul.f32 %v1398, %v1406
    %v1415 = vmul.f32 %v1399, %v1407
    %v1416 = vmul.f32 %v1400, %v1408
    %v1417 = vmul.f32 %v1401, %v1409
    %v1418 = vmul.f32 %v1402, %v1410
    %v1419 = vmul.f32 %v1411, %v1411
    %v1420 = vmul.f32 %v1412, %v1412
    %v1421 = vmul.f32 %v1413, %v1413
    %v1422 = vmul.f32 %v1414, %v1414
    %v1423 = vmul.f32 %v1415, %v1415
    %v1424 = vmul.f32 %v1416, %v1416
    %v1425 = vmul.f32 %v1417, %v1417
    %v1426 = vmul.f32 %v1418, %v1418
    %v1427 = vadd.f32 %v432, %v1419
    %v1428 = vadd.f32 %v433, %v1420
    %v1429 = vadd.f32 %v434, %v1421
    %v1430 = vadd.f32 %v435, %v1422
    %v1431 = vadd.f32 %v436, %v1423
    %v1432 = vadd.f32 %v437, %v1424
    %v1433 = vadd.f32 %v438, %v1425
    %v1434 = vadd.f32 %v439, %v1426
    %v1435 = vrsqrt.pop %v1427
    %v1436 = vrsqrt.pop %v1428
    %v1437 = vrsqrt.pop %v1429
    %v1438 = vrsqrt.pop %v1430
    %v1439 = vrsqrt.pop %v1431
    %v1440 = vrsqrt.pop %v1432
    %v1441 = vrsqrt.pop %v1433
    %v1442 = vrsqrt.pop %v1434
    %v1443 = vmul.f32 %v1411, %v1435
    %v1444 = vmul.f32 %v1412, %v1436
    %v1445 = vmul.f32 %v1413, %v1437
    %v1446 = vmul.f32 %v1414, %v1438
    %v1447 = vmul.f32 %v1415, %v1439
    %v1448 = vmul.f32 %v1416, %v1440
    %v1449 = vmul.f32 %v1417, %v1441
    %v1450 = vmul.f32 %v1418, %v1442
    %vm1451 = vcmp.ne.f32.partialorder %v1443, %v1443
    %vm1452 = vcmp.ne.f32.partialorder %v1444, %v1444
    %vm1453 = vcmp.ne.f32.partialorder %v1445, %v1445
    %vm1454 = vcmp.ne.f32.partialorder %v1446, %v1446
    %vm1455 = vcmp.ne.f32.partialorder %v1447, %v1447
    %vm1456 = vcmp.ne.f32.partialorder %v1448, %v1448
    %vm1457 = vcmp.ne.f32.partialorder %v1449, %v1449
    %vm1458 = vcmp.ne.f32.partialorder %v1450, %v1450
    %v1459 = vsel %vm1451, 0.0, %v1435
    %v1460 = vsel %vm1452, 0.0, %v1436
    %v1461 = vsel %vm1453, 0.0, %v1437
    %v1462 = vsel %vm1454, 0.0, %v1438
    %v1463 = vsel %vm1455, 0.0, %v1439
    %v1464 = vsel %vm1456, 0.0, %v1440
    %v1465 = vsel %vm1457, 0.0, %v1441
    %v1466 = vsel %vm1458, 0.0, %v1442
    %v1467 = vadd.f32 %v1227, %v1459
    %v1468 = vadd.f32 %v1228, %v1460
    %v1469 = vadd.f32 %v1229, %v1461
    %v1470 = vadd.f32 %v1230, %v1462
    %v1471 = vadd.f32 %v1231, %v1463
    %v1472 = vadd.f32 %v1232, %v1464
    %v1473 = vadd.f32 %v1233, %v1465
    %v1474 = vadd.f32 %v1234, %v1466
    %v1475 = vsel %vm1451, 0.0, %v1443
    %v1476 = vsel %vm1452, 0.0, %v1444
    %v1477 = vsel %vm1453, 0.0, %v1445
    %v1478 = vsel %vm1454, 0.0, %v1446
    %v1479 = vsel %vm1455, 0.0, %v1447
    %v1480 = vsel %vm1456, 0.0, %v1448
    %v1481 = vsel %vm1457, 0.0, %v1449
    %v1482 = vsel %vm1458, 0.0, %v1450
    %v1483 = vadd.f32 %v1243, %v1475
    %v1484 = vadd.f32 %v1244, %v1476
    %v1485 = vadd.f32 %v1245, %v1477
    %v1486 = vadd.f32 %v1246, %v1478
    %v1487 = vadd.f32 %v1247, %v1479
    %v1488 = vadd.f32 %v1248, %v1480
    %v1489 = vadd.f32 %v1249, %v1481
    %v1490 = vadd.f32 %v1250, %v1482
    %1491 = vrot.lane.b32.xlu0 %v170, 1
    %v1492 = vpop.permute.xlu0 %1491
    %1493 = vrot.lane.b32.xlu0 %v172, 1
    %v1494 = vpop.permute.xlu0 %1493
    %1495 = vrot.lane.b32.xlu0 %v174, 1
    %v1496 = vpop.permute.xlu0 %1495
    %1497 = vrot.lane.b32.xlu0 %v176, 1
    %v1498 = vpop.permute.xlu0 %1497
    %1499 = vrot.lane.b32.xlu0 %v171, 1
    %v1500 = vpop.permute.xlu0 %1499
    %1501 = vrot.lane.b32.xlu0 %v173, 1
    %v1502 = vpop.permute.xlu0 %1501
    %1503 = vrot.lane.b32.xlu0 %v175, 1
    %v1504 = vpop.permute.xlu0 %1503
    %1505 = vrot.lane.b32.xlu0 %v177, 1
    %v1506 = vpop.permute.xlu0 %1505
    %v1507 = vsel %vm301, %v1492, %v1500
    %v1508 = vsel %vm301, %v1494, %v1502
    %v1509 = vsel %vm301, %v1496, %v1504
    %v1510 = vsel %vm301, %v1498, %v1506
    %v1511 = vsel %vm301, %v1500, %v1492
    %v1512 = vsel %vm301, %v1502, %v1494
    %v1513 = vsel %vm301, %v1504, %v1496
    %v1514 = vsel %vm301, %v1506, %v1498
    %1515 = vrot.lane.b32.xlu0 %v130, 1
    %v1516 = vpop.permute.xlu0 %1515
    %1517 = vrot.lane.b32.xlu0 %v132, 1
    %v1518 = vpop.permute.xlu0 %1517
    %1519 = vrot.lane.b32.xlu0 %v134, 1
    %v1520 = vpop.permute.xlu0 %1519
    %1521 = vrot.lane.b32.xlu0 %v136, 1
    %v1522 = vpop.permute.xlu0 %1521
    %1523 = vrot.lane.b32.xlu0 %v131, 1
    %v1524 = vpop.permute.xlu0 %1523
    %1525 = vrot.lane.b32.xlu0 %v133, 1
    %v1526 = vpop.permute.xlu0 %1525
    %1527 = vrot.lane.b32.xlu0 %v135, 1
    %v1528 = vpop.permute.xlu0 %1527
    %1529 = vrot.lane.b32.xlu0 %v137, 1
    %v1530 = vpop.permute.xlu0 %1529
    %v1531 = vsel %vm301, %v1516, %v1524
    %v1532 = vsel %vm301, %v1518, %v1526
    %v1533 = vsel %vm301, %v1520, %v1528
    %v1534 = vsel %vm301, %v1522, %v1530
    %v1535 = vsel %vm301, %v1524, %v1516
    %v1536 = vsel %vm301, %v1526, %v1518
    %v1537 = vsel %vm301, %v1528, %v1520
    %v1538 = vsel %vm301, %v1530, %v1522
    %1539 = vrot.lane.b32.xlu0 %v186, 1
    %v1540 = vpop.permute.xlu0 %1539
    %1541 = vrot.lane.b32.xlu0 %v188, 1
    %v1542 = vpop.permute.xlu0 %1541
    %1543 = vrot.lane.b32.xlu0 %v190, 1
    %v1544 = vpop.permute.xlu0 %1543
    %1545 = vrot.lane.b32.xlu0 %v192, 1
    %v1546 = vpop.permute.xlu0 %1545
    %1547 = vrot.lane.b32.xlu0 %v187, 1
    %v1548 = vpop.permute.xlu0 %1547
    %1549 = vrot.lane.b32.xlu0 %v189, 1
    %v1550 = vpop.permute.xlu0 %1549
    %1551 = vrot.lane.b32.xlu0 %v191, 1
    %v1552 = vpop.permute.xlu0 %1551
    %1553 = vrot.lane.b32.xlu0 %v193, 1
    %v1554 = vpop.permute.xlu0 %1553
    %v1555 = vsel %vm301, %v1540, %v1548
    %v1556 = vsel %vm301, %v1542, %v1550
    %v1557 = vsel %vm301, %v1544, %v1552
    %v1558 = vsel %vm301, %v1546, %v1554
    %v1559 = vsel %vm301, %v1548, %v1540
    %v1560 = vsel %vm301, %v1550, %v1542
    %v1561 = vsel %vm301, %v1552, %v1544
    %v1562 = vsel %vm301, %v1554, %v1546
    %v1563 = vsub.f32 %v170, %v1511
    %v1564 = vsub.f32 %v171, %v1507
    %v1565 = vsub.f32 %v172, %v1512
    %v1566 = vsub.f32 %v173, %v1508
    %v1567 = vsub.f32 %v174, %v1513
    %v1568 = vsub.f32 %v175, %v1509
    %v1569 = vsub.f32 %v176, %v1514
    %v1570 = vsub.f32 %v177, %v1510
    %v1571 = vsub.f32 %v130, %v1535
    %v1572 = vsub.f32 %v131, %v1531
    %v1573 = vsub.f32 %v132, %v1536
    %v1574 = vsub.f32 %v133, %v1532
    %v1575 = vsub.f32 %v134, %v1537
    %v1576 = vsub.f32 %v135, %v1533
    %v1577 = vsub.f32 %v136, %v1538
    %v1578 = vsub.f32 %v137, %v1534
    %v1579 = vmul.f32 %v1571, %v120
    %v1580 = vmul.f32 %v1572, %v121
    %v1581 = vmul.f32 %v1573, %v120
    %v1582 = vmul.f32 %v1574, %v121
    %v1583 = vmul.f32 %v1575, %v120
    %v1584 = vmul.f32 %v1576, %v121
    %v1585 = vmul.f32 %v1577, %v120
    %v1586 = vmul.f32 %v1578, %v121
    %v1587 = vadd.f32 %v1579, %v1535
    %v1588 = vadd.f32 %v1580, %v1531
    %v1589 = vadd.f32 %v1581, %v1536
    %v1590 = vadd.f32 %v1582, %v1532
    %v1591 = vadd.f32 %v1583, %v1537
    %v1592 = vadd.f32 %v1584, %v1533
    %v1593 = vadd.f32 %v1585, %v1538
    %v1594 = vadd.f32 %v1586, %v1534
    %v1595 = vsub.f32 %v186, %v1559
    %v1596 = vsub.f32 %v187, %v1555
    %v1597 = vsub.f32 %v188, %v1560
    %v1598 = vsub.f32 %v189, %v1556
    %v1599 = vsub.f32 %v190, %v1561
    %v1600 = vsub.f32 %v191, %v1557
    %v1601 = vsub.f32 %v192, %v1562
    %v1602 = vsub.f32 %v193, %v1558
    %v1603 = vmul.f32 %v1595, %v113
    %v1604 = vmul.f32 %v1596, %v113
    %v1605 = vmul.f32 %v1597, %v114
    %v1606 = vmul.f32 %v1598, %v114
    %v1607 = vmul.f32 %v1599, %v115
    %v1608 = vmul.f32 %v1600, %v115
    %v1609 = vmul.f32 %v1601, %v116
    %v1610 = vmul.f32 %v1602, %v116
    %v1611 = vmul.f32 %v625, %v1587
    %v1612 = vmul.f32 %v626, %v1588
    %v1613 = vmul.f32 %v627, %v1589
    %v1614 = vmul.f32 %v628, %v1590
    %v1615 = vmul.f32 %v629, %v1591
    %v1616 = vmul.f32 %v630, %v1592
    %v1617 = vmul.f32 %v631, %v1593
    %v1618 = vmul.f32 %v632, %v1594
    %v1619 = vmul.f32 %v633, %v1603
    %v1620 = vmul.f32 %v634, %v1604
    %v1621 = vmul.f32 %v635, %v1605
    %v1622 = vmul.f32 %v636, %v1606
    %v1623 = vmul.f32 %v637, %v1607
    %v1624 = vmul.f32 %v638, %v1608
    %v1625 = vmul.f32 %v639, %v1609
    %v1626 = vmul.f32 %v640, %v1610
    %v1627 = vadd.f32 %v1611, %v1619
    %v1628 = vadd.f32 %v1612, %v1620
    %v1629 = vadd.f32 %v1613, %v1621
    %v1630 = vadd.f32 %v1614, %v1622
    %v1631 = vadd.f32 %v1615, %v1623
    %v1632 = vadd.f32 %v1616, %v1624
    %v1633 = vadd.f32 %v1617, %v1625
    %v1634 = vadd.f32 %v1618, %v1626
    %v1635 = vrcp.pop %v1563
    %v1636 = vrcp.pop %v1564
    %v1637 = vrcp.pop %v1565
    %v1638 = vrcp.pop %v1566
    %v1639 = vrcp.pop %v1567
    %v1640 = vrcp.pop %v1568
    %v1641 = vrcp.pop %v1569
    %v1642 = vrcp.pop %v1570
    %v1643 = vmul.f32 %v1627, %v1635
    %v1644 = vmul.f32 %v1628, %v1636
    %v1645 = vmul.f32 %v1629, %v1637
    %v1646 = vmul.f32 %v1630, %v1638
    %v1647 = vmul.f32 %v1631, %v1639
    %v1648 = vmul.f32 %v1632, %v1640
    %v1649 = vmul.f32 %v1633, %v1641
    %v1650 = vmul.f32 %v1634, %v1642
    %v1651 = vmul.f32 %v1643, %v1643
    %v1652 = vmul.f32 %v1644, %v1644
    %v1653 = vmul.f32 %v1645, %v1645
    %v1654 = vmul.f32 %v1646, %v1646
    %v1655 = vmul.f32 %v1647, %v1647
    %v1656 = vmul.f32 %v1648, %v1648
    %v1657 = vmul.f32 %v1649, %v1649
    %v1658 = vmul.f32 %v1650, %v1650
    %v1659 = vadd.f32 %v432, %v1651
    %v1660 = vadd.f32 %v433, %v1652
    %v1661 = vadd.f32 %v434, %v1653
    %v1662 = vadd.f32 %v435, %v1654
    %v1663 = vadd.f32 %v436, %v1655
    %v1664 = vadd.f32 %v437, %v1656
    %v1665 = vadd.f32 %v438, %v1657
    %v1666 = vadd.f32 %v439, %v1658
    %v1667 = vrsqrt.pop %v1659
    %v1668 = vrsqrt.pop %v1660
    %v1669 = vrsqrt.pop %v1661
    %v1670 = vrsqrt.pop %v1662
    %v1671 = vrsqrt.pop %v1663
    %v1672 = vrsqrt.pop %v1664
    %v1673 = vrsqrt.pop %v1665
    %v1674 = vrsqrt.pop %v1666
    %v1675 = vmul.f32 %v1643, %v1667
    %v1676 = vmul.f32 %v1644, %v1668
    %v1677 = vmul.f32 %v1645, %v1669
    %v1678 = vmul.f32 %v1646, %v1670
    %v1679 = vmul.f32 %v1647, %v1671
    %v1680 = vmul.f32 %v1648, %v1672
    %v1681 = vmul.f32 %v1649, %v1673
    %v1682 = vmul.f32 %v1650, %v1674
    %vm1683 = vcmp.ne.f32.partialorder %v1675, %v1675
    %vm1684 = vcmp.ne.f32.partialorder %v1676, %v1676
    %vm1685 = vcmp.ne.f32.partialorder %v1677, %v1677
    %vm1686 = vcmp.ne.f32.partialorder %v1678, %v1678
    %vm1687 = vcmp.ne.f32.partialorder %v1679, %v1679
    %vm1688 = vcmp.ne.f32.partialorder %v1680, %v1680
    %vm1689 = vcmp.ne.f32.partialorder %v1681, %v1681
    %vm1690 = vcmp.ne.f32.partialorder %v1682, %v1682
    %v1691 = vsel %vm1683, 0.0, %v1667
    %v1692 = vsel %vm1684, 0.0, %v1668
    %v1693 = vsel %vm1685, 0.0, %v1669
    %v1694 = vsel %vm1686, 0.0, %v1670
    %v1695 = vsel %vm1687, 0.0, %v1671
    %v1696 = vsel %vm1688, 0.0, %v1672
    %v1697 = vsel %vm1689, 0.0, %v1673
    %v1698 = vsel %vm1690, 0.0, %v1674
    %v1699 = vadd.f32 %v1467, %v1691
    %v1700 = vadd.f32 %v1468, %v1692
    %v1701 = vadd.f32 %v1469, %v1693
    %v1702 = vadd.f32 %v1470, %v1694
    %v1703 = vadd.f32 %v1471, %v1695
    %v1704 = vadd.f32 %v1472, %v1696
    %v1705 = vadd.f32 %v1473, %v1697
    %v1706 = vadd.f32 %v1474, %v1698
    %v1707 = vsel %vm1683, 0.0, %v1675
    %v1708 = vsel %vm1684, 0.0, %v1676
    %v1709 = vsel %vm1685, 0.0, %v1677
    %v1710 = vsel %vm1686, 0.0, %v1678
    %v1711 = vsel %vm1687, 0.0, %v1679
    %v1712 = vsel %vm1688, 0.0, %v1680
    %v1713 = vsel %vm1689, 0.0, %v1681
    %v1714 = vsel %vm1690, 0.0, %v1682
    %v1715 = vadd.f32 %v1483, %v1707
    %v1716 = vadd.f32 %v1484, %v1708
    %v1717 = vadd.f32 %v1485, %v1709
    %v1718 = vadd.f32 %v1486, %v1710
    %v1719 = vadd.f32 %v1487, %v1711
    %v1720 = vadd.f32 %v1488, %v1712
    %v1721 = vadd.f32 %v1489, %v1713
    %v1722 = vadd.f32 %v1490, %v1714
    %1723 = vrot.lane.b32.xlu0 %v170, 127
    %v1724 = vpop.permute.xlu0 %1723
    %1725 = vrot.lane.b32.xlu0 %v172, 127
    %v1726 = vpop.permute.xlu0 %1725
    %1727 = vrot.lane.b32.xlu0 %v174, 127
    %v1728 = vpop.permute.xlu0 %1727
    %1729 = vrot.lane.b32.xlu0 %v176, 127
    %v1730 = vpop.permute.xlu0 %1729
    %1731 = vrot.lane.b32.xlu0 %v171, 127
    %v1732 = vpop.permute.xlu0 %1731
    %1733 = vrot.lane.b32.xlu0 %v173, 127
    %v1734 = vpop.permute.xlu0 %1733
    %1735 = vrot.lane.b32.xlu0 %v175, 127
    %v1736 = vpop.permute.xlu0 %1735
    %1737 = vrot.lane.b32.xlu0 %v177, 127
    %v1738 = vpop.permute.xlu0 %1737
    %v1739 = vsel %vm276, %v1724, %v1732
    %v1740 = vsel %vm276, %v1726, %v1734
    %v1741 = vsel %vm276, %v1728, %v1736
    %v1742 = vsel %vm276, %v1730, %v1738
    %v1743 = vsel %vm276, %v1732, %v1724
    %v1744 = vsel %vm276, %v1734, %v1726
    %v1745 = vsel %vm276, %v1736, %v1728
    %v1746 = vsel %vm276, %v1738, %v1730
    %1747 = vrot.lane.b32.xlu0 %v130, 127
    %v1748 = vpop.permute.xlu0 %1747
    %1749 = vrot.lane.b32.xlu0 %v132, 127
    %v1750 = vpop.permute.xlu0 %1749
    %1751 = vrot.lane.b32.xlu0 %v134, 127
    %v1752 = vpop.permute.xlu0 %1751
    %1753 = vrot.lane.b32.xlu0 %v136, 127
    %v1754 = vpop.permute.xlu0 %1753
    %1755 = vrot.lane.b32.xlu0 %v131, 127
    %v1756 = vpop.permute.xlu0 %1755
    %1757 = vrot.lane.b32.xlu0 %v133, 127
    %v1758 = vpop.permute.xlu0 %1757
    %1759 = vrot.lane.b32.xlu0 %v135, 127
    %v1760 = vpop.permute.xlu0 %1759
    %1761 = vrot.lane.b32.xlu0 %v137, 127
    %v1762 = vpop.permute.xlu0 %1761
    %v1763 = vsel %vm276, %v1748, %v1756
    %v1764 = vsel %vm276, %v1750, %v1758
    %v1765 = vsel %vm276, %v1752, %v1760
    %v1766 = vsel %vm276, %v1754, %v1762
    %v1767 = vsel %vm276, %v1756, %v1748
    %v1768 = vsel %vm276, %v1758, %v1750
    %v1769 = vsel %vm276, %v1760, %v1752
    %v1770 = vsel %vm276, %v1762, %v1754
    %1771 = vrot.lane.b32.xlu0 %v186, 127
    %v1772 = vpop.permute.xlu0 %1771
    %1773 = vrot.lane.b32.xlu0 %v188, 127
    %v1774 = vpop.permute.xlu0 %1773
    %1775 = vrot.lane.b32.xlu0 %v190, 127
    %v1776 = vpop.permute.xlu0 %1775
    %1777 = vrot.lane.b32.xlu0 %v192, 127
    %v1778 = vpop.permute.xlu0 %1777
    %1779 = vrot.lane.b32.xlu0 %v187, 127
    %v1780 = vpop.permute.xlu0 %1779
    %1781 = vrot.lane.b32.xlu0 %v189, 127
    %v1782 = vpop.permute.xlu0 %1781
    %1783 = vrot.lane.b32.xlu0 %v191, 127
    %v1784 = vpop.permute.xlu0 %1783
    %1785 = vrot.lane.b32.xlu0 %v193, 127
    %v1786 = vpop.permute.xlu0 %1785
    %v1787 = vsel %vm276, %v1772, %v1780
    %v1788 = vsel %vm276, %v1774, %v1782
    %v1789 = vsel %vm276, %v1776, %v1784
    %v1790 = vsel %vm276, %v1778, %v1786
    %v1791 = vsel %vm276, %v1780, %v1772
    %v1792 = vsel %vm276, %v1782, %v1774
    %v1793 = vsel %vm276, %v1784, %v1776
    %v1794 = vsel %vm276, %v1786, %v1778
    %v1795 = vsub.f32 %v170, %v1739
    %v1796 = vsub.f32 %v171, %v1743
    %v1797 = vsub.f32 %v172, %v1740
    %v1798 = vsub.f32 %v173, %v1744
    %v1799 = vsub.f32 %v174, %v1741
    %v1800 = vsub.f32 %v175, %v1745
    %v1801 = vsub.f32 %v176, %v1742
    %v1802 = vsub.f32 %v177, %v1746
    %v1803 = vsub.f32 %v130, %v1763
    %v1804 = vsub.f32 %v131, %v1767
    %v1805 = vsub.f32 %v132, %v1764
    %v1806 = vsub.f32 %v133, %v1768
    %v1807 = vsub.f32 %v134, %v1765
    %v1808 = vsub.f32 %v135, %v1769
    %v1809 = vsub.f32 %v136, %v1766
    %v1810 = vsub.f32 %v137, %v1770
    %v1811 = vmul.f32 %v1803, %v120
    %v1812 = vmul.f32 %v1804, %v121
    %v1813 = vmul.f32 %v1805, %v120
    %v1814 = vmul.f32 %v1806, %v121
    %v1815 = vmul.f32 %v1807, %v120
    %v1816 = vmul.f32 %v1808, %v121
    %v1817 = vmul.f32 %v1809, %v120
    %v1818 = vmul.f32 %v1810, %v121
    %v1819 = vsub.f32 %v1811, %v1763
    %v1820 = vsub.f32 %v1812, %v1767
    %v1821 = vsub.f32 %v1813, %v1764
    %v1822 = vsub.f32 %v1814, %v1768
    %v1823 = vsub.f32 %v1815, %v1765
    %v1824 = vsub.f32 %v1816, %v1769
    %v1825 = vsub.f32 %v1817, %v1766
    %v1826 = vsub.f32 %v1818, %v1770
    %v1827 = vsub.f32 %v186, %v1787
    %v1828 = vsub.f32 %v187, %v1791
    %v1829 = vsub.f32 %v188, %v1788
    %v1830 = vsub.f32 %v189, %v1792
    %v1831 = vsub.f32 %v190, %v1789
    %v1832 = vsub.f32 %v191, %v1793
    %v1833 = vsub.f32 %v192, %v1790
    %v1834 = vsub.f32 %v193, %v1794
    %v1835 = vmul.f32 %v1827, %v113
    %v1836 = vmul.f32 %v1828, %v113
    %v1837 = vmul.f32 %v1829, %v114
    %v1838 = vmul.f32 %v1830, %v114
    %v1839 = vmul.f32 %v1831, %v115
    %v1840 = vmul.f32 %v1832, %v115
    %v1841 = vmul.f32 %v1833, %v116
    %v1842 = vmul.f32 %v1834, %v116
    %v1843 = vmul.f32 %v625, %v1819
    %v1844 = vmul.f32 %v626, %v1820
    %v1845 = vmul.f32 %v627, %v1821
    %v1846 = vmul.f32 %v628, %v1822
    %v1847 = vmul.f32 %v629, %v1823
    %v1848 = vmul.f32 %v630, %v1824
    %v1849 = vmul.f32 %v631, %v1825
    %v1850 = vmul.f32 %v632, %v1826
    %v1851 = vmul.f32 %v633, %v1835
    %v1852 = vmul.f32 %v634, %v1836
    %v1853 = vmul.f32 %v635, %v1837
    %v1854 = vmul.f32 %v636, %v1838
    %v1855 = vmul.f32 %v637, %v1839
    %v1856 = vmul.f32 %v638, %v1840
    %v1857 = vmul.f32 %v639, %v1841
    %v1858 = vmul.f32 %v640, %v1842
    %v1859 = vadd.f32 %v1843, %v1851
    %v1860 = vadd.f32 %v1844, %v1852
    %v1861 = vadd.f32 %v1845, %v1853
    %v1862 = vadd.f32 %v1846, %v1854
    %v1863 = vadd.f32 %v1847, %v1855
    %v1864 = vadd.f32 %v1848, %v1856
    %v1865 = vadd.f32 %v1849, %v1857
    %v1866 = vadd.f32 %v1850, %v1858
    %v1867 = vrcp.pop %v1795
    %v1868 = vrcp.pop %v1796
    %v1869 = vrcp.pop %v1797
    %v1870 = vrcp.pop %v1798
    %v1871 = vrcp.pop %v1799
    %v1872 = vrcp.pop %v1800
    %v1873 = vrcp.pop %v1801
    %v1874 = vrcp.pop %v1802
    %v1875 = vmul.f32 %v1859, %v1867
    %v1876 = vmul.f32 %v1860, %v1868
    %v1877 = vmul.f32 %v1861, %v1869
    %v1878 = vmul.f32 %v1862, %v1870
    %v1879 = vmul.f32 %v1863, %v1871
    %v1880 = vmul.f32 %v1864, %v1872
    %v1881 = vmul.f32 %v1865, %v1873
    %v1882 = vmul.f32 %v1866, %v1874
    %v1883 = vmul.f32 %v1875, %v1875
    %v1884 = vmul.f32 %v1876, %v1876
    %v1885 = vmul.f32 %v1877, %v1877
    %v1886 = vmul.f32 %v1878, %v1878
    %v1887 = vmul.f32 %v1879, %v1879
    %v1888 = vmul.f32 %v1880, %v1880
    %v1889 = vmul.f32 %v1881, %v1881
    %v1890 = vmul.f32 %v1882, %v1882
    %v1891 = vadd.f32 %v432, %v1883
    %v1892 = vadd.f32 %v433, %v1884
    %v1893 = vadd.f32 %v434, %v1885
    %v1894 = vadd.f32 %v435, %v1886
    %v1895 = vadd.f32 %v436, %v1887
    %v1896 = vadd.f32 %v437, %v1888
    %v1897 = vadd.f32 %v438, %v1889
    %v1898 = vadd.f32 %v439, %v1890
    %v1899 = vrsqrt.pop %v1891
    %v1900 = vrsqrt.pop %v1892
    %v1901 = vrsqrt.pop %v1893
    %v1902 = vrsqrt.pop %v1894
    %v1903 = vrsqrt.pop %v1895
    %v1904 = vrsqrt.pop %v1896
    %v1905 = vrsqrt.pop %v1897
    %v1906 = vrsqrt.pop %v1898
    %v1907 = vmul.f32 %v1875, %v1899
    %v1908 = vmul.f32 %v1876, %v1900
    %v1909 = vmul.f32 %v1877, %v1901
    %v1910 = vmul.f32 %v1878, %v1902
    %v1911 = vmul.f32 %v1879, %v1903
    %v1912 = vmul.f32 %v1880, %v1904
    %v1913 = vmul.f32 %v1881, %v1905
    %v1914 = vmul.f32 %v1882, %v1906
    %vm1915 = vcmp.ne.f32.partialorder %v1907, %v1907
    %vm1916 = vcmp.ne.f32.partialorder %v1908, %v1908
    %vm1917 = vcmp.ne.f32.partialorder %v1909, %v1909
    %vm1918 = vcmp.ne.f32.partialorder %v1910, %v1910
    %vm1919 = vcmp.ne.f32.partialorder %v1911, %v1911
    %vm1920 = vcmp.ne.f32.partialorder %v1912, %v1912
    %vm1921 = vcmp.ne.f32.partialorder %v1913, %v1913
    %vm1922 = vcmp.ne.f32.partialorder %v1914, %v1914
    %v1923 = vsel %vm1915, 0.0, %v1899
    %v1924 = vsel %vm1916, 0.0, %v1900
    %v1925 = vsel %vm1917, 0.0, %v1901
    %v1926 = vsel %vm1918, 0.0, %v1902
    %v1927 = vsel %vm1919, 0.0, %v1903
    %v1928 = vsel %vm1920, 0.0, %v1904
    %v1929 = vsel %vm1921, 0.0, %v1905
    %v1930 = vsel %vm1922, 0.0, %v1906
    %v1931 = vadd.f32 %v1699, %v1923
    %v1932 = vadd.f32 %v1700, %v1924
    %v1933 = vadd.f32 %v1701, %v1925
    %v1934 = vadd.f32 %v1702, %v1926
    %v1935 = vadd.f32 %v1703, %v1927
    %v1936 = vadd.f32 %v1704, %v1928
    %v1937 = vadd.f32 %v1705, %v1929
    %v1938 = vadd.f32 %v1706, %v1930
    %v1939 = vsel %vm1915, 0.0, %v1907
    %v1940 = vsel %vm1916, 0.0, %v1908
    %v1941 = vsel %vm1917, 0.0, %v1909
    %v1942 = vsel %vm1918, 0.0, %v1910
    %v1943 = vsel %vm1919, 0.0, %v1911
    %v1944 = vsel %vm1920, 0.0, %v1912
    %v1945 = vsel %vm1921, 0.0, %v1913
    %v1946 = vsel %vm1922, 0.0, %v1914
    %v1947 = vadd.f32 %v1715, %v1939
    %v1948 = vadd.f32 %v1716, %v1940
    %v1949 = vadd.f32 %v1717, %v1941
    %v1950 = vadd.f32 %v1718, %v1942
    %v1951 = vadd.f32 %v1719, %v1943
    %v1952 = vadd.f32 %v1720, %v1944
    %v1953 = vadd.f32 %v1721, %v1945
    %v1954 = vadd.f32 %v1722, %v1946
    %1955 = vrot.lane.b32.xlu0 %v703, 1
    %v1956 = vpop.permute.xlu0 %1955
    %1957 = vrot.lane.b32.xlu0 %v705, 1
    %v1958 = vpop.permute.xlu0 %1957
    %1959 = vrot.lane.b32.xlu0 %v707, 1
    %v1960 = vpop.permute.xlu0 %1959
    %1961 = vrot.lane.b32.xlu0 %v709, 1
    %v1962 = vpop.permute.xlu0 %1961
    %1963 = vrot.lane.b32.xlu0 %v704, 1
    %v1964 = vpop.permute.xlu0 %1963
    %1965 = vrot.lane.b32.xlu0 %v706, 1
    %v1966 = vpop.permute.xlu0 %1965
    %1967 = vrot.lane.b32.xlu0 %v708, 1
    %v1968 = vpop.permute.xlu0 %1967
    %1969 = vrot.lane.b32.xlu0 %v710, 1
    %v1970 = vpop.permute.xlu0 %1969
    %v1971 = vsel %vm301, %v1956, %v1964
    %v1972 = vsel %vm301, %v1958, %v1966
    %v1973 = vsel %vm301, %v1960, %v1968
    %v1974 = vsel %vm301, %v1962, %v1970
    %v1975 = vsel %vm301, %v1964, %v1956
    %v1976 = vsel %vm301, %v1966, %v1958
    %v1977 = vsel %vm301, %v1968, %v1960
    %v1978 = vsel %vm301, %v1970, %v1962
    %1979 = vrot.lane.b32.xlu0 %v773, 1
    %v1980 = vpop.permute.xlu0 %1979
    %1981 = vrot.lane.b32.xlu0 %v775, 1
    %v1982 = vpop.permute.xlu0 %1981
    %1983 = vrot.lane.b32.xlu0 %v777, 1
    %v1984 = vpop.permute.xlu0 %1983
    %1985 = vrot.lane.b32.xlu0 %v779, 1
    %v1986 = vpop.permute.xlu0 %1985
    %1987 = vrot.lane.b32.xlu0 %v774, 1
    %v1988 = vpop.permute.xlu0 %1987
    %1989 = vrot.lane.b32.xlu0 %v776, 1
    %v1990 = vpop.permute.xlu0 %1989
    %1991 = vrot.lane.b32.xlu0 %v778, 1
    %v1992 = vpop.permute.xlu0 %1991
    %1993 = vrot.lane.b32.xlu0 %v780, 1
    %v1994 = vpop.permute.xlu0 %1993
    %v1995 = vsel %vm301, %v1980, %v1988
    %v1996 = vsel %vm301, %v1982, %v1990
    %v1997 = vsel %vm301, %v1984, %v1992
    %v1998 = vsel %vm301, %v1986, %v1994
    %v1999 = vsel %vm301, %v1988, %v1980
    %v2000 = vsel %vm301, %v1990, %v1982
    %v2001 = vsel %vm301, %v1992, %v1984
    %v2002 = vsel %vm301, %v1994, %v1986
    %2003 = vrot.lane.b32.xlu0 %v843, 1
    %v2004 = vpop.permute.xlu0 %2003
    %2005 = vrot.lane.b32.xlu0 %v845, 1
    %v2006 = vpop.permute.xlu0 %2005
    %2007 = vrot.lane.b32.xlu0 %v847, 1
    %v2008 = vpop.permute.xlu0 %2007
    %2009 = vrot.lane.b32.xlu0 %v849, 1
    %v2010 = vpop.permute.xlu0 %2009
    %2011 = vrot.lane.b32.xlu0 %v844, 1
    %v2012 = vpop.permute.xlu0 %2011
    %2013 = vrot.lane.b32.xlu0 %v846, 1
    %v2014 = vpop.permute.xlu0 %2013
    %2015 = vrot.lane.b32.xlu0 %v848, 1
    %v2016 = vpop.permute.xlu0 %2015
    %2017 = vrot.lane.b32.xlu0 %v850, 1
    %v2018 = vpop.permute.xlu0 %2017
    %v2019 = vsel %vm301, %v2004, %v2012
    %v2020 = vsel %vm301, %v2006, %v2014
    %v2021 = vsel %vm301, %v2008, %v2016
    %v2022 = vsel %vm301, %v2010, %v2018
    %v2023 = vsel %vm301, %v2012, %v2004
    %v2024 = vsel %vm301, %v2014, %v2006
    %v2025 = vsel %vm301, %v2016, %v2008
    %v2026 = vsel %vm301, %v2018, %v2010
    %v2027 = vsub.f32 %v170, %v1975
    %v2028 = vsub.f32 %v171, %v1971
    %v2029 = vsub.f32 %v172, %v1976
    %v2030 = vsub.f32 %v173, %v1972
    %v2031 = vsub.f32 %v174, %v1977
    %v2032 = vsub.f32 %v175, %v1973
    %v2033 = vsub.f32 %v176, %v1978
    %v2034 = vsub.f32 %v177, %v1974
    %v2035 = vsub.f32 %v130, %v1999
    %v2036 = vsub.f32 %v131, %v1995
    %v2037 = vsub.f32 %v132, %v2000
    %v2038 = vsub.f32 %v133, %v1996
    %v2039 = vsub.f32 %v134, %v2001
    %v2040 = vsub.f32 %v135, %v1997
    %v2041 = vsub.f32 %v136, %v2002
    %v2042 = vsub.f32 %v137, %v1998
    %v2043 = vmul.f32 %v2035, %v120
    %v2044 = vmul.f32 %v2036, %v121
    %v2045 = vmul.f32 %v2037, %v120
    %v2046 = vmul.f32 %v2038, %v121
    %v2047 = vmul.f32 %v2039, %v120
    %v2048 = vmul.f32 %v2040, %v121
    %v2049 = vmul.f32 %v2041, %v120
    %v2050 = vmul.f32 %v2042, %v121
    %v2051 = vadd.f32 %v2043, %v1999
    %v2052 = vadd.f32 %v2044, %v1995
    %v2053 = vadd.f32 %v2045, %v2000
    %v2054 = vadd.f32 %v2046, %v1996
    %v2055 = vadd.f32 %v2047, %v2001
    %v2056 = vadd.f32 %v2048, %v1997
    %v2057 = vadd.f32 %v2049, %v2002
    %v2058 = vadd.f32 %v2050, %v1998
    %v2059 = vsub.f32 %v186, %v2023
    %v2060 = vsub.f32 %v187, %v2019
    %v2061 = vsub.f32 %v188, %v2024
    %v2062 = vsub.f32 %v189, %v2020
    %v2063 = vsub.f32 %v190, %v2025
    %v2064 = vsub.f32 %v191, %v2021
    %v2065 = vsub.f32 %v192, %v2026
    %v2066 = vsub.f32 %v193, %v2022
    %v2067 = vmul.f32 %v2059, %v113
    %v2068 = vmul.f32 %v2060, %v113
    %v2069 = vmul.f32 %v2061, %v114
    %v2070 = vmul.f32 %v2062, %v114
    %v2071 = vmul.f32 %v2063, %v115
    %v2072 = vmul.f32 %v2064, %v115
    %v2073 = vmul.f32 %v2065, %v116
    %v2074 = vmul.f32 %v2066, %v116
    %v2075 = vsub.f32 %v2067, %v2023
    %v2076 = vsub.f32 %v2068, %v2019
    %v2077 = vsub.f32 %v2069, %v2024
    %v2078 = vsub.f32 %v2070, %v2020
    %v2079 = vsub.f32 %v2071, %v2025
    %v2080 = vsub.f32 %v2072, %v2021
    %v2081 = vsub.f32 %v2073, %v2026
    %v2082 = vsub.f32 %v2074, %v2022
    %v2083 = vmul.f32 %v625, %v2051
    %v2084 = vmul.f32 %v626, %v2052
    %v2085 = vmul.f32 %v627, %v2053
    %v2086 = vmul.f32 %v628, %v2054
    %v2087 = vmul.f32 %v629, %v2055
    %v2088 = vmul.f32 %v630, %v2056
    %v2089 = vmul.f32 %v631, %v2057
    %v2090 = vmul.f32 %v632, %v2058
    %v2091 = vmul.f32 %v633, %v2075
    %v2092 = vmul.f32 %v634, %v2076
    %v2093 = vmul.f32 %v635, %v2077
    %v2094 = vmul.f32 %v636, %v2078
    %v2095 = vmul.f32 %v637, %v2079
    %v2096 = vmul.f32 %v638, %v2080
    %v2097 = vmul.f32 %v639, %v2081
    %v2098 = vmul.f32 %v640, %v2082
    %v2099 = vadd.f32 %v2083, %v2091
    %v2100 = vadd.f32 %v2084, %v2092
    %v2101 = vadd.f32 %v2085, %v2093
    %v2102 = vadd.f32 %v2086, %v2094
    %v2103 = vadd.f32 %v2087, %v2095
    %v2104 = vadd.f32 %v2088, %v2096
    %v2105 = vadd.f32 %v2089, %v2097
    %v2106 = vadd.f32 %v2090, %v2098
    %v2107 = vrcp.pop %v2027
    %v2108 = vrcp.pop %v2028
    %v2109 = vrcp.pop %v2029
    %v2110 = vrcp.pop %v2030
    %v2111 = vrcp.pop %v2031
    %v2112 = vrcp.pop %v2032
    %v2113 = vrcp.pop %v2033
    %v2114 = vrcp.pop %v2034
    %v2115 = vmul.f32 %v2099, %v2107
    %v2116 = vmul.f32 %v2100, %v2108
    %v2117 = vmul.f32 %v2101, %v2109
    %v2118 = vmul.f32 %v2102, %v2110
    %v2119 = vmul.f32 %v2103, %v2111
    %v2120 = vmul.f32 %v2104, %v2112
    %v2121 = vmul.f32 %v2105, %v2113
    %v2122 = vmul.f32 %v2106, %v2114
    %v2123 = vmul.f32 %v2115, %v2115
    %v2124 = vmul.f32 %v2116, %v2116
    %v2125 = vmul.f32 %v2117, %v2117
    %v2126 = vmul.f32 %v2118, %v2118
    %v2127 = vmul.f32 %v2119, %v2119
    %v2128 = vmul.f32 %v2120, %v2120
    %v2129 = vmul.f32 %v2121, %v2121
    %v2130 = vmul.f32 %v2122, %v2122
    %v2131 = vadd.f32 %v432, %v2123
    %v2132 = vadd.f32 %v433, %v2124
    %v2133 = vadd.f32 %v434, %v2125
    %v2134 = vadd.f32 %v435, %v2126
    %v2135 = vadd.f32 %v436, %v2127
    %v2136 = vadd.f32 %v437, %v2128
    %v2137 = vadd.f32 %v438, %v2129
    %v2138 = vadd.f32 %v439, %v2130
    %v2139 = vrsqrt.pop %v2131
    %v2140 = vrsqrt.pop %v2132
    %v2141 = vrsqrt.pop %v2133
    %v2142 = vrsqrt.pop %v2134
    %v2143 = vrsqrt.pop %v2135
    %v2144 = vrsqrt.pop %v2136
    %v2145 = vrsqrt.pop %v2137
    %v2146 = vrsqrt.pop %v2138
    %v2147 = vmul.f32 %v2115, %v2139
    %v2148 = vmul.f32 %v2116, %v2140
    %v2149 = vmul.f32 %v2117, %v2141
    %v2150 = vmul.f32 %v2118, %v2142
    %v2151 = vmul.f32 %v2119, %v2143
    %v2152 = vmul.f32 %v2120, %v2144
    %v2153 = vmul.f32 %v2121, %v2145
    %v2154 = vmul.f32 %v2122, %v2146
    %vm2155 = vcmp.ne.f32.partialorder %v2147, %v2147
    %vm2156 = vcmp.ne.f32.partialorder %v2148, %v2148
    %vm2157 = vcmp.ne.f32.partialorder %v2149, %v2149
    %vm2158 = vcmp.ne.f32.partialorder %v2150, %v2150
    %vm2159 = vcmp.ne.f32.partialorder %v2151, %v2151
    %vm2160 = vcmp.ne.f32.partialorder %v2152, %v2152
    %vm2161 = vcmp.ne.f32.partialorder %v2153, %v2153
    %vm2162 = vcmp.ne.f32.partialorder %v2154, %v2154
    %v2163 = vsel %vm2155, 0.0, %v2139
    %v2164 = vsel %vm2156, 0.0, %v2140
    %v2165 = vsel %vm2157, 0.0, %v2141
    %v2166 = vsel %vm2158, 0.0, %v2142
    %v2167 = vsel %vm2159, 0.0, %v2143
    %v2168 = vsel %vm2160, 0.0, %v2144
    %v2169 = vsel %vm2161, 0.0, %v2145
    %v2170 = vsel %vm2162, 0.0, %v2146
    %v2171 = vadd.f32 %v1931, %v2163
    %v2172 = vadd.f32 %v1932, %v2164
    %v2173 = vadd.f32 %v1933, %v2165
    %v2174 = vadd.f32 %v1934, %v2166
    %v2175 = vadd.f32 %v1935, %v2167
    %v2176 = vadd.f32 %v1936, %v2168
    %v2177 = vadd.f32 %v1937, %v2169
    %v2178 = vadd.f32 %v1938, %v2170
    %v2179 = vsel %vm2155, 0.0, %v2147
    %v2180 = vsel %vm2156, 0.0, %v2148
    %v2181 = vsel %vm2157, 0.0, %v2149
    %v2182 = vsel %vm2158, 0.0, %v2150
    %v2183 = vsel %vm2159, 0.0, %v2151
    %v2184 = vsel %vm2160, 0.0, %v2152
    %v2185 = vsel %vm2161, 0.0, %v2153
    %v2186 = vsel %vm2162, 0.0, %v2154
    %v2187 = vadd.f32 %v1947, %v2179
    %v2188 = vadd.f32 %v1948, %v2180
    %v2189 = vadd.f32 %v1949, %v2181
    %v2190 = vadd.f32 %v1950, %v2182
    %v2191 = vadd.f32 %v1951, %v2183
    %v2192 = vadd.f32 %v1952, %v2184
    %v2193 = vadd.f32 %v1953, %v2185
    %v2194 = vadd.f32 %v1954, %v2186
    %v2195 = vsub.f32 %v170, %v703
    %v2196 = vsub.f32 %v171, %v704
    %v2197 = vsub.f32 %v172, %v705
    %v2198 = vsub.f32 %v173, %v706
    %v2199 = vsub.f32 %v174, %v707
    %v2200 = vsub.f32 %v175, %v708
    %v2201 = vsub.f32 %v176, %v709
    %v2202 = vsub.f32 %v177, %v710
    %v2203 = vsub.f32 %v130, %v773
    %v2204 = vsub.f32 %v131, %v774
    %v2205 = vsub.f32 %v132, %v775
    %v2206 = vsub.f32 %v133, %v776
    %v2207 = vsub.f32 %v134, %v777
    %v2208 = vsub.f32 %v135, %v778
    %v2209 = vsub.f32 %v136, %v779
    %v2210 = vsub.f32 %v137, %v780
    %v2211 = vmul.f32 %v2203, %v120
    %v2212 = vmul.f32 %v2204, %v121
    %v2213 = vmul.f32 %v2205, %v120
    %v2214 = vmul.f32 %v2206, %v121
    %v2215 = vmul.f32 %v2207, %v120
    %v2216 = vmul.f32 %v2208, %v121
    %v2217 = vmul.f32 %v2209, %v120
    %v2218 = vmul.f32 %v2210, %v121
    %v2219 = vsub.f32 %v186, %v843
    %v2220 = vsub.f32 %v187, %v844
    %v2221 = vsub.f32 %v188, %v845
    %v2222 = vsub.f32 %v189, %v846
    %v2223 = vsub.f32 %v190, %v847
    %v2224 = vsub.f32 %v191, %v848
    %v2225 = vsub.f32 %v192, %v849
    %v2226 = vsub.f32 %v193, %v850
    %v2227 = vmul.f32 %v2219, %v113
    %v2228 = vmul.f32 %v2220, %v113
    %v2229 = vmul.f32 %v2221, %v114
    %v2230 = vmul.f32 %v2222, %v114
    %v2231 = vmul.f32 %v2223, %v115
    %v2232 = vmul.f32 %v2224, %v115
    %v2233 = vmul.f32 %v2225, %v116
    %v2234 = vmul.f32 %v2226, %v116
    %v2235 = vsub.f32 %v2227, %v843
    %v2236 = vsub.f32 %v2228, %v844
    %v2237 = vsub.f32 %v2229, %v845
    %v2238 = vsub.f32 %v2230, %v846
    %v2239 = vsub.f32 %v2231, %v847
    %v2240 = vsub.f32 %v2232, %v848
    %v2241 = vsub.f32 %v2233, %v849
    %v2242 = vsub.f32 %v2234, %v850
    %v2243 = vmul.f32 %v625, %v2211
    %v2244 = vmul.f32 %v626, %v2212
    %v2245 = vmul.f32 %v627, %v2213
    %v2246 = vmul.f32 %v628, %v2214
    %v2247 = vmul.f32 %v629, %v2215
    %v2248 = vmul.f32 %v630, %v2216
    %v2249 = vmul.f32 %v631, %v2217
    %v2250 = vmul.f32 %v632, %v2218
    %v2251 = vmul.f32 %v633, %v2235
    %v2252 = vmul.f32 %v634, %v2236
    %v2253 = vmul.f32 %v635, %v2237
    %v2254 = vmul.f32 %v636, %v2238
    %v2255 = vmul.f32 %v637, %v2239
    %v2256 = vmul.f32 %v638, %v2240
    %v2257 = vmul.f32 %v639, %v2241
    %v2258 = vmul.f32 %v640, %v2242
    %v2259 = vadd.f32 %v2243, %v2251
    %v2260 = vadd.f32 %v2244, %v2252
    %v2261 = vadd.f32 %v2245, %v2253
    %v2262 = vadd.f32 %v2246, %v2254
    %v2263 = vadd.f32 %v2247, %v2255
    %v2264 = vadd.f32 %v2248, %v2256
    %v2265 = vadd.f32 %v2249, %v2257
    %v2266 = vadd.f32 %v2250, %v2258
    %v2267 = vrcp.pop %v2195
    %v2268 = vrcp.pop %v2196
    %v2269 = vrcp.pop %v2197
    %v2270 = vrcp.pop %v2198
    %v2271 = vrcp.pop %v2199
    %v2272 = vrcp.pop %v2200
    %v2273 = vrcp.pop %v2201
    %v2274 = vrcp.pop %v2202
    %v2275 = vmul.f32 %v2259, %v2267
    %v2276 = vmul.f32 %v2260, %v2268
    %v2277 = vmul.f32 %v2261, %v2269
    %v2278 = vmul.f32 %v2262, %v2270
    %v2279 = vmul.f32 %v2263, %v2271
    %v2280 = vmul.f32 %v2264, %v2272
    %v2281 = vmul.f32 %v2265, %v2273
    %v2282 = vmul.f32 %v2266, %v2274
    %v2283 = vmul.f32 %v2275, %v2275
    %v2284 = vmul.f32 %v2276, %v2276
    %v2285 = vmul.f32 %v2277, %v2277
    %v2286 = vmul.f32 %v2278, %v2278
    %v2287 = vmul.f32 %v2279, %v2279
    %v2288 = vmul.f32 %v2280, %v2280
    %v2289 = vmul.f32 %v2281, %v2281
    %v2290 = vmul.f32 %v2282, %v2282
    %v2291 = vadd.f32 %v432, %v2283
    %v2292 = vadd.f32 %v433, %v2284
    %v2293 = vadd.f32 %v434, %v2285
    %v2294 = vadd.f32 %v435, %v2286
    %v2295 = vadd.f32 %v436, %v2287
    %v2296 = vadd.f32 %v437, %v2288
    %v2297 = vadd.f32 %v438, %v2289
    %v2298 = vadd.f32 %v439, %v2290
    %v2299 = vrsqrt.pop %v2291
    %v2300 = vrsqrt.pop %v2292
    %v2301 = vrsqrt.pop %v2293
    %v2302 = vrsqrt.pop %v2294
    %v2303 = vrsqrt.pop %v2295
    %v2304 = vrsqrt.pop %v2296
    %v2305 = vrsqrt.pop %v2297
    %v2306 = vrsqrt.pop %v2298
    %v2307 = vmul.f32 %v2275, %v2299
    %v2308 = vmul.f32 %v2276, %v2300
    %v2309 = vmul.f32 %v2277, %v2301
    %v2310 = vmul.f32 %v2278, %v2302
    %v2311 = vmul.f32 %v2279, %v2303
    %v2312 = vmul.f32 %v2280, %v2304
    %v2313 = vmul.f32 %v2281, %v2305
    %v2314 = vmul.f32 %v2282, %v2306
    %vm2315 = vcmp.ne.f32.partialorder %v2307, %v2307
    %vm2316 = vcmp.ne.f32.partialorder %v2308, %v2308
    %vm2317 = vcmp.ne.f32.partialorder %v2309, %v2309
    %vm2318 = vcmp.ne.f32.partialorder %v2310, %v2310
    %vm2319 = vcmp.ne.f32.partialorder %v2311, %v2311
    %vm2320 = vcmp.ne.f32.partialorder %v2312, %v2312
    %vm2321 = vcmp.ne.f32.partialorder %v2313, %v2313
    %vm2322 = vcmp.ne.f32.partialorder %v2314, %v2314
    %v2323 = vsel %vm2315, 0.0, %v2299
    %v2324 = vsel %vm2316, 0.0, %v2300
    %v2325 = vsel %vm2317, 0.0, %v2301
    %v2326 = vsel %vm2318, 0.0, %v2302
    %v2327 = vsel %vm2319, 0.0, %v2303
    %v2328 = vsel %vm2320, 0.0, %v2304
    %v2329 = vsel %vm2321, 0.0, %v2305
    %v2330 = vsel %vm2322, 0.0, %v2306
    %v2331 = vadd.f32 %v2171, %v2323
    %v2332 = vadd.f32 %v2172, %v2324
    %v2333 = vadd.f32 %v2173, %v2325
    %v2334 = vadd.f32 %v2174, %v2326
    %v2335 = vadd.f32 %v2175, %v2327
    %v2336 = vadd.f32 %v2176, %v2328
    %v2337 = vadd.f32 %v2177, %v2329
    %v2338 = vadd.f32 %v2178, %v2330
    %v2339 = vsel %vm2315, 0.0, %v2307
    %v2340 = vsel %vm2316, 0.0, %v2308
    %v2341 = vsel %vm2317, 0.0, %v2309
    %v2342 = vsel %vm2318, 0.0, %v2310
    %v2343 = vsel %vm2319, 0.0, %v2311
    %v2344 = vsel %vm2320, 0.0, %v2312
    %v2345 = vsel %vm2321, 0.0, %v2313
    %v2346 = vsel %vm2322, 0.0, %v2314
    %v2347 = vadd.f32 %v2187, %v2339
    %v2348 = vadd.f32 %v2188, %v2340
    %v2349 = vadd.f32 %v2189, %v2341
    %v2350 = vadd.f32 %v2190, %v2342
    %v2351 = vadd.f32 %v2191, %v2343
    %v2352 = vadd.f32 %v2192, %v2344
    %v2353 = vadd.f32 %v2193, %v2345
    %v2354 = vadd.f32 %v2194, %v2346
    %2355 = vrot.lane.b32.xlu0 %v703, 127
    %v2356 = vpop.permute.xlu0 %2355
    %2357 = vrot.lane.b32.xlu0 %v705, 127
    %v2358 = vpop.permute.xlu0 %2357
    %2359 = vrot.lane.b32.xlu0 %v707, 127
    %v2360 = vpop.permute.xlu0 %2359
    %2361 = vrot.lane.b32.xlu0 %v709, 127
    %v2362 = vpop.permute.xlu0 %2361
    %2363 = vrot.lane.b32.xlu0 %v704, 127
    %v2364 = vpop.permute.xlu0 %2363
    %2365 = vrot.lane.b32.xlu0 %v706, 127
    %v2366 = vpop.permute.xlu0 %2365
    %2367 = vrot.lane.b32.xlu0 %v708, 127
    %v2368 = vpop.permute.xlu0 %2367
    %2369 = vrot.lane.b32.xlu0 %v710, 127
    %v2370 = vpop.permute.xlu0 %2369
    %v2371 = vsel %vm276, %v2356, %v2364
    %v2372 = vsel %vm276, %v2358, %v2366
    %v2373 = vsel %vm276, %v2360, %v2368
    %v2374 = vsel %vm276, %v2362, %v2370
    %v2375 = vsel %vm276, %v2364, %v2356
    %v2376 = vsel %vm276, %v2366, %v2358
    %v2377 = vsel %vm276, %v2368, %v2360
    %v2378 = vsel %vm276, %v2370, %v2362
    %2379 = vrot.lane.b32.xlu0 %v773, 127
    %v2380 = vpop.permute.xlu0 %2379
    %2381 = vrot.lane.b32.xlu0 %v775, 127
    %v2382 = vpop.permute.xlu0 %2381
    %2383 = vrot.lane.b32.xlu0 %v777, 127
    %v2384 = vpop.permute.xlu0 %2383
    %2385 = vrot.lane.b32.xlu0 %v779, 127
    %v2386 = vpop.permute.xlu0 %2385
    %2387 = vrot.lane.b32.xlu0 %v774, 127
    %v2388 = vpop.permute.xlu0 %2387
    %2389 = vrot.lane.b32.xlu0 %v776, 127
    %v2390 = vpop.permute.xlu0 %2389
    %2391 = vrot.lane.b32.xlu0 %v778, 127
    %v2392 = vpop.permute.xlu0 %2391
    %2393 = vrot.lane.b32.xlu0 %v780, 127
    %v2394 = vpop.permute.xlu0 %2393
    %v2395 = vsel %vm276, %v2380, %v2388
    %v2396 = vsel %vm276, %v2382, %v2390
    %v2397 = vsel %vm276, %v2384, %v2392
    %v2398 = vsel %vm276, %v2386, %v2394
    %v2399 = vsel %vm276, %v2388, %v2380
    %v2400 = vsel %vm276, %v2390, %v2382
    %v2401 = vsel %vm276, %v2392, %v2384
    %v2402 = vsel %vm276, %v2394, %v2386
    %2403 = vrot.lane.b32.xlu0 %v843, 127
    %v2404 = vpop.permute.xlu0 %2403
    %2405 = vrot.lane.b32.xlu0 %v845, 127
    %v2406 = vpop.permute.xlu0 %2405
    %2407 = vrot.lane.b32.xlu0 %v847, 127
    %v2408 = vpop.permute.xlu0 %2407
    %2409 = vrot.lane.b32.xlu0 %v849, 127
    %v2410 = vpop.permute.xlu0 %2409
    %2411 = vrot.lane.b32.xlu0 %v844, 127
    %v2412 = vpop.permute.xlu0 %2411
    %2413 = vrot.lane.b32.xlu0 %v846, 127
    %v2414 = vpop.permute.xlu0 %2413
    %2415 = vrot.lane.b32.xlu0 %v848, 127
    %v2416 = vpop.permute.xlu0 %2415
    %2417 = vrot.lane.b32.xlu0 %v850, 127
    %v2418 = vpop.permute.xlu0 %2417
    %v2419 = vsel %vm276, %v2404, %v2412
    %v2420 = vsel %vm276, %v2406, %v2414
    %v2421 = vsel %vm276, %v2408, %v2416
    %v2422 = vsel %vm276, %v2410, %v2418
    %v2423 = vsel %vm276, %v2412, %v2404
    %v2424 = vsel %vm276, %v2414, %v2406
    %v2425 = vsel %vm276, %v2416, %v2408
    %v2426 = vsel %vm276, %v2418, %v2410
    %v2427 = vsub.f32 %v170, %v2371
    %v2428 = vsub.f32 %v171, %v2375
    %v2429 = vsub.f32 %v172, %v2372
    %v2430 = vsub.f32 %v173, %v2376
    %v2431 = vsub.f32 %v174, %v2373
    %v2432 = vsub.f32 %v175, %v2377
    %v2433 = vsub.f32 %v176, %v2374
    %v2434 = vsub.f32 %v177, %v2378
    %v2435 = vsub.f32 %v130, %v2395
    %v2436 = vsub.f32 %v131, %v2399
    %v2437 = vsub.f32 %v132, %v2396
    %v2438 = vsub.f32 %v133, %v2400
    %v2439 = vsub.f32 %v134, %v2397
    %v2440 = vsub.f32 %v135, %v2401
    %v2441 = vsub.f32 %v136, %v2398
    %v2442 = vsub.f32 %v137, %v2402
    %v2443 = vmul.f32 %v2435, %v120
    %v2444 = vmul.f32 %v2436, %v121
    %v2445 = vmul.f32 %v2437, %v120
    %v2446 = vmul.f32 %v2438, %v121
    %v2447 = vmul.f32 %v2439, %v120
    %v2448 = vmul.f32 %v2440, %v121
    %v2449 = vmul.f32 %v2441, %v120
    %v2450 = vmul.f32 %v2442, %v121
    %v2451 = vsub.f32 %v2443, %v2395
    %v2452 = vsub.f32 %v2444, %v2399
    %v2453 = vsub.f32 %v2445, %v2396
    %v2454 = vsub.f32 %v2446, %v2400
    %v2455 = vsub.f32 %v2447, %v2397
    %v2456 = vsub.f32 %v2448, %v2401
    %v2457 = vsub.f32 %v2449, %v2398
    %v2458 = vsub.f32 %v2450, %v2402
    %v2459 = vsub.f32 %v186, %v2419
    %v2460 = vsub.f32 %v187, %v2423
    %v2461 = vsub.f32 %v188, %v2420
    %v2462 = vsub.f32 %v189, %v2424
    %v2463 = vsub.f32 %v190, %v2421
    %v2464 = vsub.f32 %v191, %v2425
    %v2465 = vsub.f32 %v192, %v2422
    %v2466 = vsub.f32 %v193, %v2426
    %v2467 = vmul.f32 %v2459, %v113
    %v2468 = vmul.f32 %v2460, %v113
    %v2469 = vmul.f32 %v2461, %v114
    %v2470 = vmul.f32 %v2462, %v114
    %v2471 = vmul.f32 %v2463, %v115
    %v2472 = vmul.f32 %v2464, %v115
    %v2473 = vmul.f32 %v2465, %v116
    %v2474 = vmul.f32 %v2466, %v116
    %v2475 = vsub.f32 %v2467, %v2419
    %v2476 = vsub.f32 %v2468, %v2423
    %v2477 = vsub.f32 %v2469, %v2420
    %v2478 = vsub.f32 %v2470, %v2424
    %v2479 = vsub.f32 %v2471, %v2421
    %v2480 = vsub.f32 %v2472, %v2425
    %v2481 = vsub.f32 %v2473, %v2422
    %v2482 = vsub.f32 %v2474, %v2426
    %v2483 = vmul.f32 %v625, %v2451
    %v2484 = vmul.f32 %v626, %v2452
    %v2485 = vmul.f32 %v627, %v2453
    %v2486 = vmul.f32 %v628, %v2454
    %v2487 = vmul.f32 %v629, %v2455
    %v2488 = vmul.f32 %v630, %v2456
    %v2489 = vmul.f32 %v631, %v2457
    %v2490 = vmul.f32 %v632, %v2458
    %v2491 = vmul.f32 %v633, %v2475
    %v2492 = vmul.f32 %v634, %v2476
    %v2493 = vmul.f32 %v635, %v2477
    %v2494 = vmul.f32 %v636, %v2478
    %v2495 = vmul.f32 %v637, %v2479
    %v2496 = vmul.f32 %v638, %v2480
    %v2497 = vmul.f32 %v639, %v2481
    %v2498 = vmul.f32 %v640, %v2482
    %v2499 = vadd.f32 %v2483, %v2491
    %v2500 = vadd.f32 %v2484, %v2492
    %v2501 = vadd.f32 %v2485, %v2493
    %v2502 = vadd.f32 %v2486, %v2494
    %v2503 = vadd.f32 %v2487, %v2495
    %v2504 = vadd.f32 %v2488, %v2496
    %v2505 = vadd.f32 %v2489, %v2497
    %v2506 = vadd.f32 %v2490, %v2498
    %v2507 = vrcp.pop %v2427
    %v2508 = vrcp.pop %v2428
    %v2509 = vrcp.pop %v2429
    %v2510 = vrcp.pop %v2430
    %v2511 = vrcp.pop %v2431
    %v2512 = vrcp.pop %v2432
    %v2513 = vrcp.pop %v2433
    %v2514 = vrcp.pop %v2434
    %v2515 = vmul.f32 %v2499, %v2507
    %v2516 = vmul.f32 %v2500, %v2508
    %v2517 = vmul.f32 %v2501, %v2509
    %v2518 = vmul.f32 %v2502, %v2510
    %v2519 = vmul.f32 %v2503, %v2511
    %v2520 = vmul.f32 %v2504, %v2512
    %v2521 = vmul.f32 %v2505, %v2513
    %v2522 = vmul.f32 %v2506, %v2514
    %v2523 = vmul.f32 %v2515, %v2515
    %v2524 = vmul.f32 %v2516, %v2516
    %v2525 = vmul.f32 %v2517, %v2517
    %v2526 = vmul.f32 %v2518, %v2518
    %v2527 = vmul.f32 %v2519, %v2519
    %v2528 = vmul.f32 %v2520, %v2520
    %v2529 = vmul.f32 %v2521, %v2521
    %v2530 = vmul.f32 %v2522, %v2522
    %v2531 = vadd.f32 %v432, %v2523
    %v2532 = vadd.f32 %v433, %v2524
    %v2533 = vadd.f32 %v434, %v2525
    %v2534 = vadd.f32 %v435, %v2526
    %v2535 = vadd.f32 %v436, %v2527
    %v2536 = vadd.f32 %v437, %v2528
    %v2537 = vadd.f32 %v438, %v2529
    %v2538 = vadd.f32 %v439, %v2530
    %v2539 = vrsqrt.pop %v2531
    %v2540 = vrsqrt.pop %v2532
    %v2541 = vrsqrt.pop %v2533
    %v2542 = vrsqrt.pop %v2534
    %v2543 = vrsqrt.pop %v2535
    %v2544 = vrsqrt.pop %v2536
    %v2545 = vrsqrt.pop %v2537
    %v2546 = vrsqrt.pop %v2538
    %v2547 = vmul.f32 %v2515, %v2539
    %v2548 = vmul.f32 %v2516, %v2540
    %v2549 = vmul.f32 %v2517, %v2541
    %v2550 = vmul.f32 %v2518, %v2542
    %v2551 = vmul.f32 %v2519, %v2543
    %v2552 = vmul.f32 %v2520, %v2544
    %v2553 = vmul.f32 %v2521, %v2545
    %v2554 = vmul.f32 %v2522, %v2546
    %vm2555 = vcmp.ne.f32.partialorder %v2547, %v2547
    %vm2556 = vcmp.ne.f32.partialorder %v2548, %v2548
    %vm2557 = vcmp.ne.f32.partialorder %v2549, %v2549
    %vm2558 = vcmp.ne.f32.partialorder %v2550, %v2550
    %vm2559 = vcmp.ne.f32.partialorder %v2551, %v2551
    %vm2560 = vcmp.ne.f32.partialorder %v2552, %v2552
    %vm2561 = vcmp.ne.f32.partialorder %v2553, %v2553
    %vm2562 = vcmp.ne.f32.partialorder %v2554, %v2554
    %v2563 = vsel %vm2555, 0.0, %v2539
    %v2564 = vsel %vm2556, 0.0, %v2540
    %v2565 = vsel %vm2557, 0.0, %v2541
    %v2566 = vsel %vm2558, 0.0, %v2542
    %v2567 = vsel %vm2559, 0.0, %v2543
    %v2568 = vsel %vm2560, 0.0, %v2544
    %v2569 = vsel %vm2561, 0.0, %v2545
    %v2570 = vsel %vm2562, 0.0, %v2546
    %v2571 = vadd.f32 %v2331, %v2563
    %v2572 = vadd.f32 %v2332, %v2564
    %v2573 = vadd.f32 %v2333, %v2565
    %v2574 = vadd.f32 %v2334, %v2566
    %v2575 = vadd.f32 %v2335, %v2567
    %v2576 = vadd.f32 %v2336, %v2568
    %v2577 = vadd.f32 %v2337, %v2569
    %v2578 = vadd.f32 %v2338, %v2570
    %v2579 = vsel %vm2555, 0.0, %v2547
    %v2580 = vsel %vm2556, 0.0, %v2548
    %v2581 = vsel %vm2557, 0.0, %v2549
    %v2582 = vsel %vm2558, 0.0, %v2550
    %v2583 = vsel %vm2559, 0.0, %v2551
    %v2584 = vsel %vm2560, 0.0, %v2552
    %v2585 = vsel %vm2561, 0.0, %v2553
    %v2586 = vsel %vm2562, 0.0, %v2554
    %v2587 = vadd.f32 %v2347, %v2579
    %v2588 = vadd.f32 %v2348, %v2580
    %v2589 = vadd.f32 %v2349, %v2581
    %v2590 = vadd.f32 %v2350, %v2582
    %v2591 = vadd.f32 %v2351, %v2583
    %v2592 = vadd.f32 %v2352, %v2584
    %v2593 = vadd.f32 %v2353, %v2585
    %v2594 = vadd.f32 %v2354, %v2586
    %v2595 = vmul.f32 %v399, %v608
    %v2596 = vmul.f32 %v400, %v609
    %v2597 = vmul.f32 %v401, %v610
    %v2598 = vmul.f32 %v402, %v611
    %v2599 = vmul.f32 %v403, %v612
    %v2600 = vmul.f32 %v404, %v613
    %v2601 = vmul.f32 %v405, %v614
    %v2602 = vmul.f32 %v406, %v615
    %v2603 = vmul.f32 %v408, %v616
    %v2604 = vmul.f32 %v409, %v617
    %v2605 = vmul.f32 %v410, %v618
    %v2606 = vmul.f32 %v411, %v619
    %v2607 = vmul.f32 %v412, %v620
    %v2608 = vmul.f32 %v413, %v621
    %v2609 = vmul.f32 %v414, %v622
    %v2610 = vmul.f32 %v415, %v623
    %v2611 = vadd.f32 %v2595, %v2603
    %v2612 = vadd.f32 %v2596, %v2604
    %v2613 = vadd.f32 %v2597, %v2605
    %v2614 = vadd.f32 %v2598, %v2606
    %v2615 = vadd.f32 %v2599, %v2607
    %v2616 = vadd.f32 %v2600, %v2608
    %v2617 = vadd.f32 %v2601, %v2609
    %v2618 = vadd.f32 %v2602, %v2610
    %v2619 = vmul.f32 %v2611, %v2571
    %v2620 = vmul.f32 %v2612, %v2572
    %v2621 = vmul.f32 %v2613, %v2573
    %v2622 = vmul.f32 %v2614, %v2574
    %v2623 = vmul.f32 %v2615, %v2575
    %v2624 = vmul.f32 %v2616, %v2576
    %v2625 = vmul.f32 %v2617, %v2577
    %v2626 = vmul.f32 %v2618, %v2578
    %v2627 = vmul.f32 %v2619, %v2619
    %v2628 = vmul.f32 %v2620, %v2620
    %v2629 = vmul.f32 %v2621, %v2621
    %v2630 = vmul.f32 %v2622, %v2622
    %v2631 = vmul.f32 %v2623, %v2623
    %v2632 = vmul.f32 %v2624, %v2624
    %v2633 = vmul.f32 %v2625, %v2625
    %v2634 = vmul.f32 %v2626, %v2626
    %v2635 = vmul.f32 %v2587, %v2587
    %v2636 = vmul.f32 %v2588, %v2588
    %v2637 = vmul.f32 %v2589, %v2589
    %v2638 = vmul.f32 %v2590, %v2590
    %v2639 = vmul.f32 %v2591, %v2591
    %v2640 = vmul.f32 %v2592, %v2592
    %v2641 = vmul.f32 %v2593, %v2593
    %v2642 = vmul.f32 %v2594, %v2594
    %v2643 = vadd.f32 %v2627, %v2635
    %v2644 = vadd.f32 %v2628, %v2636
    %v2645 = vadd.f32 %v2629, %v2637
    %v2646 = vadd.f32 %v2630, %v2638
    %v2647 = vadd.f32 %v2631, %v2639
    %v2648 = vadd.f32 %v2632, %v2640
    %v2649 = vadd.f32 %v2633, %v2641
    %v2650 = vadd.f32 %v2634, %v2642
    %v2651 = vrsqrt.pop %v2643
    %v2652 = vrsqrt.pop %v2644
    %v2653 = vrsqrt.pop %v2645
    %v2654 = vrsqrt.pop %v2646
    %v2655 = vrsqrt.pop %v2647
    %v2656 = vrsqrt.pop %v2648
    %v2657 = vrsqrt.pop %v2649
    %v2658 = vrsqrt.pop %v2650
    %vm2659 = vcmp.ge.f32.partialorder %v2587, 0.0
    %vm2660 = vcmp.ge.f32.partialorder %v2588, 0.0
    %vm2661 = vcmp.ge.f32.partialorder %v2589, 0.0
    %vm2662 = vcmp.ge.f32.partialorder %v2590, 0.0
    %vm2663 = vcmp.ge.f32.partialorder %v2591, 0.0
    %vm2664 = vcmp.ge.f32.partialorder %v2592, 0.0
    %vm2665 = vcmp.ge.f32.partialorder %v2593, 0.0
    %vm2666 = vcmp.ge.f32.partialorder %v2594, 0.0
    %v2667 = vsel %vm2659, 1.0, -1.0
    %v2668 = vsel %vm2660, 1.0, -1.0
    %v2669 = vsel %vm2661, 1.0, -1.0
    %v2670 = vsel %vm2662, 1.0, -1.0
    %v2671 = vsel %vm2663, 1.0, -1.0
    %v2672 = vsel %vm2664, 1.0, -1.0
    %v2673 = vsel %vm2665, 1.0, -1.0
    %v2674 = vsel %vm2666, 1.0, -1.0
    %v2675 = vmul.f32 %v2619, %v2667
    %v2676 = vmul.f32 %v2620, %v2668
    %v2677 = vmul.f32 %v2621, %v2669
    %v2678 = vmul.f32 %v2622, %v2670
    %v2679 = vmul.f32 %v2623, %v2671
    %v2680 = vmul.f32 %v2624, %v2672
    %v2681 = vmul.f32 %v2625, %v2673
    %v2682 = vmul.f32 %v2626, %v2674
    %v2683 = vsub.f32 0.0, %v2675
    %v2684 = vsub.f32 0.0, %v2676
    %v2685 = vsub.f32 0.0, %v2677
    %v2686 = vsub.f32 0.0, %v2678
    %v2687 = vsub.f32 0.0, %v2679
    %v2688 = vsub.f32 0.0, %v2680
    %v2689 = vsub.f32 0.0, %v2681
    %v2690 = vsub.f32 0.0, %v2682
    %v2691 = vmul.f32 %v2683, %v2651
    %v2692 = vmul.f32 %v2684, %v2652
    %v2693 = vmul.f32 %v2685, %v2653
    %v2694 = vmul.f32 %v2686, %v2654
    %v2695 = vmul.f32 %v2687, %v2655
    %v2696 = vmul.f32 %v2688, %v2656
    %v2697 = vmul.f32 %v2689, %v2657
    %v2698 = vmul.f32 %v2690, %v2658
    %v2699 = vand.u32 2147483647, %v2587
    %v2700 = vand.u32 2147483647, %v2588
    %v2701 = vand.u32 2147483647, %v2589
    %v2702 = vand.u32 2147483647, %v2590
    %v2703 = vand.u32 2147483647, %v2591
    %v2704 = vand.u32 2147483647, %v2592
    %v2705 = vand.u32 2147483647, %v2593
    %v2706 = vand.u32 2147483647, %v2594
    %v2707 = vmul.f32 %v2699, %v2651
    %v2708 = vmul.f32 %v2700, %v2652
    %v2709 = vmul.f32 %v2701, %v2653
    %v2710 = vmul.f32 %v2702, %v2654
    %v2711 = vmul.f32 %v2703, %v2655
    %v2712 = vmul.f32 %v2704, %v2656
    %v2713 = vmul.f32 %v2705, %v2657
    %v2714 = vmul.f32 %v2706, %v2658
    %v2715 = vmul.f32 %v2691, %v608
    %v2716 = vmul.f32 %v2692, %v609
    %v2717 = vmul.f32 %v2693, %v610
    %v2718 = vmul.f32 %v2694, %v611
    %v2719 = vmul.f32 %v2695, %v612
    %v2720 = vmul.f32 %v2696, %v613
    %v2721 = vmul.f32 %v2697, %v614
    %v2722 = vmul.f32 %v2698, %v615
    %v2723 = vmul.f32 %v2691, %v616
    %v2724 = vmul.f32 %v2692, %v617
    %v2725 = vmul.f32 %v2693, %v618
    %v2726 = vmul.f32 %v2694, %v619
    %v2727 = vmul.f32 %v2695, %v620
    %v2728 = vmul.f32 %v2696, %v621
    %v2729 = vmul.f32 %v2697, %v622
    %v2730 = vmul.f32 %v2698, %v623
    %vm2731 = vcmp.ne.f32.partialorder %v2707, %v2707
    %vm2732 = vcmp.ne.f32.partialorder %v2708, %v2708
    %vm2733 = vcmp.ne.f32.partialorder %v2709, %v2709
    %vm2734 = vcmp.ne.f32.partialorder %v2710, %v2710
    %vm2735 = vcmp.ne.f32.partialorder %v2711, %v2711
    %vm2736 = vcmp.ne.f32.partialorder %v2712, %v2712
    %vm2737 = vcmp.ne.f32.partialorder %v2713, %v2713
    %vm2738 = vcmp.ne.f32.partialorder %v2714, %v2714
    %v2739 = vsel %vm2731, 0.0, %v2715
    %v2740 = vsel %vm2732, 0.0, %v2716
    %v2741 = vsel %vm2733, 0.0, %v2717
    %v2742 = vsel %vm2734, 0.0, %v2718
    %v2743 = vsel %vm2735, 0.0, %v2719
    %v2744 = vsel %vm2736, 0.0, %v2720
    %v2745 = vsel %vm2737, 0.0, %v2721
    %v2746 = vsel %vm2738, 0.0, %v2722
    %v2747 = vsel %vm2731, 0.0, %v2723
    %v2748 = vsel %vm2732, 0.0, %v2724
    %v2749 = vsel %vm2733, 0.0, %v2725
    %v2750 = vsel %vm2734, 0.0, %v2726
    %v2751 = vsel %vm2735, 0.0, %v2727
    %v2752 = vsel %vm2736, 0.0, %v2728
    %v2753 = vsel %vm2737, 0.0, %v2729
    %v2754 = vsel %vm2738, 0.0, %v2730
    %v2755 = vsel %vm2731, -1.0, %v2707
    %v2756 = vsel %vm2732, -1.0, %v2708
    %v2757 = vsel %vm2733, -1.0, %v2709
    %v2758 = vsel %vm2734, -1.0, %v2710
    %v2759 = vsel %vm2735, -1.0, %v2711
    %v2760 = vsel %vm2736, -1.0, %v2712
    %v2761 = vsel %vm2737, -1.0, %v2713
    %v2762 = vsel %vm2738, -1.0, %v2714
    %vm2763 = vcmp.gt.f32.partialorder %v2747, 0.0
    %vm2764 = vcmp.gt.f32.partialorder %v2748, 0.0
    %vm2765 = vcmp.gt.f32.partialorder %v2749, 0.0
    %vm2766 = vcmp.gt.f32.partialorder %v2750, 0.0
    %vm2767 = vcmp.gt.f32.partialorder %v2751, 0.0
    %vm2768 = vcmp.gt.f32.partialorder %v2752, 0.0
    %vm2769 = vcmp.gt.f32.partialorder %v2753, 0.0
    %vm2770 = vcmp.gt.f32.partialorder %v2754, 0.0
    %v2771 = vsel %vm2763, -1.0, 1.0
    %v2772 = vsel %vm2764, -1.0, 1.0
    %v2773 = vsel %vm2765, -1.0, 1.0
    %v2774 = vsel %vm2766, -1.0, 1.0
    %v2775 = vsel %vm2767, -1.0, 1.0
    %v2776 = vsel %vm2768, -1.0, 1.0
    %v2777 = vsel %vm2769, -1.0, 1.0
    %v2778 = vsel %vm2770, -1.0, 1.0
    %v2779 = vmul.f32 %v2739, %v2771
    %v2780 = vmul.f32 %v2740, %v2772
    %v2781 = vmul.f32 %v2741, %v2773
    %v2782 = vmul.f32 %v2742, %v2774
    %v2783 = vmul.f32 %v2743, %v2775
    %v2784 = vmul.f32 %v2744, %v2776
    %v2785 = vmul.f32 %v2745, %v2777
    %v2786 = vmul.f32 %v2746, %v2778
    %2787 = vst [vmem:[#allocation10] sm:$0xff] %v2779
    %2788 = vst [vmem:[#allocation10 + $0x8] sm:$0xff] %v2780
    %2789 = vst [vmem:[#allocation10 + $0x10] sm:$0xff] %v2781
    %2790 = vst [vmem:[#allocation10 + $0x18] sm:$0xff] %v2782
    %2791 = vst [vmem:[#allocation10 + $0x20] sm:$0xff] %v2783
    %2792 = vst [vmem:[#allocation10 + $0x28] sm:$0xff] %v2784
    %2793 = vst [vmem:[#allocation10 + $0x30] sm:$0xff] %v2785
    %2794 = vst [vmem:[#allocation10 + $0x38] sm:$0xff] %v2786
    %v2795 = vmul.f32 %v2747, %v2771
    %v2796 = vmul.f32 %v2748, %v2772
    %v2797 = vmul.f32 %v2749, %v2773
    %v2798 = vmul.f32 %v2750, %v2774
    %v2799 = vmul.f32 %v2751, %v2775
    %v2800 = vmul.f32 %v2752, %v2776
    %v2801 = vmul.f32 %v2753, %v2777
    %v2802 = vmul.f32 %v2754, %v2778
    %s2803 = scalar_lea.vmem [#allocation10], 64
    %2804 = vst [vmem:[%s2803] sm:$0xff] %v2795
    %2805 = vst [vmem:[%s2803 + $0x8] sm:$0xff] %v2796
    %2806 = vst [vmem:[%s2803 + $0x10] sm:$0xff] %v2797
    %2807 = vst [vmem:[%s2803 + $0x18] sm:$0xff] %v2798
    %2808 = vst [vmem:[%s2803 + $0x20] sm:$0xff] %v2799
    %2809 = vst [vmem:[%s2803 + $0x28] sm:$0xff] %v2800
    %2810 = vst [vmem:[%s2803 + $0x30] sm:$0xff] %v2801
    %2811 = vst [vmem:[%s2803 + $0x38] sm:$0xff] %v2802
    %v2812 = vmul.f32 %v2755, %v2771
    %v2813 = vmul.f32 %v2756, %v2772
    %v2814 = vmul.f32 %v2757, %v2773
    %v2815 = vmul.f32 %v2758, %v2774
    %v2816 = vmul.f32 %v2759, %v2775
    %v2817 = vmul.f32 %v2760, %v2776
    %v2818 = vmul.f32 %v2761, %v2777
    %v2819 = vmul.f32 %v2762, %v2778
    %s2820 = scalar_lea.vmem [#allocation10], 128
    %2821 = vst [vmem:[%s2820] sm:$0xff] %v2812
    %2822 = vst [vmem:[%s2820 + $0x8] sm:$0xff] %v2813
    %2823 = vst [vmem:[%s2820 + $0x10] sm:$0xff] %v2814
    %2824 = vst [vmem:[%s2820 + $0x18] sm:$0xff] %v2815
    %2825 = vst [vmem:[%s2820 + $0x20] sm:$0xff] %v2816
    %2826 = vst [vmem:[%s2820 + $0x28] sm:$0xff] %v2817
    %2827 = vst [vmem:[%s2820 + $0x30] sm:$0xff] %v2818
    %2828 = vst [vmem:[%s2820 + $0x38] sm:$0xff] %v2819
    // Predicated region
    $region34: #{tpu_custom_call.1} parent=1 // pred_check
      _
    $region35: #{tpu_custom_call.1} parent=1 // pred_check_branch
      %2830 = sbr.rel (0) target = $region37
    $region36: #{tpu_custom_call.1} parent=1 // pred_region
      %s2832 = ssub.s32 3072, 3072
      %2833 = vsyncadd [#allocation4], %s2832
      %s2834 = sshll.u32 [#allocation10], 4
      %s2835 = int_to_ptr.vmem [resolvable:$true] %s2834
      %2840 = dma.vmem_to_hbm [thread:$0]  %s2835, 3072, %s4, [#allocation4], 256, 256, 16
    $region37: #{tpu_custom_call.1} parent=1 // pred_fallthru
      _
    // Predicated region
    $region38: #{tpu_custom_call.1} parent=1 // pred_check
      _
    $region39: #{tpu_custom_call.1} parent=1 // pred_check_branch
      %2842 = sbr.rel (0) target = $region41
    $region40: #{tpu_custom_call.1} parent=1 // pred_region
      %2843 = dma.done [#allocation4], 3072
    $region41: #{tpu_custom_call.1} parent=1 // pred_fallthru
      _
    %2844 = vsyncpa [#allocation3], 1
    %2845 = vsyncpa [#allocation8], 1
    %2846 = vsyncpa [#allocation4], 1
    %2847 = vsyncpa [#allocation5], 1

</llo_original>
